<compile_context>
chip_gen: v7x
topology: tpu7x:2x2x1
jax: 0.10.0
libtpu: 0.0.40
codegen_flags: <defaults>
</compile_context>

<pallas_src>
import functools

import jax
import jax.numpy as jnp
from jax.experimental import pallas as pl
from jax.experimental.pallas import tpu as pltpu


def _att_module_kernel(*refs, dilation, t_true, t_pad, c_in, c_out, f_dim,
                       has_f, batch_block, compute_dtype, exact_recip):
    f32 = jnp.float32
    if has_f:
        (xpad_ref, xct_ref, mcol_ref, mrow_ref, f_ref,
         wff0_ref, wff1_ref, wff2_ref, bff_ref,
         wq_ref, bq_ref, wk_ref, bk_ref, wv_ref, bv_ref,
         wo_ref, bo_ref, wco_ref, bco_ref, hmask_ref,
         out_ref) = refs
    else:
        (xpad_ref, xct_ref, mcol_ref, mrow_ref,
         wff0_ref, wff1_ref, wff2_ref, bff_ref,
         wq_ref, bq_ref, wk_ref, bk_ref, wv_ref, bv_ref,
         wo_ref, bo_ref, wco_ref, bco_ref, hmask_ref,
         out_ref) = refs
        f_ref = None

    cd = compute_dtype
    Bt = batch_block
    M = Bt * t_pad                       # batch folded into the matmul M dim

    def mm(a, b):
        # MXU matmul; operands in `cd` (bf16 by default), f32 accumulation.
        return jnp.dot(a.astype(cd), b.astype(cd), preferred_element_type=f32)

    # Valid-row mask for the lane padding of T.  This is independent of the
    # user mask (which may legitimately be zero inside the valid range).
    if t_pad != t_true:
        row = jax.lax.broadcasted_iota(jnp.int32, (M, 1), 0) % t_pad
        valid = (row < t_true).astype(f32)                     # (M, 1)
    else:
        valid = None

    # ---- feed_forward: dilated Conv1d (k=3) as 3 accumulating MXU matmuls ----
    acc = mm(xpad_ref[:, pl.ds(0, t_pad), :].reshape(M, c_in), wff0_ref[...])
    acc = acc + mm(xpad_ref[:, pl.ds(dilation, t_pad), :].reshape(M, c_in),
                   wff1_ref[...])
    acc = acc + mm(xpad_ref[:, pl.ds(2 * dilation, t_pad), :].reshape(M, c_in),
                   wff2_ref[...])
    out_ff = jnp.maximum(acc + bff_ref[...], 0.0)              # (M, C_out) f32
    if valid is not None:
        out_ff = out_ff * valid                                # zero padded rows

    # ---- InstanceNorm1d over the true T (single pass: var = E[x^2]-E[x]^2) ----
    out_ff3 = out_ff.reshape(Bt, t_pad, c_out)
    inv_t = 1.0 / t_true
    mean = jnp.sum(out_ff3, axis=1, keepdims=True) * inv_t     # (Bt, 1, C)
    ex2 = jnp.sum(out_ff3 * out_ff3, axis=1, keepdims=True) * inv_t
    var = jnp.maximum(ex2 - mean * mean, 0.0)
    q3 = (out_ff3 - mean) * jax.lax.rsqrt(var + 1e-5)          # (Bt, T, C)
    q2 = q3.reshape(M, c_out)

    # value source: encoder uses normalized q, decoder uses f
    v2 = q2 if f_ref is None else f_ref[...].reshape(M, c_out)

    # ---- Linear attention, all heads fused via a block-diagonal (F, F) mask ----
    Q = jax.nn.sigmoid(mm(q2, wq_ref[...]) + bq_ref[...])      # (M, F) f32
    K = jax.nn.sigmoid(mm(q2, wk_ref[...]) + bk_ref[...])      # (M, F) f32
    V = mm(v2, wv_ref[...]) + bv_ref[...]                      # (M, F) f32
    if valid is not None:
        K = K * valid                  # keep ksum / KV sums over the true T only

    hmask = hmask_ref[...]                                     # (F, F) 0/1 in cd
    Q3 = Q.reshape(Bt, t_pad, f_dim)
    K3 = K.reshape(Bt, t_pad, f_dim)
    V3 = V.reshape(Bt, t_pad, f_dim)

    KV = jnp.einsum('bsd,bse->bde', K3.astype(cd), V3.astype(cd),
                    preferred_element_type=f32) * hmask        # (Bt, F, F) block-diag
    ksum = jnp.sum(K3, axis=1, keepdims=True) + 1e-6           # (Bt, 1, F) f32
    denom = mm((Q3 * ksum).reshape(M, f_dim), hmask)           # per-head sums, (M, F)
    z = pl.reciprocal(denom, approx=True)                      # EUP slot
    if exact_recip:
        z = z * (2.0 - denom * z)      # one Newton step -> ~f32-exact 1/denom
    att = jnp.einsum('bsd,bde->bse', Q3.astype(cd), KV.astype(cd),
                     preferred_element_type=f32).reshape(M, f_dim) * z
    att = mm(att, wo_ref[...]) + bo_ref[...]                   # (M, C_out); alpha folded

    # Linear_Attention output mask + inner residual (still in (T, C) orientation)
    out2 = att.reshape(Bt, t_pad, c_out) * mcol_ref[...] + out_ff3   # (Bt, T, C)

    # ---- 1x1 conv_out emitted directly in (C_out, T): no epilogue transpose.
    # Outer residual / final mask use the original (C, T) x and (1, T) mask refs.
    wco = wco_ref[...]                 # (C_out, C)
    bco = bco_ref[...]                 # (C_out, 1)
    for bb in range(Bt):               # tiny epilogue loop (batch_block is 1-2)
        out3_t = jax.lax.dot_general(
            wco, out2[bb].astype(cd),
            dimension_numbers=(((1,), (1,)), ((), ())),
            preferred_element_type=f32) + bco                  # (C_out, T_pad) lane-dense
        res = (xct_ref[bb].astype(f32) + out3_t) * mrow_ref[bb]
        out_ref[bb] = res.astype(out_ref.dtype)


def _default_vmem_limit_bytes():
    # Generation-aware scoped-VMEM limit: ~3/4 of physical capacity
    # (≈96 MiB on 128-MiB v5e/v6e, ≈48 MiB on 64-MiB v7x).
    try:
        cap = getattr(pltpu.get_tpu_info(), "vmem_capacity_bytes", None)
        if cap:
            return int(cap * 3 // 4)
    except Exception:
        pass
    return 48 * 1024 * 1024


def att_module_forward(x, f, mask, params, *, dilation, alpha,
                       stage='encoder', n_heads=4, batch_block=1,
                       matmul_dtype=jnp.bfloat16, activation_dtype=None,
                       t_pad_multiple=128, exact_recip=True,
                       vmem_limit_bytes=None):
    B, C_in, T = x.shape
    wff = params['wff']                                # (C_out, C_in, 3)
    C_out = wff.shape[0]
    Fdim = params['wq'].shape[0]
    assert C_in == C_out, "outer residual x + out requires in_channel == out_channel"
    assert Fdim % n_heads == 0
    assert B % batch_block == 0
    assert t_pad_multiple % 8 == 0
    Bt = batch_block
    cd = jnp.dtype(matmul_dtype)                       # MXU operand dtype
    ad = jnp.dtype(cd if activation_dtype is None else activation_dtype)

    # Pad T to a lane-dense multiple (unmasked vst); statistics inside the
    # kernel are restricted to the true T via an iota-based valid mask.
    T_pad = int(pl.cdiv(T, t_pad_multiple) * t_pad_multiple)
    Tp = T_pad + 2 * dilation

    # Activations: the kernel computes in (T, C); x and mask are ALSO shipped
    # in their original (C, T)/(1, T) layout so the epilogue needs no transpose.
    x_tc = jnp.transpose(x, (0, 2, 1))                                    # (B, T, C)
    xpad_a = jnp.pad(x_tc, ((0, 0), (dilation, dilation + T_pad - T),
                            (0, 0))).astype(ad)                           # (B, Tp, C)
    x_ct = jnp.pad(x, ((0, 0), (0, 0), (0, T_pad - T)))                   # (B, C, T_pad)
    mask_col = jnp.pad(jnp.transpose(mask, (0, 2, 1)).astype(jnp.float32),
                       ((0, 0), (0, T_pad - T), (0, 0)))                  # (B, T_pad, 1)
    mask_row = jnp.pad(mask.astype(jnp.float32),
                       ((0, 0), (0, 0), (0, T_pad - T)))                  # (B, 1, T_pad)

    # ---- parameter prep (glue; alpha folded into the out-projection) ----
    wff_taps = [jnp.transpose(wff[:, :, k]).astype(cd) for k in range(3)]  # (C_in, C_out)
    bff = params['bff'].reshape(1, C_out).astype(jnp.float32)
    wqT = params['wq'].T.astype(cd); bq = params['bq'].reshape(1, Fdim).astype(jnp.float32)
    wkT = params['wk'].T.astype(cd); bk = params['bk'].reshape(1, Fdim).astype(jnp.float32)
    wvT = params['wv'].T.astype(cd); bv = params['bv'].reshape(1, Fdim).astype(jnp.float32)
    wo_eff = (alpha * params['wo'].T).astype(cd)
    bo_eff = (alpha * params['bo']).reshape(1, C_out).astype(jnp.float32)
    wco2 = params['wco'][:, :, 0].astype(cd)                               # (C_out, C_in)
    bco = params['bco'].reshape(C_out, 1).astype(jnp.float32)

    d = Fdim // n_heads
    heads = jnp.arange(Fdim) // d
    hmask = (heads[:, None] == heads[None, :]).astype(cd)   # (F, F), exact 0/1 in bf16

    # ---- specs ----
    data_args = [xpad_a, x_ct, mask_col, mask_row]
    data_specs = [
        pl.BlockSpec((Bt, Tp, C_in), lambda b: (b, 0, 0)),
        pl.BlockSpec((Bt, C_in, T_pad), lambda b: (b, 0, 0)),
        pl.BlockSpec((Bt, T_pad, 1), lambda b: (b, 0, 0)),
        pl.BlockSpec((Bt, 1, T_pad), lambda b: (b, 0, 0)),
    ]
    has_f = stage != 'encoder'
    if has_f:
        assert f is not None
        f_a = jnp.pad(jnp.transpose(f, (0, 2, 1)),
                      ((0, 0), (0, T_pad - T), (0, 0))).astype(ad)         # (B, T_pad, C)
        data_args.append(f_a)
        data_specs.append(pl.BlockSpec((Bt, T_pad, C_out), lambda b: (b, 0, 0)))

    weight_args = wff_taps + [bff, wqT, bq, wkT, bk, wvT, bv,
                              wo_eff, bo_eff, wco2, bco, hmask]

    def _const_spec(a):
        nd = a.ndim
        return pl.BlockSpec(a.shape, lambda b, _n=nd: (0,) * _n)

    weight_specs = [_const_spec(a) for a in weight_args]

    if vmem_limit_bytes is None:
        vmem_limit_bytes = _default_vmem_limit_bytes()

    kernel = functools.partial(
        _att_module_kernel, dilation=dilation, t_true=T, t_pad=T_pad,
        c_in=C_in, c_out=C_out, f_dim=Fdim, has_f=has_f,
        batch_block=Bt, compute_dtype=cd, exact_recip=exact_recip)

    grid_spec = pltpu.PrefetchScalarGridSpec(
        num_scalar_prefetch=0,
        grid=(B // Bt,),
        in_specs=data_specs + weight_specs,
        out_specs=pl.BlockSpec((Bt, C_out, T_pad), lambda b: (b, 0, 0)),
    )
    out = pl.pallas_call(
        kernel,
        out_shape=jax.ShapeDtypeStruct((B, C_out, T_pad), x.dtype),
        grid_spec=grid_spec,
        compiler_params=pltpu.CompilerParams(
            dimension_semantics=("parallel",),
            vmem_limit_bytes=vmem_limit_bytes),
    )(*data_args, *weight_args)
    return out[:, :, :T] if T_pad != T else out


# -------------------------- pure-JAX reference --------------------------
def reference(x, f, mask, p, *, dilation, alpha, stage='encoder', n_heads=4):
    B, C_in, T = x.shape
    C_out = p['wff'].shape[0]
    xpad = jnp.pad(x, ((0, 0), (0, 0), (dilation, dilation)))
    out = jnp.zeros((B, C_out, T), jnp.float32)
    for k in range(3):
        out = out + jnp.einsum('oi,bit->bot', p['wff'][:, :, k],
                               xpad[:, :, k * dilation: k * dilation + T])
    out = jax.nn.relu(out + p['bff'][None, :, None])
    mean = out.mean(-1, keepdims=True)
    var = ((out - mean) ** 2).mean(-1, keepdims=True)
    q = ((out - mean) / jnp.sqrt(var + 1e-5)).transpose(0, 2, 1)       # (B, T, C)
    v_in = q if stage == 'encoder' else f.transpose(0, 2, 1)
    Q = jax.nn.sigmoid(q @ p['wq'].T + p['bq'])
    K = jax.nn.sigmoid(q @ p['wk'].T + p['bk'])
    V = v_in @ p['wv'].T + p['bv']
    F = Q.shape[-1]
    d = F // n_heads
    Qh = Q.reshape(B, T, n_heads, d).transpose(0, 2, 1, 3)
    Kh = K.reshape(B, T, n_heads, d).transpose(0, 2, 1, 3)
    Vh = V.reshape(B, T, n_heads, d).transpose(0, 2, 1, 3)
    KV = jnp.einsum('bhsd,bhse->bhde', Kh, Vh)
    Z = 1.0 / jnp.einsum('bhsd,bhd->bhs', Qh, Kh.sum(2) + 1e-6)
    att = jnp.einsum('bhde,bhsd,bhs->bhse', KV, Qh, Z)
    att = att.transpose(0, 2, 1, 3).reshape(B, T, F)
    att = (att @ p['wo'].T + p['bo']) * mask[:, 0, :, None]
    out = alpha * att.transpose(0, 2, 1) + out
    out = jnp.einsum('oi,bit->bot', p['wco'][:, :, 0], out) + p['bco'][None, :, None]
    return (x + out) * mask


def init_params(key, c_in, c_out):
    ks = jax.random.split(key, 12)

    def u(k, shape, fan_in):
        b = 1.0 / (fan_in ** 0.5)
        return jax.random.uniform(k, shape, jnp.float32, -b, b)

    return dict(
        wff=u(ks[0], (c_out, c_in, 3), 3 * c_in),
        bff=u(ks[1], (c_out,), 3 * c_in),
        wq=u(ks[2], (c_out, c_out), c_out), bq=u(ks[3], (c_out,), c_out),
        wk=u(ks[4], (c_out, c_out), c_out), bk=u(ks[5], (c_out,), c_out),
        wv=u(ks[6], (c_out, c_out), c_out), bv=u(ks[7], (c_out,), c_out),
        wo=u(ks[8], (c_out, c_out), c_out), bo=u(ks[9], (c_out,), c_out),
        wco=u(ks[10], (c_out, c_out, 1), c_out),
        bco=u(ks[11], (c_out,), c_out),
    )


if __name__ == "__main__":
    key = jax.random.PRNGKey(0)
    k_x, k_f, k_p, k_x2, k_f2, k_p2 = jax.random.split(key, 6)

    # -------- small shape (T=32 pads to 128 lanes) --------
    B, C, T = 2, 16, 32
    dilation, alpha, n_heads = 2, 0.7, 4
    x = jax.random.normal(k_x, (B, C, T), jnp.float32)
    f_dec = jax.random.normal(k_f, (B, C, T), jnp.float32)
    mask = jnp.ones((B, 1, T), jnp.float32).at[:, :, T - 5:].set(0.0)
    params = init_params(k_p, C, C)

    # 1) encoder, f32 compute -> tight check (exercises T-padding statistics)
    out = jax.block_until_ready(att_module_forward(
        x, None, mask, params, dilation=dilation, alpha=alpha,
        stage='encoder', n_heads=n_heads, matmul_dtype=jnp.float32))
    ref = reference(x, None, mask, params, dilation=dilation, alpha=alpha,
                    stage='encoder', n_heads=n_heads)
    assert out.shape == (B, C, T)
    assert bool(jnp.allclose(out, ref, atol=1e-3, rtol=1e-3)), \
        float(jnp.max(jnp.abs(out - ref)))

    # 2) encoder, default bf16 MXU operands / bf16 activation DMA
    out = jax.block_until_ready(att_module_forward(
        x, None, mask, params, dilation=dilation, alpha=alpha,
        stage='encoder', n_heads=n_heads))
    assert bool(jnp.allclose(out, ref, atol=5e-2, rtol=5e-2)), \
        float(jnp.max(jnp.abs(out - ref)))

    # 3) decoder, bf16, batch packed (2 per grid step)
    out = jax.block_until_ready(att_module_forward(
        x, f_dec, mask, params, dilation=dilation, alpha=alpha,
        stage='decoder', n_heads=n_heads, batch_block=2))
    ref = reference(x, f_dec, mask, params, dilation=dilation, alpha=alpha,
                    stage='decoder', n_heads=n_heads)
    assert bool(jnp.allclose(out, ref, atol=5e-2, rtol=5e-2)), \
        float(jnp.max(jnp.abs(out - ref)))

    # -------- larger shape (multi-tile, T not a multiple of 128) --------
    B2, C2, T2, dil2 = 2, 64, 250, 3
    x2 = jax.random.normal(k_x2, (B2, C2, T2), jnp.float32)
    f2 = jax.random.normal(k_f2, (B2, C2, T2), jnp.float32)
    mask2 = jnp.ones((B2, 1, T2), jnp.float32).at[:, :, T2 - 17:].set(0.0)
    params2 = init_params(k_p2, C2, C2)
    out2 = jax.block_until_ready(att_module_forward(
        x2, f2, mask2, params2, dilation=dil2, alpha=alpha,
        stage='decoder', n_heads=n_heads, matmul_dtype=jnp.float32))
    ref2 = reference(x2, f2, mask2, params2, dilation=dil2, alpha=alpha,
                     stage='decoder', n_heads=n_heads)
    assert bool(jnp.allclose(out2, ref2, atol=1e-3, rtol=1e-3)), \
        float(jnp.max(jnp.abs(out2 - ref2)))

    print("KERNEL_OK")
</pallas_src>

<mosaic_0001>
module attributes {stable_mosaic.version = 11 : i64} {
  func.func @_att_module_kernel(%arg0: i32, %arg1: memref<1x132x16xf32, #tpu.memory_space<vmem>>, %arg2: memref<1x16x128xf32, #tpu.memory_space<vmem>>, %arg3: memref<1x128x1xf32, #tpu.memory_space<vmem>>, %arg4: memref<1x1x128xf32, #tpu.memory_space<vmem>>, %arg5: memref<16x16xf32, #tpu.memory_space<vmem>>, %arg6: memref<16x16xf32, #tpu.memory_space<vmem>>, %arg7: memref<16x16xf32, #tpu.memory_space<vmem>>, %arg8: memref<1x16xf32, #tpu.memory_space<vmem>>, %arg9: memref<16x16xf32, #tpu.memory_space<vmem>>, %arg10: memref<1x16xf32, #tpu.memory_space<vmem>>, %arg11: memref<16x16xf32, #tpu.memory_space<vmem>>, %arg12: memref<1x16xf32, #tpu.memory_space<vmem>>, %arg13: memref<16x16xf32, #tpu.memory_space<vmem>>, %arg14: memref<1x16xf32, #tpu.memory_space<vmem>>, %arg15: memref<16x16xf32, #tpu.memory_space<vmem>>, %arg16: memref<1x16xf32, #tpu.memory_space<vmem>>, %arg17: memref<16x16xf32, #tpu.memory_space<vmem>>, %arg18: memref<16x1xf32, #tpu.memory_space<vmem>>, %arg19: memref<16x16xf32, #tpu.memory_space<vmem>>, %arg20: memref<1x16x128xf32, #tpu.memory_space<vmem>>) attributes {dimension_semantics = [#tpu.dimension_semantics<parallel>], iteration_bounds = array<i64: 2>, scalar_prefetch = 0 : i64, scratch_operands = 0 : i64, tpu.core_type = #tpu.core_type<tc>, window_params = [{transform_indices = @transform_0, window_bounds = array<i64: 1, 132, 16>}, {transform_indices = @transform_1, window_bounds = array<i64: 1, 16, 128>}, {transform_indices = @transform_2, window_bounds = array<i64: 1, 128, 1>}, {transform_indices = @transform_3, window_bounds = array<i64: 1, 1, 128>}, {pipeline_mode = #tpu.pipeline_mode<synchronous>, transform_indices = @transform_4, window_bounds = array<i64: 16, 16>}, {pipeline_mode = #tpu.pipeline_mode<synchronous>, transform_indices = @transform_5, window_bounds = array<i64: 16, 16>}, {pipeline_mode = #tpu.pipeline_mode<synchronous>, transform_indices = @transform_6, window_bounds = array<i64: 16, 16>}, {pipeline_mode = #tpu.pipeline_mode<synchronous>, transform_indices = @transform_7, window_bounds = array<i64: 1, 16>}, {pipeline_mode = #tpu.pipeline_mode<synchronous>, transform_indices = @transform_8, window_bounds = array<i64: 16, 16>}, {pipeline_mode = #tpu.pipeline_mode<synchronous>, transform_indices = @transform_9, window_bounds = array<i64: 1, 16>}, {pipeline_mode = #tpu.pipeline_mode<synchronous>, transform_indices = @transform_10, window_bounds = array<i64: 16, 16>}, {pipeline_mode = #tpu.pipeline_mode<synchronous>, transform_indices = @transform_11, window_bounds = array<i64: 1, 16>}, {pipeline_mode = #tpu.pipeline_mode<synchronous>, transform_indices = @transform_12, window_bounds = array<i64: 16, 16>}, {pipeline_mode = #tpu.pipeline_mode<synchronous>, transform_indices = @transform_13, window_bounds = array<i64: 1, 16>}, {pipeline_mode = #tpu.pipeline_mode<synchronous>, transform_indices = @transform_14, window_bounds = array<i64: 16, 16>}, {pipeline_mode = #tpu.pipeline_mode<synchronous>, transform_indices = @transform_15, window_bounds = array<i64: 1, 16>}, {pipeline_mode = #tpu.pipeline_mode<synchronous>, transform_indices = @transform_16, window_bounds = array<i64: 16, 16>}, {pipeline_mode = #tpu.pipeline_mode<synchronous>, transform_indices = @transform_17, window_bounds = array<i64: 16, 1>}, {pipeline_mode = #tpu.pipeline_mode<synchronous>, transform_indices = @transform_18, window_bounds = array<i64: 16, 16>}, {transform_indices = @transform_19, window_bounds = array<i64: 1, 16, 128>}]} {
    %0 = tpu.iota {dimensions = array<i32: 0>} : vector<128x1xi32>
    %c128_i32 = arith.constant 128 : i32
    %c0_i32 = arith.constant 0 : i32
    %1 = arith.cmpi eq, %c128_i32, %c0_i32 : i32
    %c1_i32 = arith.constant 1 : i32
    %2 = arith.select %1, %c1_i32, %c128_i32 : i32
    %3 = vector.broadcast %2 : i32 to vector<128x1xi32>
    %4 = arith.remsi %0, %3 : vector<128x1xi32>
    %c0_i32_0 = arith.constant 0 : i32
    %5 = vector.broadcast %c0_i32_0 : i32 to vector<128x1xi32>
    %6 = arith.cmpi ne, %4, %5 : vector<128x1xi32>
    %c0_i32_1 = arith.constant 0 : i32
    %7 = vector.broadcast %c0_i32_1 : i32 to vector<128x1xi32>
    %8 = arith.cmpi slt, %4, %7 : vector<128x1xi32>
    %c0_i32_2 = arith.constant 0 : i32
    %9 = arith.cmpi slt, %2, %c0_i32_2 : i32
    %10 = vector.broadcast %9 : i1 to vector<128x1xi1>
    %11 = vector.broadcast %10 : vector<128x1xi1> to vector<128x1xi1>
    %12 = arith.xori %8, %11 : vector<128x1xi1>
    %13 = arith.andi %12, %6 : vector<128x1xi1>
    %14 = vector.broadcast %2 : i32 to vector<128x1xi32>
    %15 = arith.addi %4, %14 : vector<128x1xi32>
    %16 = arith.select %13, %15, %4 : vector<128x1xi1>, vector<128x1xi32>
    %c32_i32 = arith.constant 32 : i32
    %17 = vector.broadcast %c32_i32 : i32 to vector<128x1xi32>
    %18 = arith.cmpi slt, %16, %17 : vector<128x1xi32>
    %19 = arith.extui %18 : vector<128x1xi1> to vector<128x1xi32>
    %20 = arith.sitofp %19 : vector<128x1xi32> to vector<128x1xf32>
    %c0 = arith.constant 0 : index
    %c0_3 = arith.constant 0 : index
    %c0_4 = arith.constant 0 : index
    %21 = vector.load %arg1[%c0, %c0_3, %c0_4] : memref<1x132x16xf32, #tpu.memory_space<vmem>>, vector<1x128x16xf32>
    %22 = vector.shape_cast %21 : vector<1x128x16xf32> to vector<128x16xf32>
    %c0_5 = arith.constant 0 : index
    %c0_6 = arith.constant 0 : index
    %23 = vector.load %arg5[%c0_5, %c0_6] : memref<16x16xf32, #tpu.memory_space<vmem>>, vector<16x16xf32>
    %cst = arith.constant dense<0.000000e+00> : vector<128x16xf32>
    %24 = tpu.matmul %22, %23, %cst {dimension_numbers = #tpu.dot_dimension_numbers<[1], [0], [0], [1], [0, 0, 1, 1], [], []>} : vector<128x16xf32>, vector<16x16xf32>, vector<128x16xf32> -> vector<128x16xf32>
    %c0_7 = arith.constant 0 : index
    %c2 = arith.constant 2 : index
    %c0_8 = arith.constant 0 : index
    %25 = vector.load %arg1[%c0_7, %c2, %c0_8] : memref<1x132x16xf32, #tpu.memory_space<vmem>>, vector<1x128x16xf32>
    %26 = vector.shape_cast %25 : vector<1x128x16xf32> to vector<128x16xf32>
    %c0_9 = arith.constant 0 : index
    %c0_10 = arith.constant 0 : index
    %27 = vector.load %arg6[%c0_9, %c0_10] : memref<16x16xf32, #tpu.memory_space<vmem>>, vector<16x16xf32>
    %cst_11 = arith.constant dense<0.000000e+00> : vector<128x16xf32>
    %28 = tpu.matmul %26, %27, %cst_11 {dimension_numbers = #tpu.dot_dimension_numbers<[1], [0], [0], [1], [0, 0, 1, 1], [], []>} : vector<128x16xf32>, vector<16x16xf32>, vector<128x16xf32> -> vector<128x16xf32>
    %29 = arith.addf %24, %28 : vector<128x16xf32>
    %c0_12 = arith.constant 0 : index
    %c4 = arith.constant 4 : index
    %c0_13 = arith.constant 0 : index
    %30 = vector.load %arg1[%c0_12, %c4, %c0_13] : memref<1x132x16xf32, #tpu.memory_space<vmem>>, vector<1x128x16xf32>
    %31 = vector.shape_cast %30 : vector<1x128x16xf32> to vector<128x16xf32>
    %c0_14 = arith.constant 0 : index
    %c0_15 = arith.constant 0 : index
    %32 = vector.load %arg7[%c0_14, %c0_15] : memref<16x16xf32, #tpu.memory_space<vmem>>, vector<16x16xf32>
    %cst_16 = arith.constant dense<0.000000e+00> : vector<128x16xf32>
    %33 = tpu.matmul %31, %32, %cst_16 {dimension_numbers = #tpu.dot_dimension_numbers<[1], [0], [0], [1], [0, 0, 1, 1], [], []>} : vector<128x16xf32>, vector<16x16xf32>, vector<128x16xf32> -> vector<128x16xf32>
    %34 = arith.addf %29, %33 : vector<128x16xf32>
    %c0_17 = arith.constant 0 : index
    %c0_18 = arith.constant 0 : index
    %35 = vector.load %arg8[%c0_17, %c0_18] : memref<1x16xf32, #tpu.memory_space<vmem>>, vector<1x16xf32>
    %36 = vector.broadcast %35 : vector<1x16xf32> to vector<128x16xf32>
    %37 = arith.addf %34, %36 : vector<128x16xf32>
    %cst_19 = arith.constant 0.000000e+00 : f32
    %38 = vector.broadcast %cst_19 : f32 to vector<128x16xf32>
    %39 = arith.maximumf %37, %38 : vector<128x16xf32>
    %40 = vector.broadcast %20 : vector<128x1xf32> to vector<128x16xf32>
    %41 = arith.mulf %39, %40 : vector<128x16xf32>
    %42 = vector.shape_cast %41 : vector<128x16xf32> to vector<1x128x16xf32>
    %cst_20 = arith.constant dense<0.000000e+00> : vector<1x16xf32>
    %43 = vector.multi_reduction <add>, %42, %cst_20 [1] : vector<1x128x16xf32> to vector<1x16xf32>
    %44 = vector.shape_cast %43 : vector<1x16xf32> to vector<1x1x16xf32>
    %cst_21 = arith.constant 3.125000e-02 : f32
    %45 = vector.broadcast %cst_21 : f32 to vector<1x1x16xf32>
    %46 = arith.mulf %44, %45 : vector<1x1x16xf32>
    %47 = arith.mulf %42, %42 : vector<1x128x16xf32>
    %cst_22 = arith.constant dense<0.000000e+00> : vector<1x16xf32>
    %48 = vector.multi_reduction <add>, %47, %cst_22 [1] : vector<1x128x16xf32> to vector<1x16xf32>
    %49 = vector.shape_cast %48 : vector<1x16xf32> to vector<1x1x16xf32>
    %cst_23 = arith.constant 3.125000e-02 : f32
    %50 = vector.broadcast %cst_23 : f32 to vector<1x1x16xf32>
    %51 = arith.mulf %49, %50 : vector<1x1x16xf32>
    %52 = arith.mulf %46, %46 : vector<1x1x16xf32>
    %53 = arith.subf %51, %52 : vector<1x1x16xf32>
    %cst_24 = arith.constant 0.000000e+00 : f32
    %54 = vector.broadcast %cst_24 : f32 to vector<1x1x16xf32>
    %55 = arith.maximumf %53, %54 : vector<1x1x16xf32>
    %56 = vector.broadcast %46 : vector<1x1x16xf32> to vector<1x128x16xf32>
    %57 = arith.subf %42, %56 : vector<1x128x16xf32>
    %cst_25 = arith.constant 9.99999974E-6 : f32
    %58 = vector.broadcast %cst_25 : f32 to vector<1x1x16xf32>
    %59 = arith.addf %55, %58 : vector<1x1x16xf32>
    %60 = math.rsqrt %59 : vector<1x1x16xf32>
    %61 = vector.broadcast %60 : vector<1x1x16xf32> to vector<1x128x16xf32>
    %62 = arith.mulf %57, %61 : vector<1x128x16xf32>
    %63 = vector.shape_cast %62 : vector<1x128x16xf32> to vector<128x16xf32>
    %c0_26 = arith.constant 0 : index
    %c0_27 = arith.constant 0 : index
    %64 = vector.load %arg9[%c0_26, %c0_27] : memref<16x16xf32, #tpu.memory_space<vmem>>, vector<16x16xf32>
    %cst_28 = arith.constant dense<0.000000e+00> : vector<128x16xf32>
    %65 = tpu.matmul %63, %64, %cst_28 {dimension_numbers = #tpu.dot_dimension_numbers<[1], [0], [0], [1], [0, 0, 1, 1], [], []>} : vector<128x16xf32>, vector<16x16xf32>, vector<128x16xf32> -> vector<128x16xf32>
    %c0_29 = arith.constant 0 : index
    %c0_30 = arith.constant 0 : index
    %66 = vector.load %arg10[%c0_29, %c0_30] : memref<1x16xf32, #tpu.memory_space<vmem>>, vector<1x16xf32>
    %67 = vector.broadcast %66 : vector<1x16xf32> to vector<128x16xf32>
    %68 = arith.addf %65, %67 : vector<128x16xf32>
    %69 = arith.negf %68 : vector<128x16xf32>
    %70 = math.exp %69 : vector<128x16xf32>
    %cst_31 = arith.constant 1.000000e+00 : f32
    %71 = vector.broadcast %cst_31 : f32 to vector<128x16xf32>
    %72 = arith.addf %71, %70 : vector<128x16xf32>
    %73 = arith.divf %71, %72 : vector<128x16xf32>
    %c0_32 = arith.constant 0 : index
    %c0_33 = arith.constant 0 : index
    %74 = vector.load %arg11[%c0_32, %c0_33] : memref<16x16xf32, #tpu.memory_space<vmem>>, vector<16x16xf32>
    %cst_34 = arith.constant dense<0.000000e+00> : vector<128x16xf32>
    %75 = tpu.matmul %63, %74, %cst_34 {dimension_numbers = #tpu.dot_dimension_numbers<[1], [0], [0], [1], [0, 0, 1, 1], [], []>} : vector<128x16xf32>, vector<16x16xf32>, vector<128x16xf32> -> vector<128x16xf32>
    %c0_35 = arith.constant 0 : index
    %c0_36 = arith.constant 0 : index
    %76 = vector.load %arg12[%c0_35, %c0_36] : memref<1x16xf32, #tpu.memory_space<vmem>>, vector<1x16xf32>
    %77 = vector.broadcast %76 : vector<1x16xf32> to vector<128x16xf32>
    %78 = arith.addf %75, %77 : vector<128x16xf32>
    %79 = arith.negf %78 : vector<128x16xf32>
    %80 = math.exp %79 : vector<128x16xf32>
    %cst_37 = arith.constant 1.000000e+00 : f32
    %81 = vector.broadcast %cst_37 : f32 to vector<128x16xf32>
    %82 = arith.addf %81, %80 : vector<128x16xf32>
    %83 = arith.divf %81, %82 : vector<128x16xf32>
    %c0_38 = arith.constant 0 : index
    %c0_39 = arith.constant 0 : index
    %84 = vector.load %arg13[%c0_38, %c0_39] : memref<16x16xf32, #tpu.memory_space<vmem>>, vector<16x16xf32>
    %cst_40 = arith.constant dense<0.000000e+00> : vector<128x16xf32>
    %85 = tpu.matmul %63, %84, %cst_40 {dimension_numbers = #tpu.dot_dimension_numbers<[1], [0], [0], [1], [0, 0, 1, 1], [], []>} : vector<128x16xf32>, vector<16x16xf32>, vector<128x16xf32> -> vector<128x16xf32>
    %c0_41 = arith.constant 0 : index
    %c0_42 = arith.constant 0 : index
    %86 = vector.load %arg14[%c0_41, %c0_42] : memref<1x16xf32, #tpu.memory_space<vmem>>, vector<1x16xf32>
    %87 = vector.broadcast %86 : vector<1x16xf32> to vector<128x16xf32>
    %88 = arith.addf %85, %87 : vector<128x16xf32>
    %89 = vector.broadcast %20 : vector<128x1xf32> to vector<128x16xf32>
    %90 = arith.mulf %83, %89 : vector<128x16xf32>
    %c0_43 = arith.constant 0 : index
    %c0_44 = arith.constant 0 : index
    %91 = vector.load %arg19[%c0_43, %c0_44] : memref<16x16xf32, #tpu.memory_space<vmem>>, vector<16x16xf32>
    %92 = vector.shape_cast %73 : vector<128x16xf32> to vector<1x128x16xf32>
    %93 = vector.shape_cast %90 : vector<128x16xf32> to vector<1x128x16xf32>
    %94 = vector.shape_cast %88 : vector<128x16xf32> to vector<1x128x16xf32>
    "tpu.trace_start"() <{level = 10 : i32, message = "bsd,bse->bde"}> : () -> ()
    %cst_45 = arith.constant dense<0.000000e+00> : vector<1x16x16xf32>
    %95 = tpu.matmul %93, %94, %cst_45 {dimension_numbers = #tpu.dot_dimension_numbers<[1], [1], [2], [2], [0, 0, 0, 2, 1, 2], [0], [0]>} : vector<1x128x16xf32>, vector<1x128x16xf32>, vector<1x16x16xf32> -> vector<1x16x16xf32>
    "tpu.trace_stop"() : () -> ()
    %96 = vector.shape_cast %91 : vector<16x16xf32> to vector<1x16x16xf32>
    %97 = arith.mulf %95, %96 : vector<1x16x16xf32>
    %cst_46 = arith.constant dense<0.000000e+00> : vector<1x16xf32>
    %98 = vector.multi_reduction <add>, %93, %cst_46 [1] : vector<1x128x16xf32> to vector<1x16xf32>
    %99 = vector.shape_cast %98 : vector<1x16xf32> to vector<1x1x16xf32>
    %cst_47 = arith.constant 9.99999997E-7 : f32
    %100 = vector.broadcast %cst_47 : f32 to vector<1x1x16xf32>
    %101 = arith.addf %99, %100 : vector<1x1x16xf32>
    %102 = vector.broadcast %101 : vector<1x1x16xf32> to vector<1x128x16xf32>
    %103 = arith.mulf %92, %102 : vector<1x128x16xf32>
    %104 = vector.shape_cast %103 : vector<1x128x16xf32> to vector<128x16xf32>
    %cst_48 = arith.constant dense<0.000000e+00> : vector<128x16xf32>
    %105 = tpu.matmul %104, %91, %cst_48 {dimension_numbers = #tpu.dot_dimension_numbers<[1], [0], [0], [1], [0, 0, 1, 1], [], []>} : vector<128x16xf32>, vector<16x16xf32>, vector<128x16xf32> -> vector<128x16xf32>
    %106 = tpu.reciprocal %105 {approx = true} : vector<128x16xf32> -> vector<128x16xf32>
    %107 = arith.mulf %105, %106 : vector<128x16xf32>
    %cst_49 = arith.constant 2.000000e+00 : f32
    %108 = vector.broadcast %cst_49 : f32 to vector<128x16xf32>
    %109 = arith.subf %108, %107 : vector<128x16xf32>
    %110 = arith.mulf %106, %109 : vector<128x16xf32>
    "tpu.trace_start"() <{level = 10 : i32, message = "bsd,bde->bse"}> : () -> ()
    %cst_50 = arith.constant dense<0.000000e+00> : vector<1x128x16xf32>
    %111 = tpu.matmul %92, %97, %cst_50 {dimension_numbers = #tpu.dot_dimension_numbers<[2], [1], [1], [2], [0, 0, 0, 1, 1, 2], [0], [0]>} : vector<1x128x16xf32>, vector<1x16x16xf32>, vector<1x128x16xf32> -> vector<1x128x16xf32>
    "tpu.trace_stop"() : () -> ()
    %112 = vector.shape_cast %111 : vector<1x128x16xf32> to vector<128x16xf32>
    %113 = arith.mulf %112, %110 : vector<128x16xf32>
    %c0_51 = arith.constant 0 : index
    %c0_52 = arith.constant 0 : index
    %114 = vector.load %arg15[%c0_51, %c0_52] : memref<16x16xf32, #tpu.memory_space<vmem>>, vector<16x16xf32>
    %cst_53 = arith.constant dense<0.000000e+00> : vector<128x16xf32>
    %115 = tpu.matmul %113, %114, %cst_53 {dimension_numbers = #tpu.dot_dimension_numbers<[1], [0], [0], [1], [0, 0, 1, 1], [], []>} : vector<128x16xf32>, vector<16x16xf32>, vector<128x16xf32> -> vector<128x16xf32>
    %c0_54 = arith.constant 0 : index
    %c0_55 = arith.constant 0 : index
    %116 = vector.load %arg16[%c0_54, %c0_55] : memref<1x16xf32, #tpu.memory_space<vmem>>, vector<1x16xf32>
    %117 = vector.broadcast %116 : vector<1x16xf32> to vector<128x16xf32>
    %118 = arith.addf %115, %117 : vector<128x16xf32>
    %119 = vector.shape_cast %118 : vector<128x16xf32> to vector<1x128x16xf32>
    %c0_56 = arith.constant 0 : index
    %c0_57 = arith.constant 0 : index
    %c0_58 = arith.constant 0 : index
    %120 = vector.load %arg3[%c0_56, %c0_57, %c0_58] : memref<1x128x1xf32, #tpu.memory_space<vmem>>, vector<1x128x1xf32>
    %121 = vector.broadcast %120 : vector<1x128x1xf32> to vector<1x128x16xf32>
    %122 = arith.mulf %119, %121 : vector<1x128x16xf32>
    %123 = arith.addf %122, %42 : vector<1x128x16xf32>
    %c0_59 = arith.constant 0 : index
    %c0_60 = arith.constant 0 : index
    %124 = vector.load %arg17[%c0_59, %c0_60] : memref<16x16xf32, #tpu.memory_space<vmem>>, vector<16x16xf32>
    %c0_61 = arith.constant 0 : index
    %c0_62 = arith.constant 0 : index
    %125 = vector.load %arg18[%c0_61, %c0_62] : memref<16x1xf32, #tpu.memory_space<vmem>>, vector<16x1xf32>
    %126 = vector.shape_cast %123 : vector<1x128x16xf32> to vector<128x16xf32>
    %cst_63 = arith.constant dense<0.000000e+00> : vector<16x128xf32>
    %127 = tpu.matmul %124, %126, %cst_63 {dimension_numbers = #tpu.dot_dimension_numbers<[1], [1], [0], [0], [0, 0, 1, 0], [], []>} : vector<16x16xf32>, vector<128x16xf32>, vector<16x128xf32> -> vector<16x128xf32>
    %128 = vector.broadcast %125 : vector<16x1xf32> to vector<16x128xf32>
    %129 = arith.addf %127, %128 : vector<16x128xf32>
    %c0_64 = arith.constant 0 : index
    %c0_65 = arith.constant 0 : index
    %c0_66 = arith.constant 0 : index
    %130 = vector.load %arg2[%c0_64, %c0_65, %c0_66] : memref<1x16x128xf32, #tpu.memory_space<vmem>>, vector<1x16x128xf32>
    %131 = vector.shape_cast %130 : vector<1x16x128xf32> to vector<16x128xf32>
    %132 = arith.addf %131, %129 : vector<16x128xf32>
    %c0_67 = arith.constant 0 : index
    %c0_68 = arith.constant 0 : index
    %c0_69 = arith.constant 0 : index
    %133 = vector.load %arg4[%c0_67, %c0_68, %c0_69] : memref<1x1x128xf32, #tpu.memory_space<vmem>>, vector<1x1x128xf32>
    %134 = vector.shape_cast %133 : vector<1x1x128xf32> to vector<1x128xf32>
    %135 = vector.broadcast %134 : vector<1x128xf32> to vector<16x128xf32>
    %136 = arith.mulf %132, %135 : vector<16x128xf32>
    %c0_70 = arith.constant 0 : index
    %c0_71 = arith.constant 0 : index
    %c0_72 = arith.constant 0 : index
    %137 = vector.load %arg20[%c0_70, %c0_71, %c0_72] : memref<1x16x128xf32, #tpu.memory_space<vmem>>, vector<1x16x128xf32>
    %138 = vector.shape_cast %137 : vector<1x16x128xf32> to vector<16x128xf32>
    %139 = vector.shape_cast %136 : vector<16x128xf32> to vector<1x16x128xf32>
    tpu.vector_store %arg20[%c0_70, %c0_71, %c0_72], %139 {strides = array<i32>} : memref<1x16x128xf32, #tpu.memory_space<vmem>>, vector<1x16x128xf32>,
    return
  }
  func.func @transform_0(%arg0: i32) -> (i32, i32, i32) {
    %c0_i32 = arith.constant 0 : i32
    %c0_i32_0 = arith.constant 0 : i32
    %c0_i32_1 = arith.constant 0 : i32
    return %arg0, %c0_i32, %c0_i32_0 : i32, i32, i32
  }
  func.func @transform_1(%arg0: i32) -> (i32, i32, i32) {
    %c0_i32 = arith.constant 0 : i32
    %c0_i32_0 = arith.constant 0 : i32
    %c0_i32_1 = arith.constant 0 : i32
    return %arg0, %c0_i32, %c0_i32_0 : i32, i32, i32
  }
  func.func @transform_2(%arg0: i32) -> (i32, i32, i32) {
    %c0_i32 = arith.constant 0 : i32
    %c0_i32_0 = arith.constant 0 : i32
    %c0_i32_1 = arith.constant 0 : i32
    return %arg0, %c0_i32, %c0_i32_0 : i32, i32, i32
  }
  func.func @transform_3(%arg0: i32) -> (i32, i32, i32) {
    %c0_i32 = arith.constant 0 : i32
    %c0_i32_0 = arith.constant 0 : i32
    %c0_i32_1 = arith.constant 0 : i32
    return %arg0, %c0_i32, %c0_i32_0 : i32, i32, i32
  }
  func.func @transform_4(%arg0: i32) -> (i32, i32) {
    %c0_i32 = arith.constant 0 : i32
    %c0_i32_0 = arith.constant 0 : i32
    %c0_i32_1 = arith.constant 0 : i32
    return %c0_i32, %c0_i32_0 : i32, i32
  }
  func.func @transform_5(%arg0: i32) -> (i32, i32) {
    %c0_i32 = arith.constant 0 : i32
    %c0_i32_0 = arith.constant 0 : i32
    %c0_i32_1 = arith.constant 0 : i32
    return %c0_i32, %c0_i32_0 : i32, i32
  }
  func.func @transform_6(%arg0: i32) -> (i32, i32) {
    %c0_i32 = arith.constant 0 : i32
    %c0_i32_0 = arith.constant 0 : i32
    %c0_i32_1 = arith.constant 0 : i32
    return %c0_i32, %c0_i32_0 : i32, i32
  }
  func.func @transform_7(%arg0: i32) -> (i32, i32) {
    %c0_i32 = arith.constant 0 : i32
    %c0_i32_0 = arith.constant 0 : i32
    %c0_i32_1 = arith.constant 0 : i32
    return %c0_i32, %c0_i32_0 : i32, i32
  }
  func.func @transform_8(%arg0: i32) -> (i32, i32) {
    %c0_i32 = arith.constant 0 : i32
    %c0_i32_0 = arith.constant 0 : i32
    %c0_i32_1 = arith.constant 0 : i32
    return %c0_i32, %c0_i32_0 : i32, i32
  }
  func.func @transform_9(%arg0: i32) -> (i32, i32) {
    %c0_i32 = arith.constant 0 : i32
    %c0_i32_0 = arith.constant 0 : i32
    %c0_i32_1 = arith.constant 0 : i32
    return %c0_i32, %c0_i32_0 : i32, i32
  }
  func.func @transform_10(%arg0: i32) -> (i32, i32) {
    %c0_i32 = arith.constant 0 : i32
    %c0_i32_0 = arith.constant 0 : i32
    %c0_i32_1 = arith.constant 0 : i32
    return %c0_i32, %c0_i32_0 : i32, i32
  }
  func.func @transform_11(%arg0: i32) -> (i32, i32) {
    %c0_i32 = arith.constant 0 : i32
    %c0_i32_0 = arith.constant 0 : i32
    %c0_i32_1 = arith.constant 0 : i32
    return %c0_i32, %c0_i32_0 : i32, i32
  }
  func.func @transform_12(%arg0: i32) -> (i32, i32) {
    %c0_i32 = arith.constant 0 : i32
    %c0_i32_0 = arith.constant 0 : i32
    %c0_i32_1 = arith.constant 0 : i32
    return %c0_i32, %c0_i32_0 : i32, i32
  }
  func.func @transform_13(%arg0: i32) -> (i32, i32) {
    %c0_i32 = arith.constant 0 : i32
    %c0_i32_0 = arith.constant 0 : i32
    %c0_i32_1 = arith.constant 0 : i32
    return %c0_i32, %c0_i32_0 : i32, i32
  }
  func.func @transform_14(%arg0: i32) -> (i32, i32) {
    %c0_i32 = arith.constant 0 : i32
    %c0_i32_0 = arith.constant 0 : i32
    %c0_i32_1 = arith.constant 0 : i32
    return %c0_i32, %c0_i32_0 : i32, i32
  }
  func.func @transform_15(%arg0: i32) -> (i32, i32) {
    %c0_i32 = arith.constant 0 : i32
    %c0_i32_0 = arith.constant 0 : i32
    %c0_i32_1 = arith.constant 0 : i32
    return %c0_i32, %c0_i32_0 : i32, i32
  }
  func.func @transform_16(%arg0: i32) -> (i32, i32) {
    %c0_i32 = arith.constant 0 : i32
    %c0_i32_0 = arith.constant 0 : i32
    %c0_i32_1 = arith.constant 0 : i32
    return %c0_i32, %c0_i32_0 : i32, i32
  }
  func.func @transform_17(%arg0: i32) -> (i32, i32) {
    %c0_i32 = arith.constant 0 : i32
    %c0_i32_0 = arith.constant 0 : i32
    %c0_i32_1 = arith.constant 0 : i32
    return %c0_i32, %c0_i32_0 : i32, i32
  }
  func.func @transform_18(%arg0: i32) -> (i32, i32) {
    %c0_i32 = arith.constant 0 : i32
    %c0_i32_0 = arith.constant 0 : i32
    %c0_i32_1 = arith.constant 0 : i32
    return %c0_i32, %c0_i32_0 : i32, i32
  }
  func.func @transform_19(%arg0: i32) -> (i32, i32, i32) {
    %c0_i32 = arith.constant 0 : i32
    %c0_i32_0 = arith.constant 0 : i32
    %c0_i32_1 = arith.constant 0 : i32
    return %arg0, %c0_i32, %c0_i32_0 : i32, i32, i32
  }
}

</mosaic_0001>

<llo_original>
// kernel: tpu_custom_call.1
$region0: #{tpu_custom_call.1}
  #allocation0 [shape = 'u32[]', space=smem, size = 0x4, offset = 0x4, fixed_abs, tag = 'smem constant byte address 0x4 - core index']
  #allocation1 [shape = 'u32[144,128]{1,0:T(1,128)}', space=vmem, size = 0x12000, scoped, tag = 'internal scratch']
  %s0 = inlined_call_operand.vmem [shape: f32[2,132,16], index: 0, kind: input, shape index: {}]
  %s1 = inlined_call_operand.vmem [shape: f32[2,16,128], index: 1, kind: input, shape index: {}]
  %s2 = inlined_call_operand.vmem [shape: f32[2,128,1], index: 2, kind: input, shape index: {}]
  %s3 = inlined_call_operand.vmem [shape: f32[2,1,128], index: 3, kind: input, shape index: {}]
  %s4 = inlined_call_operand.vmem [shape: f32[16,16], index: 4, kind: input, shape index: {}]
  %s5 = inlined_call_operand.vmem [shape: f32[16,16], index: 5, kind: input, shape index: {}]
  %s6 = inlined_call_operand.vmem [shape: f32[16,16], index: 6, kind: input, shape index: {}]
  %s7 = inlined_call_operand.vmem [shape: f32[1,16], index: 7, kind: input, shape index: {}]
  %s8 = inlined_call_operand.vmem [shape: f32[16,16], index: 8, kind: input, shape index: {}]
  %s9 = inlined_call_operand.vmem [shape: f32[1,16], index: 9, kind: input, shape index: {}]
  %s10 = inlined_call_operand.vmem [shape: f32[16,16], index: 10, kind: input, shape index: {}]
  %s11 = inlined_call_operand.vmem [shape: f32[1,16], index: 11, kind: input, shape index: {}]
  %s12 = inlined_call_operand.vmem [shape: f32[16,16], index: 12, kind: input, shape index: {}]
  %s13 = inlined_call_operand.vmem [shape: f32[1,16], index: 13, kind: input, shape index: {}]
  %s14 = inlined_call_operand.vmem [shape: f32[16,16], index: 14, kind: input, shape index: {}]
  %s15 = inlined_call_operand.vmem [shape: f32[1,16], index: 15, kind: input, shape index: {}]
  %s16 = inlined_call_operand.vmem [shape: f32[16,16], index: 16, kind: input, shape index: {}]
  %s17 = inlined_call_operand.vmem [shape: f32[16,1], index: 17, kind: input, shape index: {}]
  %s18 = inlined_call_operand.vmem [shape: f32[16,16], index: 18, kind: input, shape index: {}]
  %s19 = inlined_call_operand.hbm [shape: f32[2,16,128], index: 19, kind: output, shape index: {}]
  %s20 = sld [smem:[#allocation0]]
  $region109: #{tpu_custom_call.1} parent=0
    _
  %s22 = ssub.s32 1, %s20
  %s23 = scalar_select 0, %s22, %s20
  $region1: #{tpu_custom_call.1} parent=0
    #allocation2 [shape = 'u8[16384]{0}', space=vmem, size = 0x4000, scoped, tag = 'output window, operand 0']
    #allocation3 [shape = 's32[2]{0}', space=sflag, size = 0x8, scoped, tag = 'scoped memory for tpu_custom_call.1']
    %24 = vsyncpa [#allocation3], 0
    %s25 = scalar_lea.sflag [#allocation3], 1
    %26 = vsyncpa %s25, 0
    loop: start=0, step=1, limit=4
    $region2: #{tpu_custom_call.1} parent=1 // loop_pre_header
      _
    $region3: #{tpu_custom_call.1} parent=1 // loop_header
      %s28 = sphi 0, %s32
      %p29 = scmp.ge.s32.totalorder %s28, 4
      %s38 = sphi 0, %s40
      %s41 = sphi 0, %s38
      %s42 = sphi 0, %s41
      %s58 = sphi 0, %s42
      %s64 = sphi 0, %s66
      %s67 = sphi 0, %s64
      %s68 = sphi 0, %s67
      %s84 = sphi 0, %s68
      %s90 = sphi 0, %s92
      %s93 = sphi 0, %s90
      %s94 = sphi 0, %s93
      %s110 = sphi 0, %s94
      %s116 = sphi 0, %s118
      %s119 = sphi 0, %s116
      %s120 = sphi 0, %s119
      %s136 = sphi 0, %s120
      %s140 = sphi 0, %s140
      %s142 = sphi 0, %s140
      %s143 = sphi 0, %s142
      %s157 = sphi 0, %s143
      %s161 = sphi 0, %s161
      %s163 = sphi 0, %s161
      %s164 = sphi 0, %s163
      %s178 = sphi 0, %s164
      %s182 = sphi 0, %s182
      %s184 = sphi 0, %s182
      %s185 = sphi 0, %s184
      %s199 = sphi 0, %s185
      %s203 = sphi 0, %s203
      %s205 = sphi 0, %s203
      %s206 = sphi 0, %s205
      %s220 = sphi 0, %s206
      %s224 = sphi 0, %s224
      %s226 = sphi 0, %s224
      %s227 = sphi 0, %s226
      %s241 = sphi 0, %s227
      %s245 = sphi 0, %s245
      %s247 = sphi 0, %s245
      %s248 = sphi 0, %s247
      %s262 = sphi 0, %s248
      %s266 = sphi 0, %s266
      %s268 = sphi 0, %s266
      %s269 = sphi 0, %s268
      %s283 = sphi 0, %s269
      %s287 = sphi 0, %s287
      %s289 = sphi 0, %s287
      %s290 = sphi 0, %s289
      %s304 = sphi 0, %s290
      %s308 = sphi 0, %s308
      %s310 = sphi 0, %s308
      %s311 = sphi 0, %s310
      %s325 = sphi 0, %s311
      %s329 = sphi 0, %s329
      %s331 = sphi 0, %s329
      %s332 = sphi 0, %s331
      %s346 = sphi 0, %s332
      %s350 = sphi 0, %s350
      %s352 = sphi 0, %s350
      %s353 = sphi 0, %s352
      %s367 = sphi 0, %s353
      %s371 = sphi 0, %s371
      %s373 = sphi 0, %s371
      %s374 = sphi 0, %s373
      %s388 = sphi 0, %s374
      %s392 = sphi 0, %s392
      %s394 = sphi 0, %s392
      %s395 = sphi 0, %s394
      %s409 = sphi 0, %s395
      %s413 = sphi 0, %s413
      %s415 = sphi 0, %s413
      %s416 = sphi 0, %s415
      %s430 = sphi 0, %s416
      %s434 = sphi 0, %s434
      %s436 = sphi 0, %s434
      %s437 = sphi 0, %s436
      %s451 = sphi 0, %s437
      %s457 = sphi 0, %s459
      %s460 = sphi 0, %s457
      %s461 = sphi 0, %s460
      %s477 = sphi 0, %s461
    $region4: #{tpu_custom_call.1} parent=1 // loop_header_branch
      %31 = sbr.rel (%p29) target = $region8
    $region5: #{tpu_custom_call.1} parent=1 // loop_body
      %s33 = ssub.s32 %s28, 1
      %s34 = ssub.s32 %s28, 2
      %s35 = sadd.s32 %s28, 1
      %s36 = ssub.s32 %s28, %s35
      %p37 = scmp.eq.s32.totalorder %s36, 0
      %s39 = sadd.s32 %s38, 1
      %s40 = scalar_select %p37, %s38, %s39
      %p43 = pneg %p37
      %p44 = scmp.eq.s32.totalorder %s28, 1
      %p45 = por %p43, %p44
      %p46 = scmp.ne.s32.totalorder %s38, %s41
      %p47 = scmp.eq.s32.totalorder %s28, 0
      %p48 = por %p46, %p47
      %p49 = scmp.ne.s32.totalorder %s38, %s41
      %p50 = scmp.eq.s32.totalorder %s33, 1
      %p51 = por %p49, %p50
      %p52 = scmp.ne.s32.totalorder %s41, %s42
      %p53 = scmp.eq.s32.totalorder %s33, 0
      %p54 = por %p52, %p53
      %p55 = scmp.ne.s32.totalorder %s41, %s42
      %p56 = scmp.eq.s32.totalorder %s34, 1
      %p57 = por %p55, %p56
      %p59 = scmp.ne.s32.totalorder %s42, %s58
      %p60 = scmp.eq.s32.totalorder %s34, 0
      %p61 = por %p59, %p60
      %s62 = ssub.s32 %s28, %s35
      %p63 = scmp.eq.s32.totalorder %s62, 0
      %s65 = sadd.s32 %s64, 1
      %s66 = scalar_select %p63, %s64, %s65
      %p69 = pneg %p63
      %p70 = scmp.eq.s32.totalorder %s28, 1
      %p71 = por %p69, %p70
      %p72 = scmp.ne.s32.totalorder %s64, %s67
      %p73 = scmp.eq.s32.totalorder %s28, 0
      %p74 = por %p72, %p73
      %p75 = scmp.ne.s32.totalorder %s64, %s67
      %p76 = scmp.eq.s32.totalorder %s33, 1
      %p77 = por %p75, %p76
      %p78 = scmp.ne.s32.totalorder %s67, %s68
      %p79 = scmp.eq.s32.totalorder %s33, 0
      %p80 = por %p78, %p79
      %p81 = scmp.ne.s32.totalorder %s67, %s68
      %p82 = scmp.eq.s32.totalorder %s34, 1
      %p83 = por %p81, %p82
      %p85 = scmp.ne.s32.totalorder %s68, %s84
      %p86 = scmp.eq.s32.totalorder %s34, 0
      %p87 = por %p85, %p86
      %s88 = ssub.s32 %s28, %s35
      %p89 = scmp.eq.s32.totalorder %s88, 0
      %s91 = sadd.s32 %s90, 1
      %s92 = scalar_select %p89, %s90, %s91
      %p95 = pneg %p89
      %p96 = scmp.eq.s32.totalorder %s28, 1
      %p97 = por %p95, %p96
      %p98 = scmp.ne.s32.totalorder %s90, %s93
      %p99 = scmp.eq.s32.totalorder %s28, 0
      %p100 = por %p98, %p99
      %p101 = scmp.ne.s32.totalorder %s90, %s93
      %p102 = scmp.eq.s32.totalorder %s33, 1
      %p103 = por %p101, %p102
      %p104 = scmp.ne.s32.totalorder %s93, %s94
      %p105 = scmp.eq.s32.totalorder %s33, 0
      %p106 = por %p104, %p105
      %p107 = scmp.ne.s32.totalorder %s93, %s94
      %p108 = scmp.eq.s32.totalorder %s34, 1
      %p109 = por %p107, %p108
      %p111 = scmp.ne.s32.totalorder %s94, %s110
      %p112 = scmp.eq.s32.totalorder %s34, 0
      %p113 = por %p111, %p112
      %s114 = ssub.s32 %s28, %s35
      %p115 = scmp.eq.s32.totalorder %s114, 0
      %s117 = sadd.s32 %s116, 1
      %s118 = scalar_select %p115, %s116, %s117
      %p121 = pneg %p115
      %p122 = scmp.eq.s32.totalorder %s28, 1
      %p123 = por %p121, %p122
      %p124 = scmp.ne.s32.totalorder %s116, %s119
      %p125 = scmp.eq.s32.totalorder %s28, 0
      %p126 = por %p124, %p125
      %p127 = scmp.ne.s32.totalorder %s116, %s119
      %p128 = scmp.eq.s32.totalorder %s33, 1
      %p129 = por %p127, %p128
      %p130 = scmp.ne.s32.totalorder %s119, %s120
      %p131 = scmp.eq.s32.totalorder %s33, 0
      %p132 = por %p130, %p131
      %p133 = scmp.ne.s32.totalorder %s119, %s120
      %p134 = scmp.eq.s32.totalorder %s34, 1
      %p135 = por %p133, %p134
      %p137 = scmp.ne.s32.totalorder %s120, %s136
      %p138 = scmp.eq.s32.totalorder %s34, 0
      %p139 = por %p137, %p138
      %s141 = sadd.s32 %s140, 1
      %p144 = scmp.eq.s32.totalorder %s28, 1
      %p145 = scmp.ne.s32.totalorder %s140, %s142
      %p146 = scmp.eq.s32.totalorder %s28, 0
      %p147 = por %p145, %p146
      %p148 = scmp.ne.s32.totalorder %s140, %s142
      %p149 = scmp.eq.s32.totalorder %s33, 1
      %p150 = por %p148, %p149
      %p151 = scmp.ne.s32.totalorder %s142, %s143
      %p152 = scmp.eq.s32.totalorder %s33, 0
      %p153 = por %p151, %p152
      %p154 = scmp.ne.s32.totalorder %s142, %s143
      %p155 = scmp.eq.s32.totalorder %s34, 1
      %p156 = por %p154, %p155
      %p158 = scmp.ne.s32.totalorder %s143, %s157
      %p159 = scmp.eq.s32.totalorder %s34, 0
      %p160 = por %p158, %p159
      %s162 = sadd.s32 %s161, 1
      %p165 = scmp.eq.s32.totalorder %s28, 1
      %p166 = scmp.ne.s32.totalorder %s161, %s163
      %p167 = scmp.eq.s32.totalorder %s28, 0
      %p168 = por %p166, %p167
      %p169 = scmp.ne.s32.totalorder %s161, %s163
      %p170 = scmp.eq.s32.totalorder %s33, 1
      %p171 = por %p169, %p170
      %p172 = scmp.ne.s32.totalorder %s163, %s164
      %p173 = scmp.eq.s32.totalorder %s33, 0
      %p174 = por %p172, %p173
      %p175 = scmp.ne.s32.totalorder %s163, %s164
      %p176 = scmp.eq.s32.totalorder %s34, 1
      %p177 = por %p175, %p176
      %p179 = scmp.ne.s32.totalorder %s164, %s178
      %p180 = scmp.eq.s32.totalorder %s34, 0
      %p181 = por %p179, %p180
      %s183 = sadd.s32 %s182, 1
      %p186 = scmp.eq.s32.totalorder %s28, 1
      %p187 = scmp.ne.s32.totalorder %s182, %s184
      %p188 = scmp.eq.s32.totalorder %s28, 0
      %p189 = por %p187, %p188
      %p190 = scmp.ne.s32.totalorder %s182, %s184
      %p191 = scmp.eq.s32.totalorder %s33, 1
      %p192 = por %p190, %p191
      %p193 = scmp.ne.s32.totalorder %s184, %s185
      %p194 = scmp.eq.s32.totalorder %s33, 0
      %p195 = por %p193, %p194
      %p196 = scmp.ne.s32.totalorder %s184, %s185
      %p197 = scmp.eq.s32.totalorder %s34, 1
      %p198 = por %p196, %p197
      %p200 = scmp.ne.s32.totalorder %s185, %s199
      %p201 = scmp.eq.s32.totalorder %s34, 0
      %p202 = por %p200, %p201
      %s204 = sadd.s32 %s203, 1
      %p207 = scmp.eq.s32.totalorder %s28, 1
      %p208 = scmp.ne.s32.totalorder %s203, %s205
      %p209 = scmp.eq.s32.totalorder %s28, 0
      %p210 = por %p208, %p209
      %p211 = scmp.ne.s32.totalorder %s203, %s205
      %p212 = scmp.eq.s32.totalorder %s33, 1
      %p213 = por %p211, %p212
      %p214 = scmp.ne.s32.totalorder %s205, %s206
      %p215 = scmp.eq.s32.totalorder %s33, 0
      %p216 = por %p214, %p215
      %p217 = scmp.ne.s32.totalorder %s205, %s206
      %p218 = scmp.eq.s32.totalorder %s34, 1
      %p219 = por %p217, %p218
      %p221 = scmp.ne.s32.totalorder %s206, %s220
      %p222 = scmp.eq.s32.totalorder %s34, 0
      %p223 = por %p221, %p222
      %s225 = sadd.s32 %s224, 1
      %p228 = scmp.eq.s32.totalorder %s28, 1
      %p229 = scmp.ne.s32.totalorder %s224, %s226
      %p230 = scmp.eq.s32.totalorder %s28, 0
      %p231 = por %p229, %p230
      %p232 = scmp.ne.s32.totalorder %s224, %s226
      %p233 = scmp.eq.s32.totalorder %s33, 1
      %p234 = por %p232, %p233
      %p235 = scmp.ne.s32.totalorder %s226, %s227
      %p236 = scmp.eq.s32.totalorder %s33, 0
      %p237 = por %p235, %p236
      %p238 = scmp.ne.s32.totalorder %s226, %s227
      %p239 = scmp.eq.s32.totalorder %s34, 1
      %p240 = por %p238, %p239
      %p242 = scmp.ne.s32.totalorder %s227, %s241
      %p243 = scmp.eq.s32.totalorder %s34, 0
      %p244 = por %p242, %p243
      %s246 = sadd.s32 %s245, 1
      %p249 = scmp.eq.s32.totalorder %s28, 1
      %p250 = scmp.ne.s32.totalorder %s245, %s247
      %p251 = scmp.eq.s32.totalorder %s28, 0
      %p252 = por %p250, %p251
      %p253 = scmp.ne.s32.totalorder %s245, %s247
      %p254 = scmp.eq.s32.totalorder %s33, 1
      %p255 = por %p253, %p254
      %p256 = scmp.ne.s32.totalorder %s247, %s248
      %p257 = scmp.eq.s32.totalorder %s33, 0
      %p258 = por %p256, %p257
      %p259 = scmp.ne.s32.totalorder %s247, %s248
      %p260 = scmp.eq.s32.totalorder %s34, 1
      %p261 = por %p259, %p260
      %p263 = scmp.ne.s32.totalorder %s248, %s262
      %p264 = scmp.eq.s32.totalorder %s34, 0
      %p265 = por %p263, %p264
      %s267 = sadd.s32 %s266, 1
      %p270 = scmp.eq.s32.totalorder %s28, 1
      %p271 = scmp.ne.s32.totalorder %s266, %s268
      %p272 = scmp.eq.s32.totalorder %s28, 0
      %p273 = por %p271, %p272
      %p274 = scmp.ne.s32.totalorder %s266, %s268
      %p275 = scmp.eq.s32.totalorder %s33, 1
      %p276 = por %p274, %p275
      %p277 = scmp.ne.s32.totalorder %s268, %s269
      %p278 = scmp.eq.s32.totalorder %s33, 0
      %p279 = por %p277, %p278
      %p280 = scmp.ne.s32.totalorder %s268, %s269
      %p281 = scmp.eq.s32.totalorder %s34, 1
      %p282 = por %p280, %p281
      %p284 = scmp.ne.s32.totalorder %s269, %s283
      %p285 = scmp.eq.s32.totalorder %s34, 0
      %p286 = por %p284, %p285
      %s288 = sadd.s32 %s287, 1
      %p291 = scmp.eq.s32.totalorder %s28, 1
      %p292 = scmp.ne.s32.totalorder %s287, %s289
      %p293 = scmp.eq.s32.totalorder %s28, 0
      %p294 = por %p292, %p293
      %p295 = scmp.ne.s32.totalorder %s287, %s289
      %p296 = scmp.eq.s32.totalorder %s33, 1
      %p297 = por %p295, %p296
      %p298 = scmp.ne.s32.totalorder %s289, %s290
      %p299 = scmp.eq.s32.totalorder %s33, 0
      %p300 = por %p298, %p299
      %p301 = scmp.ne.s32.totalorder %s289, %s290
      %p302 = scmp.eq.s32.totalorder %s34, 1
      %p303 = por %p301, %p302
      %p305 = scmp.ne.s32.totalorder %s290, %s304
      %p306 = scmp.eq.s32.totalorder %s34, 0
      %p307 = por %p305, %p306
      %s309 = sadd.s32 %s308, 1
      %p312 = scmp.eq.s32.totalorder %s28, 1
      %p313 = scmp.ne.s32.totalorder %s308, %s310
      %p314 = scmp.eq.s32.totalorder %s28, 0
      %p315 = por %p313, %p314
      %p316 = scmp.ne.s32.totalorder %s308, %s310
      %p317 = scmp.eq.s32.totalorder %s33, 1
      %p318 = por %p316, %p317
      %p319 = scmp.ne.s32.totalorder %s310, %s311
      %p320 = scmp.eq.s32.totalorder %s33, 0
      %p321 = por %p319, %p320
      %p322 = scmp.ne.s32.totalorder %s310, %s311
      %p323 = scmp.eq.s32.totalorder %s34, 1
      %p324 = por %p322, %p323
      %p326 = scmp.ne.s32.totalorder %s311, %s325
      %p327 = scmp.eq.s32.totalorder %s34, 0
      %p328 = por %p326, %p327
      %s330 = sadd.s32 %s329, 1
      %p333 = scmp.eq.s32.totalorder %s28, 1
      %p334 = scmp.ne.s32.totalorder %s329, %s331
      %p335 = scmp.eq.s32.totalorder %s28, 0
      %p336 = por %p334, %p335
      %p337 = scmp.ne.s32.totalorder %s329, %s331
      %p338 = scmp.eq.s32.totalorder %s33, 1
      %p339 = por %p337, %p338
      %p340 = scmp.ne.s32.totalorder %s331, %s332
      %p341 = scmp.eq.s32.totalorder %s33, 0
      %p342 = por %p340, %p341
      %p343 = scmp.ne.s32.totalorder %s331, %s332
      %p344 = scmp.eq.s32.totalorder %s34, 1
      %p345 = por %p343, %p344
      %p347 = scmp.ne.s32.totalorder %s332, %s346
      %p348 = scmp.eq.s32.totalorder %s34, 0
      %p349 = por %p347, %p348
      %s351 = sadd.s32 %s350, 1
      %p354 = scmp.eq.s32.totalorder %s28, 1
      %p355 = scmp.ne.s32.totalorder %s350, %s352
      %p356 = scmp.eq.s32.totalorder %s28, 0
      %p357 = por %p355, %p356
      %p358 = scmp.ne.s32.totalorder %s350, %s352
      %p359 = scmp.eq.s32.totalorder %s33, 1
      %p360 = por %p358, %p359
      %p361 = scmp.ne.s32.totalorder %s352, %s353
      %p362 = scmp.eq.s32.totalorder %s33, 0
      %p363 = por %p361, %p362
      %p364 = scmp.ne.s32.totalorder %s352, %s353
      %p365 = scmp.eq.s32.totalorder %s34, 1
      %p366 = por %p364, %p365
      %p368 = scmp.ne.s32.totalorder %s353, %s367
      %p369 = scmp.eq.s32.totalorder %s34, 0
      %p370 = por %p368, %p369
      %s372 = sadd.s32 %s371, 1
      %p375 = scmp.eq.s32.totalorder %s28, 1
      %p376 = scmp.ne.s32.totalorder %s371, %s373
      %p377 = scmp.eq.s32.totalorder %s28, 0
      %p378 = por %p376, %p377
      %p379 = scmp.ne.s32.totalorder %s371, %s373
      %p380 = scmp.eq.s32.totalorder %s33, 1
      %p381 = por %p379, %p380
      %p382 = scmp.ne.s32.totalorder %s373, %s374
      %p383 = scmp.eq.s32.totalorder %s33, 0
      %p384 = por %p382, %p383
      %p385 = scmp.ne.s32.totalorder %s373, %s374
      %p386 = scmp.eq.s32.totalorder %s34, 1
      %p387 = por %p385, %p386
      %p389 = scmp.ne.s32.totalorder %s374, %s388
      %p390 = scmp.eq.s32.totalorder %s34, 0
      %p391 = por %p389, %p390
      %s393 = sadd.s32 %s392, 1
      %p396 = scmp.eq.s32.totalorder %s28, 1
      %p397 = scmp.ne.s32.totalorder %s392, %s394
      %p398 = scmp.eq.s32.totalorder %s28, 0
      %p399 = por %p397, %p398
      %p400 = scmp.ne.s32.totalorder %s392, %s394
      %p401 = scmp.eq.s32.totalorder %s33, 1
      %p402 = por %p400, %p401
      %p403 = scmp.ne.s32.totalorder %s394, %s395
      %p404 = scmp.eq.s32.totalorder %s33, 0
      %p405 = por %p403, %p404
      %p406 = scmp.ne.s32.totalorder %s394, %s395
      %p407 = scmp.eq.s32.totalorder %s34, 1
      %p408 = por %p406, %p407
      %p410 = scmp.ne.s32.totalorder %s395, %s409
      %p411 = scmp.eq.s32.totalorder %s34, 0
      %p412 = por %p410, %p411
      %s414 = sadd.s32 %s413, 1
      %p417 = scmp.eq.s32.totalorder %s28, 1
      %p418 = scmp.ne.s32.totalorder %s413, %s415
      %p419 = scmp.eq.s32.totalorder %s28, 0
      %p420 = por %p418, %p419
      %p421 = scmp.ne.s32.totalorder %s413, %s415
      %p422 = scmp.eq.s32.totalorder %s33, 1
      %p423 = por %p421, %p422
      %p424 = scmp.ne.s32.totalorder %s415, %s416
      %p425 = scmp.eq.s32.totalorder %s33, 0
      %p426 = por %p424, %p425
      %p427 = scmp.ne.s32.totalorder %s415, %s416
      %p428 = scmp.eq.s32.totalorder %s34, 1
      %p429 = por %p427, %p428
      %p431 = scmp.ne.s32.totalorder %s416, %s430
      %p432 = scmp.eq.s32.totalorder %s34, 0
      %p433 = por %p431, %p432
      %s435 = sadd.s32 %s434, 1
      %p438 = scmp.eq.s32.totalorder %s28, 1
      %p439 = scmp.ne.s32.totalorder %s434, %s436
      %p440 = scmp.eq.s32.totalorder %s28, 0
      %p441 = por %p439, %p440
      %p442 = scmp.ne.s32.totalorder %s434, %s436
      %p443 = scmp.eq.s32.totalorder %s33, 1
      %p444 = por %p442, %p443
      %p445 = scmp.ne.s32.totalorder %s436, %s437
      %p446 = scmp.eq.s32.totalorder %s33, 0
      %p447 = por %p445, %p446
      %p448 = scmp.ne.s32.totalorder %s436, %s437
      %p449 = scmp.eq.s32.totalorder %s34, 1
      %p450 = por %p448, %p449
      %p452 = scmp.ne.s32.totalorder %s437, %s451
      %p453 = scmp.eq.s32.totalorder %s34, 0
      %p454 = por %p452, %p453
      %s455 = ssub.s32 %s28, %s35
      %p456 = scmp.eq.s32.totalorder %s455, 0
      %s458 = sadd.s32 %s457, 1
      %s459 = scalar_select %p456, %s457, %s458
      %p462 = pneg %p456
      %p463 = scmp.eq.s32.totalorder %s28, 1
      %p464 = por %p462, %p463
      %p465 = scmp.ne.s32.totalorder %s457, %s460
      %p466 = scmp.eq.s32.totalorder %s28, 0
      %p467 = por %p465, %p466
      %p468 = scmp.ne.s32.totalorder %s457, %s460
      %p469 = scmp.eq.s32.totalorder %s33, 1
      %p470 = por %p468, %p469
      %p471 = scmp.ne.s32.totalorder %s460, %s461
      %p472 = scmp.eq.s32.totalorder %s33, 0
      %p473 = por %p471, %p472
      %p474 = scmp.ne.s32.totalorder %s460, %s461
      %p475 = scmp.eq.s32.totalorder %s34, 1
      %p476 = por %p474, %p475
      %p478 = scmp.ne.s32.totalorder %s461, %s477
      %p479 = scmp.eq.s32.totalorder %s34, 0
      %p480 = por %p478, %p479
      %p481 = scmp.le.s32.totalorder 1, %s28
      %p482 = scmp.lt.s32.totalorder %s28, 3
      %p483 = pnand %p481, %p482
      %p484 = pneg %p483
      // Predicated region
      $region9: #{tpu_custom_call.1} parent=5 // pred_check
        _
      $region10: #{tpu_custom_call.1} parent=5 // pred_check_branch
        %486 = sbr.rel (%p483) target = $region12
      $region11: #{tpu_custom_call.1} parent=5 // pred_region
        %s487 = ssub.s32 %s28, 1
        // Predicated region
        $region13: #{tpu_custom_call.1} parent=11 // pred_check
          %p488 = pneg %p153
        $region14: #{tpu_custom_call.1} parent=11 // pred_check_branch
          %490 = sbr.rel (%p488) target = $region16
        $region15: #{tpu_custom_call.1} parent=11 // pred_region
          _
        $region16: #{tpu_custom_call.1} parent=11 // pred_fallthru
          _
        // Predicated region
        $region17: #{tpu_custom_call.1} parent=11 // pred_check
          %p491 = pneg %p174
        $region18: #{tpu_custom_call.1} parent=11 // pred_check_branch
          %493 = sbr.rel (%p491) target = $region20
        $region19: #{tpu_custom_call.1} parent=11 // pred_region
          _
        $region20: #{tpu_custom_call.1} parent=11 // pred_fallthru
          _
        // Predicated region
        $region21: #{tpu_custom_call.1} parent=11 // pred_check
          %p494 = pneg %p195
        $region22: #{tpu_custom_call.1} parent=11 // pred_check_branch
          %496 = sbr.rel (%p494) target = $region24
        $region23: #{tpu_custom_call.1} parent=11 // pred_region
          _
        $region24: #{tpu_custom_call.1} parent=11 // pred_fallthru
          _
        // Predicated region
        $region25: #{tpu_custom_call.1} parent=11 // pred_check
          %p497 = pneg %p216
        $region26: #{tpu_custom_call.1} parent=11 // pred_check_branch
          %499 = sbr.rel (%p497) target = $region28
        $region27: #{tpu_custom_call.1} parent=11 // pred_region
          _
        $region28: #{tpu_custom_call.1} parent=11 // pred_fallthru
          _
        // Predicated region
        $region29: #{tpu_custom_call.1} parent=11 // pred_check
          %p500 = pneg %p237
        $region30: #{tpu_custom_call.1} parent=11 // pred_check_branch
          %502 = sbr.rel (%p500) target = $region32
        $region31: #{tpu_custom_call.1} parent=11 // pred_region
          _
        $region32: #{tpu_custom_call.1} parent=11 // pred_fallthru
          _
        // Predicated region
        $region33: #{tpu_custom_call.1} parent=11 // pred_check
          %p503 = pneg %p258
        $region34: #{tpu_custom_call.1} parent=11 // pred_check_branch
          %505 = sbr.rel (%p503) target = $region36
        $region35: #{tpu_custom_call.1} parent=11 // pred_region
          _
        $region36: #{tpu_custom_call.1} parent=11 // pred_fallthru
          _
        // Predicated region
        $region37: #{tpu_custom_call.1} parent=11 // pred_check
          %p506 = pneg %p279
        $region38: #{tpu_custom_call.1} parent=11 // pred_check_branch
          %508 = sbr.rel (%p506) target = $region40
        $region39: #{tpu_custom_call.1} parent=11 // pred_region
          _
        $region40: #{tpu_custom_call.1} parent=11 // pred_fallthru
          _
        // Predicated region
        $region41: #{tpu_custom_call.1} parent=11 // pred_check
          %p509 = pneg %p300
        $region42: #{tpu_custom_call.1} parent=11 // pred_check_branch
          %511 = sbr.rel (%p509) target = $region44
        $region43: #{tpu_custom_call.1} parent=11 // pred_region
          _
        $region44: #{tpu_custom_call.1} parent=11 // pred_fallthru
          _
        // Predicated region
        $region45: #{tpu_custom_call.1} parent=11 // pred_check
          %p512 = pneg %p321
        $region46: #{tpu_custom_call.1} parent=11 // pred_check_branch
          %514 = sbr.rel (%p512) target = $region48
        $region47: #{tpu_custom_call.1} parent=11 // pred_region
          _
        $region48: #{tpu_custom_call.1} parent=11 // pred_fallthru
          _
        // Predicated region
        $region49: #{tpu_custom_call.1} parent=11 // pred_check
          %p515 = pneg %p342
        $region50: #{tpu_custom_call.1} parent=11 // pred_check_branch
          %517 = sbr.rel (%p515) target = $region52
        $region51: #{tpu_custom_call.1} parent=11 // pred_region
          _
        $region52: #{tpu_custom_call.1} parent=11 // pred_fallthru
          _
        // Predicated region
        $region53: #{tpu_custom_call.1} parent=11 // pred_check
          %p518 = pneg %p363
        $region54: #{tpu_custom_call.1} parent=11 // pred_check_branch
          %520 = sbr.rel (%p518) target = $region56
        $region55: #{tpu_custom_call.1} parent=11 // pred_region
          _
        $region56: #{tpu_custom_call.1} parent=11 // pred_fallthru
          _
        // Predicated region
        $region57: #{tpu_custom_call.1} parent=11 // pred_check
          %p521 = pneg %p384
        $region58: #{tpu_custom_call.1} parent=11 // pred_check_branch
          %523 = sbr.rel (%p521) target = $region60
        $region59: #{tpu_custom_call.1} parent=11 // pred_region
          _
        $region60: #{tpu_custom_call.1} parent=11 // pred_fallthru
          _
        // Predicated region
        $region61: #{tpu_custom_call.1} parent=11 // pred_check
          %p524 = pneg %p405
        $region62: #{tpu_custom_call.1} parent=11 // pred_check_branch
          %526 = sbr.rel (%p524) target = $region64
        $region63: #{tpu_custom_call.1} parent=11 // pred_region
          _
        $region64: #{tpu_custom_call.1} parent=11 // pred_fallthru
          _
        // Predicated region
        $region65: #{tpu_custom_call.1} parent=11 // pred_check
          %p527 = pneg %p426
        $region66: #{tpu_custom_call.1} parent=11 // pred_check_branch
          %529 = sbr.rel (%p527) target = $region68
        $region67: #{tpu_custom_call.1} parent=11 // pred_region
          _
        $region68: #{tpu_custom_call.1} parent=11 // pred_fallthru
          _
        // Predicated region
        $region69: #{tpu_custom_call.1} parent=11 // pred_check
          %p530 = pneg %p447
        $region70: #{tpu_custom_call.1} parent=11 // pred_check_branch
          %532 = sbr.rel (%p530) target = $region72
        $region71: #{tpu_custom_call.1} parent=11 // pred_region
          _
        $region72: #{tpu_custom_call.1} parent=11 // pred_fallthru
          _
      $region12: #{tpu_custom_call.1} parent=5 // pred_fallthru
        _
      %p533 = scmp.lt.s32.totalorder %s28, 2
      // Predicated region
      $region73: #{tpu_custom_call.1} parent=5 // pred_check
        %p534 = pneg %p533
      $region74: #{tpu_custom_call.1} parent=5 // pred_check_branch
        %536 = sbr.rel (%p534) target = $region76
      $region75: #{tpu_custom_call.1} parent=5 // pred_region
        // Predicated region
        $region77: #{tpu_custom_call.1} parent=75 // pred_check
          %p537 = pneg %p48
        $region78: #{tpu_custom_call.1} parent=75 // pred_check_branch
          %539 = sbr.rel (%p537) target = $region80
        $region79: #{tpu_custom_call.1} parent=75 // pred_region
          %p540 = scmp.lt.s32.totalorder %s28, 1
          %s541 = scalar_select %p540, %s28, 1
          %s542 = smul.addr %s541, 17
          %s543 = smul.addr %s542, 8
          %s544 = scalar_lea.vmem %s0, %s543
        $region80: #{tpu_custom_call.1} parent=75 // pred_fallthru
          _
        // Predicated region
        $region81: #{tpu_custom_call.1} parent=75 // pred_check
          %p545 = pneg %p74
        $region82: #{tpu_custom_call.1} parent=75 // pred_check_branch
          %547 = sbr.rel (%p545) target = $region84
        $region83: #{tpu_custom_call.1} parent=75 // pred_region
          %p548 = scmp.lt.s32.totalorder %s28, 1
          %s549 = scalar_select %p548, %s28, 1
          %s550 = smul.addr %s549, 2
          %s551 = smul.addr %s550, 8
          %s552 = scalar_lea.vmem %s1, %s551
        $region84: #{tpu_custom_call.1} parent=75 // pred_fallthru
          _
        // Predicated region
        $region85: #{tpu_custom_call.1} parent=75 // pred_check
          %p553 = pneg %p100
        $region86: #{tpu_custom_call.1} parent=75 // pred_check_branch
          %555 = sbr.rel (%p553) target = $region88
        $region87: #{tpu_custom_call.1} parent=75 // pred_region
          %p556 = scmp.lt.s32.totalorder %s28, 1
          %s557 = scalar_select %p556, %s28, 1
          %s558 = smul.addr %s557, 16
          %s559 = smul.addr %s558, 8
          %s560 = scalar_lea.vmem %s2, %s559
        $region88: #{tpu_custom_call.1} parent=75 // pred_fallthru
          _
        // Predicated region
        $region89: #{tpu_custom_call.1} parent=75 // pred_check
          %p561 = pneg %p126
        $region90: #{tpu_custom_call.1} parent=75 // pred_check_branch
          %563 = sbr.rel (%p561) target = $region92
        $region91: #{tpu_custom_call.1} parent=75 // pred_region
          %p564 = scmp.lt.s32.totalorder %s28, 1
          %s565 = scalar_select %p564, %s28, 1
          %s566 = scalar_lea.vmem %s3, %s565
        $region92: #{tpu_custom_call.1} parent=75 // pred_fallthru
          _
      $region76: #{tpu_custom_call.1} parent=5 // pred_fallthru
        _
      %p567 = scmp.le.s32.totalorder 1, %s28
      %p568 = scmp.lt.s32.totalorder %s28, 3
      %p569 = pnand %p567, %p568
      %p570 = pneg %p569
      // Predicated region
      $region93: #{tpu_custom_call.1} parent=5 // pred_check
        _
      $region94: #{tpu_custom_call.1} parent=5 // pred_check_branch
        %572 = sbr.rel (%p569) target = $region96
      $region95: #{tpu_custom_call.1} parent=5 // pred_region
        %s573 = ssub.s32 %s28, 1
        %p574 = scmp.lt.s32.totalorder %s33, 1
        %s575 = scalar_select %p574, %s33, 1
        %s576 = smul.addr %s575, 17
        %s577 = smul.addr %s576, 8
        %s578 = scalar_lea.vmem %s0, %s577
        %p579 = pneg %p54
        %p580 = pneg %p51
        %p581 = scmp.lt.s32.totalorder %s33, 1
        %s582 = scalar_select %p581, %s33, 1
        %s583 = smul.addr %s582, 2
        %s584 = smul.addr %s583, 8
        %s585 = scalar_lea.vmem %s1, %s584
        %p586 = pneg %p80
        %p587 = pneg %p77
        %p588 = scmp.lt.s32.totalorder %s33, 1
        %s589 = scalar_select %p588, %s33, 1
        %s590 = smul.addr %s589, 16
        %s591 = smul.addr %s590, 8
        %s592 = scalar_lea.vmem %s2, %s591
        %p593 = pneg %p106
        %p594 = pneg %p103
        %p595 = scmp.lt.s32.totalorder %s33, 1
        %s596 = scalar_select %p595, %s33, 1
        %s597 = scalar_lea.vmem %s3, %s596
        %p598 = pneg %p132
        %p599 = pneg %p129
        %p600 = pneg %p153
        %p601 = pneg %p150
        %p602 = pneg %p174
        %p603 = pneg %p171
        %p604 = pneg %p195
        %p605 = pneg %p192
        %p606 = pneg %p216
        %p607 = pneg %p213
        %p608 = pneg %p237
        %p609 = pneg %p234
        %p610 = pneg %p258
        %p611 = pneg %p255
        %p612 = pneg %p279
        %p613 = pneg %p276
        %p614 = pneg %p300
        %p615 = pneg %p297
        %p616 = pneg %p321
        %p617 = pneg %p318
        %p618 = pneg %p342
        %p619 = pneg %p339
        %p620 = pneg %p363
        %p621 = pneg %p360
        %p622 = pneg %p384
        %p623 = pneg %p381
        %p624 = pneg %p405
        %p625 = pneg %p402
        %p626 = pneg %p426
        %p627 = pneg %p423
        %p628 = pneg %p447
        %p629 = pneg %p444
        %p630 = pneg %p473
        %p631 = pneg %p470
        %s632 = sand.u32 %s460, 1
        %s633 = scalar_lea.sflag [#allocation3], %s632
        %s634 = sand.u32 %s460, 1
        %s635 = smul.addr %s634, 16
        %s636 = scalar_lea.vmem [#allocation2], %s635
        %p637 = scmp.lt.s32.totalorder %s33, 1
        %s638 = scalar_select %p637, %s33, 1
        %s639 = smul.addr %s638, 17
        %s640 = smul.addr %s639, 8
        %s641 = scalar_lea.vmem %s0, %s640
        %p642 = scmp.lt.s32.totalorder %s33, 1
        %s643 = scalar_select %p642, %s33, 1
        %s644 = smul.addr %s643, 2
        %s645 = smul.addr %s644, 8
        %s646 = scalar_lea.vmem %s1, %s645
        %p647 = scmp.lt.s32.totalorder %s33, 1
        %s648 = scalar_select %p647, %s33, 1
        %s649 = smul.addr %s648, 16
        %s650 = smul.addr %s649, 8
        %s651 = scalar_lea.vmem %s2, %s650
        %p652 = scmp.lt.s32.totalorder %s33, 1
        %s653 = scalar_select %p652, %s33, 1
        %s654 = scalar_lea.vmem %s3, %s653
        %v655 = vlaneseq
        %v656 = vshrl.u32 %v655, 7
        %v657 = vadd.s32 %v656, 8
        %v658 = vadd.s32 %v656, 16
        %v659 = vadd.s32 %v656, 24
        %v660 = vadd.s32 %v656, 32
        %v661 = vadd.s32 %v656, 40
        %v662 = vadd.s32 %v656, 48
        %v663 = vadd.s32 %v656, 56
        %v664 = vadd.s32 %v656, 64
        %v665 = vadd.s32 %v656, 72
        %v666 = vadd.s32 %v656, 80
        %v667 = vadd.s32 %v656, 88
        %v668 = vadd.s32 %v656, 96
        %v669 = vadd.s32 %v656, 104
        %v670 = vadd.s32 %v656, 112
        %v671 = vadd.s32 %v656, 120
        %vm672 = vcmp.lt.s32.totalorder %v656, 0
        %v673 = vsub.s32 0, %v656
        %v674 = vsel %vm672, %v673, %v656
        %v675 = vshrl.u32 %v674, 7
        %v676 = vand.u32 %v674, 127
        %v677 = vsub.s32 0, %v676
        %v678 = vsel %vm672, %v677, %v676
        %vm679 = vcmp.lt.s32.totalorder %v657, 0
        %v680 = vsub.s32 0, %v657
        %v681 = vsel %vm679, %v680, %v657
        %v682 = vshrl.u32 %v681, 7
        %v683 = vand.u32 %v681, 127
        %v684 = vsub.s32 0, %v683
        %v685 = vsel %vm679, %v684, %v683
        %vm686 = vcmp.lt.s32.totalorder %v658, 0
        %v687 = vsub.s32 0, %v658
        %v688 = vsel %vm686, %v687, %v658
        %v689 = vshrl.u32 %v688, 7
        %v690 = vand.u32 %v688, 127
        %v691 = vsub.s32 0, %v690
        %v692 = vsel %vm686, %v691, %v690
        %vm693 = vcmp.lt.s32.totalorder %v659, 0
        %v694 = vsub.s32 0, %v659
        %v695 = vsel %vm693, %v694, %v659
        %v696 = vshrl.u32 %v695, 7
        %v697 = vand.u32 %v695, 127
        %v698 = vsub.s32 0, %v697
        %v699 = vsel %vm693, %v698, %v697
        %vm700 = vcmp.lt.s32.totalorder %v660, 0
        %v701 = vsub.s32 0, %v660
        %v702 = vsel %vm700, %v701, %v660
        %v703 = vshrl.u32 %v702, 7
        %v704 = vand.u32 %v702, 127
        %v705 = vsub.s32 0, %v704
        %v706 = vsel %vm700, %v705, %v704
        %vm707 = vcmp.lt.s32.totalorder %v661, 0
        %v708 = vsub.s32 0, %v661
        %v709 = vsel %vm707, %v708, %v661
        %v710 = vshrl.u32 %v709, 7
        %v711 = vand.u32 %v709, 127
        %v712 = vsub.s32 0, %v711
        %v713 = vsel %vm707, %v712, %v711
        %vm714 = vcmp.lt.s32.totalorder %v662, 0
        %v715 = vsub.s32 0, %v662
        %v716 = vsel %vm714, %v715, %v662
        %v717 = vshrl.u32 %v716, 7
        %v718 = vand.u32 %v716, 127
        %v719 = vsub.s32 0, %v718
        %v720 = vsel %vm714, %v719, %v718
        %vm721 = vcmp.lt.s32.totalorder %v663, 0
        %v722 = vsub.s32 0, %v663
        %v723 = vsel %vm721, %v722, %v663
        %v724 = vshrl.u32 %v723, 7
        %v725 = vand.u32 %v723, 127
        %v726 = vsub.s32 0, %v725
        %v727 = vsel %vm721, %v726, %v725
        %vm728 = vcmp.lt.s32.totalorder %v664, 0
        %v729 = vsub.s32 0, %v664
        %v730 = vsel %vm728, %v729, %v664
        %v731 = vshrl.u32 %v730, 7
        %v732 = vand.u32 %v730, 127
        %v733 = vsub.s32 0, %v732
        %v734 = vsel %vm728, %v733, %v732
        %vm735 = vcmp.lt.s32.totalorder %v665, 0
        %v736 = vsub.s32 0, %v665
        %v737 = vsel %vm735, %v736, %v665
        %v738 = vshrl.u32 %v737, 7
        %v739 = vand.u32 %v737, 127
        %v740 = vsub.s32 0, %v739
        %v741 = vsel %vm735, %v740, %v739
        %vm742 = vcmp.lt.s32.totalorder %v666, 0
        %v743 = vsub.s32 0, %v666
        %v744 = vsel %vm742, %v743, %v666
        %v745 = vshrl.u32 %v744, 7
        %v746 = vand.u32 %v744, 127
        %v747 = vsub.s32 0, %v746
        %v748 = vsel %vm742, %v747, %v746
        %vm749 = vcmp.lt.s32.totalorder %v667, 0
        %v750 = vsub.s32 0, %v667
        %v751 = vsel %vm749, %v750, %v667
        %v752 = vshrl.u32 %v751, 7
        %v753 = vand.u32 %v751, 127
        %v754 = vsub.s32 0, %v753
        %v755 = vsel %vm749, %v754, %v753
        %vm756 = vcmp.lt.s32.totalorder %v668, 0
        %v757 = vsub.s32 0, %v668
        %v758 = vsel %vm756, %v757, %v668
        %v759 = vshrl.u32 %v758, 7
        %v760 = vand.u32 %v758, 127
        %v761 = vsub.s32 0, %v760
        %v762 = vsel %vm756, %v761, %v760
        %vm763 = vcmp.lt.s32.totalorder %v669, 0
        %v764 = vsub.s32 0, %v669
        %v765 = vsel %vm763, %v764, %v669
        %v766 = vshrl.u32 %v765, 7
        %v767 = vand.u32 %v765, 127
        %v768 = vsub.s32 0, %v767
        %v769 = vsel %vm763, %v768, %v767
        %vm770 = vcmp.lt.s32.totalorder %v670, 0
        %v771 = vsub.s32 0, %v670
        %v772 = vsel %vm770, %v771, %v670
        %v773 = vshrl.u32 %v772, 7
        %v774 = vand.u32 %v772, 127
        %v775 = vsub.s32 0, %v774
        %v776 = vsel %vm770, %v775, %v774
        %vm777 = vcmp.lt.s32.totalorder %v671, 0
        %v778 = vsub.s32 0, %v671
        %v779 = vsel %vm777, %v778, %v671
        %v780 = vshrl.u32 %v779, 7
        %v781 = vand.u32 %v779, 127
        %v782 = vsub.s32 0, %v781
        %v783 = vsel %vm777, %v782, %v781
        %vm784 = vcmp.ne.s32.totalorder %v678, 0
        %vm785 = vcmp.ne.s32.totalorder %v685, 0
        %vm786 = vcmp.ne.s32.totalorder %v692, 0
        %vm787 = vcmp.ne.s32.totalorder %v699, 0
        %vm788 = vcmp.ne.s32.totalorder %v706, 0
        %vm789 = vcmp.ne.s32.totalorder %v713, 0
        %vm790 = vcmp.ne.s32.totalorder %v720, 0
        %vm791 = vcmp.ne.s32.totalorder %v727, 0
        %vm792 = vcmp.ne.s32.totalorder %v734, 0
        %vm793 = vcmp.ne.s32.totalorder %v741, 0
        %vm794 = vcmp.ne.s32.totalorder %v748, 0
        %vm795 = vcmp.ne.s32.totalorder %v755, 0
        %vm796 = vcmp.ne.s32.totalorder %v762, 0
        %vm797 = vcmp.ne.s32.totalorder %v769, 0
        %vm798 = vcmp.ne.s32.totalorder %v776, 0
        %vm799 = vcmp.ne.s32.totalorder %v783, 0
        %vm800 = vcmp.lt.s32.totalorder %v678, 0
        %vm801 = vcmp.lt.s32.totalorder %v685, 0
        %vm802 = vcmp.lt.s32.totalorder %v692, 0
        %vm803 = vcmp.lt.s32.totalorder %v699, 0
        %vm804 = vcmp.lt.s32.totalorder %v706, 0
        %vm805 = vcmp.lt.s32.totalorder %v713, 0
        %vm806 = vcmp.lt.s32.totalorder %v720, 0
        %vm807 = vcmp.lt.s32.totalorder %v727, 0
        %vm808 = vcmp.lt.s32.totalorder %v734, 0
        %vm809 = vcmp.lt.s32.totalorder %v741, 0
        %vm810 = vcmp.lt.s32.totalorder %v748, 0
        %vm811 = vcmp.lt.s32.totalorder %v755, 0
        %vm812 = vcmp.lt.s32.totalorder %v762, 0
        %vm813 = vcmp.lt.s32.totalorder %v769, 0
        %vm814 = vcmp.lt.s32.totalorder %v776, 0
        %vm815 = vcmp.lt.s32.totalorder %v783, 0
        %vm816 = vmand %vm800, %vm784
        %vm817 = vmand %vm801, %vm785
        %vm818 = vmand %vm802, %vm786
        %vm819 = vmand %vm803, %vm787
        %vm820 = vmand %vm804, %vm788
        %vm821 = vmand %vm805, %vm789
        %vm822 = vmand %vm806, %vm790
        %vm823 = vmand %vm807, %vm791
        %vm824 = vmand %vm808, %vm792
        %vm825 = vmand %vm809, %vm793
        %vm826 = vmand %vm810, %vm794
        %vm827 = vmand %vm811, %vm795
        %vm828 = vmand %vm812, %vm796
        %vm829 = vmand %vm813, %vm797
        %vm830 = vmand %vm814, %vm798
        %vm831 = vmand %vm815, %vm799
        %v832 = vadd.s32 %v678, 128
        %v833 = vadd.s32 %v685, 128
        %v834 = vadd.s32 %v692, 128
        %v835 = vadd.s32 %v699, 128
        %v836 = vadd.s32 %v706, 128
        %v837 = vadd.s32 %v713, 128
        %v838 = vadd.s32 %v720, 128
        %v839 = vadd.s32 %v727, 128
        %v840 = vadd.s32 %v734, 128
        %v841 = vadd.s32 %v741, 128
        %v842 = vadd.s32 %v748, 128
        %v843 = vadd.s32 %v755, 128
        %v844 = vadd.s32 %v762, 128
        %v845 = vadd.s32 %v769, 128
        %v846 = vadd.s32 %v776, 128
        %v847 = vadd.s32 %v783, 128
        %v848 = vsel %vm816, %v832, %v678
        %v849 = vsel %vm817, %v833, %v685
        %v850 = vsel %vm818, %v834, %v692
        %v851 = vsel %vm819, %v835, %v699
        %v852 = vsel %vm820, %v836, %v706
        %v853 = vsel %vm821, %v837, %v713
        %v854 = vsel %vm822, %v838, %v720
        %v855 = vsel %vm823, %v839, %v727
        %v856 = vsel %vm824, %v840, %v734
        %v857 = vsel %vm825, %v841, %v741
        %v858 = vsel %vm826, %v842, %v748
        %v859 = vsel %vm827, %v843, %v755
        %v860 = vsel %vm828, %v844, %v762
        %v861 = vsel %vm829, %v845, %v769
        %v862 = vsel %vm830, %v846, %v776
        %v863 = vsel %vm831, %v847, %v783
        %vm864 = vcmp.lt.s32.totalorder %v848, 32
        %vm865 = vcmp.lt.s32.totalorder %v849, 32
        %vm866 = vcmp.lt.s32.totalorder %v850, 32
        %vm867 = vcmp.lt.s32.totalorder %v851, 32
        %vm868 = vcmp.lt.s32.totalorder %v852, 32
        %vm869 = vcmp.lt.s32.totalorder %v853, 32
        %vm870 = vcmp.lt.s32.totalorder %v854, 32
        %vm871 = vcmp.lt.s32.totalorder %v855, 32
        %vm872 = vcmp.lt.s32.totalorder %v856, 32
        %vm873 = vcmp.lt.s32.totalorder %v857, 32
        %vm874 = vcmp.lt.s32.totalorder %v858, 32
        %vm875 = vcmp.lt.s32.totalorder %v859, 32
        %vm876 = vcmp.lt.s32.totalorder %v860, 32
        %vm877 = vcmp.lt.s32.totalorder %v861, 32
        %vm878 = vcmp.lt.s32.totalorder %v862, 32
        %vm879 = vcmp.lt.s32.totalorder %v863, 32
        %v880 = vsel %vm864, 1, 0
        %v881 = vsel %vm865, 1, 0
        %v882 = vsel %vm866, 1, 0
        %v883 = vsel %vm867, 1, 0
        %v884 = vsel %vm868, 1, 0
        %v885 = vsel %vm869, 1, 0
        %v886 = vsel %vm870, 1, 0
        %v887 = vsel %vm871, 1, 0
        %v888 = vsel %vm872, 1, 0
        %v889 = vsel %vm873, 1, 0
        %v890 = vsel %vm874, 1, 0
        %v891 = vsel %vm875, 1, 0
        %v892 = vsel %vm876, 1, 0
        %v893 = vsel %vm877, 1, 0
        %v894 = vsel %vm878, 1, 0
        %v895 = vsel %vm879, 1, 0
        %v896 = vcvt.s32.f32 %v880
        %v897 = vcvt.s32.f32 %v881
        %v898 = vcvt.s32.f32 %v882
        %v899 = vcvt.s32.f32 %v883
        %v900 = vcvt.s32.f32 %v884
        %v901 = vcvt.s32.f32 %v885
        %v902 = vcvt.s32.f32 %v886
        %v903 = vcvt.s32.f32 %v887
        %v904 = vcvt.s32.f32 %v888
        %v905 = vcvt.s32.f32 %v889
        %v906 = vcvt.s32.f32 %v890
        %v907 = vcvt.s32.f32 %v891
        %v908 = vcvt.s32.f32 %v892
        %v909 = vcvt.s32.f32 %v893
        %v910 = vcvt.s32.f32 %v894
        %v911 = vcvt.s32.f32 %v895
        %v912 = vld [vmem:[%s641] sm:$0xff]
        %v913 = vld [vmem:[%s641 + $0x8] sm:$0xff]
        %v914 = vld [vmem:[%s641 + $0x10] sm:$0xff]
        %v915 = vld [vmem:[%s641 + $0x18] sm:$0xff]
        %v916 = vld [vmem:[%s641 + $0x20] sm:$0xff]
        %v917 = vld [vmem:[%s641 + $0x28] sm:$0xff]
        %v918 = vld [vmem:[%s641 + $0x30] sm:$0xff]
        %v919 = vld [vmem:[%s641 + $0x38] sm:$0xff]
        %v920 = vld [vmem:[%s641 + $0x40] sm:$0xff]
        %v921 = vld [vmem:[%s641 + $0x48] sm:$0xff]
        %v922 = vld [vmem:[%s641 + $0x50] sm:$0xff]
        %v923 = vld [vmem:[%s641 + $0x58] sm:$0xff]
        %v924 = vld [vmem:[%s641 + $0x60] sm:$0xff]
        %v925 = vld [vmem:[%s641 + $0x68] sm:$0xff]
        %v926 = vld [vmem:[%s641 + $0x70] sm:$0xff]
        %v927 = vld [vmem:[%s641 + $0x78] sm:$0xff]
        %v928 = vld [vmem:[%s4] sm:$0xff]
        %v929 = vld [vmem:[%s4 + $0x8] sm:$0xff]
        %v930 = vld [vmem:[%s641 + $0x2] sm:$0xff]
        %v931 = vld [vmem:[%s641 + $0xa] sm:$0xff]
        %v932 = vld [vmem:[%s641 + $0x12] sm:$0xff]
        %v933 = vld [vmem:[%s641 + $0x1a] sm:$0xff]
        %v934 = vld [vmem:[%s641 + $0x22] sm:$0xff]
        %v935 = vld [vmem:[%s641 + $0x2a] sm:$0xff]
        %v936 = vld [vmem:[%s641 + $0x32] sm:$0xff]
        %v937 = vld [vmem:[%s641 + $0x3a] sm:$0xff]
        %v938 = vld [vmem:[%s641 + $0x42] sm:$0xff]
        %v939 = vld [vmem:[%s641 + $0x4a] sm:$0xff]
        %v940 = vld [vmem:[%s641 + $0x52] sm:$0xff]
        %v941 = vld [vmem:[%s641 + $0x5a] sm:$0xff]
        %v942 = vld [vmem:[%s641 + $0x62] sm:$0xff]
        %v943 = vld [vmem:[%s641 + $0x6a] sm:$0xff]
        %v944 = vld [vmem:[%s641 + $0x72] sm:$0xff]
        %v945 = vld [vmem:[%s641 + $0x7a] sm:$0xff]
        %v946 = vld [vmem:[%s5] sm:$0xff]
        %v947 = vld [vmem:[%s5 + $0x8] sm:$0xff]
        %vm948 = vcmask 130048
        %v950 = vsel %vm948, %v930, 0
        %v953 = vsel %vm948, %v931, 0
        %v956 = vsel %vm948, %v932, 0
        %v959 = vsel %vm948, %v933, 0
        %v962 = vsel %vm948, %v934, 0
        %v965 = vsel %vm948, %v935, 0
        %v968 = vsel %vm948, %v936, 0
        %v971 = vsel %vm948, %v937, 0
        %v974 = vsel %vm948, %v938, 0
        %v977 = vsel %vm948, %v939, 0
        %v980 = vsel %vm948, %v940, 0
        %v983 = vsel %vm948, %v941, 0
        %v986 = vsel %vm948, %v942, 0
        %v989 = vsel %vm948, %v943, 0
        %v992 = vsel %vm948, %v944, 0
        %v995 = vsel %vm948, %v945, 0
        %997 = vmatprep.subr.mxu0 0.0
        %998 = vmatpush1.msra.mxu0 %v946
        %999 = vmatprep.subr.mxu0 0.0
        %1000 = vmatpush1.msra.mxu0 %v947
        %1001 = vmatprep.subr.mxu0 0.0
        %1002 = vmatpush1.msra.mxu0 0.0
        %1003 = vmatprep.subr.mxu0 0.0
        %1004 = vmatpush1.msra.mxu0 0.0
        %1005 = vmatprep.subr.mxu0 0.0
        %1006 = vmatpush1.msra.mxu0 0.0
        %1007 = vmatprep.subr.mxu0 0.0
        %1008 = vmatpush1.msra.mxu0 0.0
        %1009 = vmatprep.subr.mxu0 0.0
        %1010 = vmatpush1.msra.mxu0 0.0
        %1011 = vmatprep.subr.mxu0 0.0
        %1012 = vmatpush1.msra.mxu0 0.0
        %1013 = vmatprep.subr.mxu0 0.0
        %1014 = vmatpush1.msra.mxu0 0.0
        %1015 = vmatprep.subr.mxu0 0.0
        %1016 = vmatpush1.msra.mxu0 0.0
        %1017 = vmatprep.subr.mxu0 0.0
        %1018 = vmatpush1.msra.mxu0 0.0
        %1019 = vmatprep.subr.mxu0 0.0
        %1020 = vmatpush1.msra.mxu0 0.0
        %1021 = vmatprep.subr.mxu0 0.0
        %1022 = vmatpush1.msra.mxu0 0.0
        %1023 = vmatprep.subr.mxu0 0.0
        %1024 = vmatpush1.msra.mxu0 0.0
        %1025 = vmatprep.subr.mxu0 0.0
        %1026 = vmatpush1.msra.mxu0 0.0
        %1027 = vmatprep.subr.mxu0 0.0
        %1028 = vmatpush1.msra.mxu0 0.0
        %1029 = vmatprep.subr.mxu0 0.0
        %1030 = vmatpush1.msra.mxu0 0.0
        %1031 = vmatprep.subr.mxu0 0.0
        %1032 = vmatpush1.msra.mxu0 0.0
        %1033 = vmatprep.subr.mxu0 0.0
        %1034 = vmatpush1.msra.mxu0 0.0
        %1035 = vmatprep.subr.mxu0 0.0
        %1036 = vmatpush1.msra.mxu0 0.0
        %1037 = vmatprep.subr.mxu0 0.0
        %1038 = vmatpush1.msra.mxu0 0.0
        %1039 = vmatprep.subr.mxu0 0.0
        %1040 = vmatpush1.msra.mxu0 0.0
        %1041 = vmatprep.subr.mxu0 0.0
        %1042 = vmatpush1.msra.mxu0 0.0
        %1043 = vmatprep.subr.mxu0 0.0
        %1044 = vmatpush1.msra.mxu0 0.0
        %1045 = vmatprep.subr.mxu0 0.0
        %1046 = vmatpush1.msra.mxu0 0.0
        %1047 = vmatprep.subr.mxu0 0.0
        %1048 = vmatpush1.msra.mxu0 0.0
        %1049 = vmatprep.subr.mxu0 0.0
        %1050 = vmatpush1.msra.mxu0 0.0
        %1051 = vmatprep.subr.mxu0 0.0
        %1052 = vmatpush1.msra.mxu0 0.0
        %1053 = vmatprep.subr.mxu0 0.0
        %1054 = vmatpush1.msra.mxu0 0.0
        %1055 = vmatprep.subr.mxu0 0.0
        %1056 = vmatpush1.msra.mxu0 0.0
        %1057 = vmatprep.subr.mxu0 0.0
        %1058 = vmatpush1.msra.mxu0 0.0
        %1059 = vmatprep.subr.mxu0 0.0
        %1060 = vmatpush1.msra.mxu0 0.0
        %1061 = vmatprep.mubr.f32.mxu0 0.0
        %1062 = vmatmul.mubr.f32.gmra.mrb[0].mxu0 %v950
        %v1063 = vpop.f32.mrb[0].mxu0
        %v1064 = vadd.f32 0.0, %v1063
        %v1065 = vpop.f32.mrb[0].mxu0
        %1066 = vmatprep.mubr.f32.mxu0 0.0
        %1067 = vmatmul.mubr.f32.gmra.mrb[0].mxu0 %v953
        %v1068 = vpop.f32.mrb[0].mxu0
        %v1069 = vadd.f32 0.0, %v1068
        %v1070 = vpop.f32.mrb[0].mxu0
        %1071 = vmatprep.mubr.f32.mxu0 0.0
        %1072 = vmatmul.mubr.f32.gmra.mrb[0].mxu0 %v956
        %v1073 = vpop.f32.mrb[0].mxu0
        %v1074 = vadd.f32 0.0, %v1073
        %v1075 = vpop.f32.mrb[0].mxu0
        %1076 = vmatprep.mubr.f32.mxu0 0.0
        %1077 = vmatmul.mubr.f32.gmra.mrb[0].mxu0 %v959
        %v1078 = vpop.f32.mrb[0].mxu0
        %v1079 = vadd.f32 0.0, %v1078
        %v1080 = vpop.f32.mrb[0].mxu0
        %1081 = vmatprep.mubr.f32.mxu0 0.0
        %1082 = vmatmul.mubr.f32.gmra.mrb[0].mxu0 %v962
        %v1083 = vpop.f32.mrb[0].mxu0
        %v1084 = vadd.f32 0.0, %v1083
        %v1085 = vpop.f32.mrb[0].mxu0
        %1086 = vmatprep.mubr.f32.mxu0 0.0
        %1087 = vmatmul.mubr.f32.gmra.mrb[0].mxu0 %v965
        %v1088 = vpop.f32.mrb[0].mxu0
        %v1089 = vadd.f32 0.0, %v1088
        %v1090 = vpop.f32.mrb[0].mxu0
        %1091 = vmatprep.mubr.f32.mxu0 0.0
        %1092 = vmatmul.mubr.f32.gmra.mrb[0].mxu0 %v968
        %v1093 = vpop.f32.mrb[0].mxu0
        %v1094 = vadd.f32 0.0, %v1093
        %v1095 = vpop.f32.mrb[0].mxu0
        %1096 = vmatprep.mubr.f32.mxu0 0.0
        %1097 = vmatmul.mubr.f32.gmra.mrb[0].mxu0 %v971
        %v1098 = vpop.f32.mrb[0].mxu0
        %v1099 = vadd.f32 0.0, %v1098
        %v1100 = vpop.f32.mrb[0].mxu0
        %1101 = vmatprep.mubr.f32.mxu0 0.0
        %1102 = vmatmul.mubr.f32.gmra.mrb[0].mxu0 %v974
        %v1103 = vpop.f32.mrb[0].mxu0
        %v1104 = vadd.f32 0.0, %v1103
        %v1105 = vpop.f32.mrb[0].mxu0
        %1106 = vmatprep.mubr.f32.mxu0 0.0
        %1107 = vmatmul.mubr.f32.gmra.mrb[0].mxu0 %v977
        %v1108 = vpop.f32.mrb[0].mxu0
        %v1109 = vadd.f32 0.0, %v1108
        %v1110 = vpop.f32.mrb[0].mxu0
        %1111 = vmatprep.mubr.f32.mxu0 0.0
        %1112 = vmatmul.mubr.f32.gmra.mrb[0].mxu0 %v980
        %v1113 = vpop.f32.mrb[0].mxu0
        %v1114 = vadd.f32 0.0, %v1113
        %v1115 = vpop.f32.mrb[0].mxu0
        %1116 = vmatprep.mubr.f32.mxu0 0.0
        %1117 = vmatmul.mubr.f32.gmra.mrb[0].mxu0 %v983
        %v1118 = vpop.f32.mrb[0].mxu0
        %v1119 = vadd.f32 0.0, %v1118
        %v1120 = vpop.f32.mrb[0].mxu0
        %1121 = vmatprep.mubr.f32.mxu0 0.0
        %1122 = vmatmul.mubr.f32.gmra.mrb[0].mxu0 %v986
        %v1123 = vpop.f32.mrb[0].mxu0
        %v1124 = vadd.f32 0.0, %v1123
        %v1125 = vpop.f32.mrb[0].mxu0
        %1126 = vmatprep.mubr.f32.mxu0 0.0
        %1127 = vmatmul.mubr.f32.gmra.mrb[0].mxu0 %v989
        %v1128 = vpop.f32.mrb[0].mxu0
        %v1129 = vadd.f32 0.0, %v1128
        %v1130 = vpop.f32.mrb[0].mxu0
        %1131 = vmatprep.mubr.f32.mxu0 0.0
        %1132 = vmatmul.mubr.f32.gmra.mrb[0].mxu0 %v992
        %v1133 = vpop.f32.mrb[0].mxu0
        %v1134 = vadd.f32 0.0, %v1133
        %v1135 = vpop.f32.mrb[0].mxu0
        %1136 = vmatprep.mubr.f32.mxu0 0.0
        %1137 = vmatmul.mubr.f32.gmra.mrb[0].mxu0 %v995
        %v1138 = vpop.f32.mrb[0].mxu0
        %v1139 = vadd.f32 0.0, %v1138
        %v1140 = vpop.f32.mrb[0].mxu0
        %1141 = vdwg.mxu0
        %v1143 = vsel %vm948, %v912, 0
        %v1146 = vsel %vm948, %v913, 0
        %v1149 = vsel %vm948, %v914, 0
        %v1152 = vsel %vm948, %v915, 0
        %v1155 = vsel %vm948, %v916, 0
        %v1158 = vsel %vm948, %v917, 0
        %v1161 = vsel %vm948, %v918, 0
        %v1164 = vsel %vm948, %v919, 0
        %v1167 = vsel %vm948, %v920, 0
        %v1170 = vsel %vm948, %v921, 0
        %v1173 = vsel %vm948, %v922, 0
        %v1176 = vsel %vm948, %v923, 0
        %v1179 = vsel %vm948, %v924, 0
        %v1182 = vsel %vm948, %v925, 0
        %v1185 = vsel %vm948, %v926, 0
        %v1188 = vsel %vm948, %v927, 0
        %1190 = vmatprep.subr.mxu0 0.0
        %1191 = vmatpush1.msra.mxu0 %v928
        %1192 = vmatprep.subr.mxu0 0.0
        %1193 = vmatpush1.msra.mxu0 %v929
        %1194 = vmatprep.subr.mxu0 0.0
        %1195 = vmatpush1.msra.mxu0 0.0
        %1196 = vmatprep.subr.mxu0 0.0
        %1197 = vmatpush1.msra.mxu0 0.0
        %1198 = vmatprep.subr.mxu0 0.0
        %1199 = vmatpush1.msra.mxu0 0.0
        %1200 = vmatprep.subr.mxu0 0.0
        %1201 = vmatpush1.msra.mxu0 0.0
        %1202 = vmatprep.subr.mxu0 0.0
        %1203 = vmatpush1.msra.mxu0 0.0
        %1204 = vmatprep.subr.mxu0 0.0
        %1205 = vmatpush1.msra.mxu0 0.0
        %1206 = vmatprep.subr.mxu0 0.0
        %1207 = vmatpush1.msra.mxu0 0.0
        %1208 = vmatprep.subr.mxu0 0.0
        %1209 = vmatpush1.msra.mxu0 0.0
        %1210 = vmatprep.subr.mxu0 0.0
        %1211 = vmatpush1.msra.mxu0 0.0
        %1212 = vmatprep.subr.mxu0 0.0
        %1213 = vmatpush1.msra.mxu0 0.0
        %1214 = vmatprep.subr.mxu0 0.0
        %1215 = vmatpush1.msra.mxu0 0.0
        %1216 = vmatprep.subr.mxu0 0.0
        %1217 = vmatpush1.msra.mxu0 0.0
        %1218 = vmatprep.subr.mxu0 0.0
        %1219 = vmatpush1.msra.mxu0 0.0
        %1220 = vmatprep.subr.mxu0 0.0
        %1221 = vmatpush1.msra.mxu0 0.0
        %1222 = vmatprep.subr.mxu0 0.0
        %1223 = vmatpush1.msra.mxu0 0.0
        %1224 = vmatprep.subr.mxu0 0.0
        %1225 = vmatpush1.msra.mxu0 0.0
        %1226 = vmatprep.subr.mxu0 0.0
        %1227 = vmatpush1.msra.mxu0 0.0
        %1228 = vmatprep.subr.mxu0 0.0
        %1229 = vmatpush1.msra.mxu0 0.0
        %1230 = vmatprep.subr.mxu0 0.0
        %1231 = vmatpush1.msra.mxu0 0.0
        %1232 = vmatprep.subr.mxu0 0.0
        %1233 = vmatpush1.msra.mxu0 0.0
        %1234 = vmatprep.subr.mxu0 0.0
        %1235 = vmatpush1.msra.mxu0 0.0
        %1236 = vmatprep.subr.mxu0 0.0
        %1237 = vmatpush1.msra.mxu0 0.0
        %1238 = vmatprep.subr.mxu0 0.0
        %1239 = vmatpush1.msra.mxu0 0.0
        %1240 = vmatprep.subr.mxu0 0.0
        %1241 = vmatpush1.msra.mxu0 0.0
        %1242 = vmatprep.subr.mxu0 0.0
        %1243 = vmatpush1.msra.mxu0 0.0
        %1244 = vmatprep.subr.mxu0 0.0
        %1245 = vmatpush1.msra.mxu0 0.0
        %1246 = vmatprep.subr.mxu0 0.0
        %1247 = vmatpush1.msra.mxu0 0.0
        %1248 = vmatprep.subr.mxu0 0.0
        %1249 = vmatpush1.msra.mxu0 0.0
        %1250 = vmatprep.subr.mxu0 0.0
        %1251 = vmatpush1.msra.mxu0 0.0
        %1252 = vmatprep.subr.mxu0 0.0
        %1253 = vmatpush1.msra.mxu0 0.0
        %1254 = vmatprep.mubr.f32.mxu0 0.0
        %1255 = vmatmul.mubr.f32.gmra.mrb[0].mxu0 %v1143
        %v1256 = vpop.f32.mrb[0].mxu0
        %v1257 = vadd.f32 %v1064, %v1256
        %v1258 = vpop.f32.mrb[0].mxu0
        %1259 = vmatprep.mubr.f32.mxu0 0.0
        %1260 = vmatmul.mubr.f32.gmra.mrb[0].mxu0 %v1146
        %v1261 = vpop.f32.mrb[0].mxu0
        %v1262 = vadd.f32 %v1069, %v1261
        %v1263 = vpop.f32.mrb[0].mxu0
        %1264 = vmatprep.mubr.f32.mxu0 0.0
        %1265 = vmatmul.mubr.f32.gmra.mrb[0].mxu0 %v1149
        %v1266 = vpop.f32.mrb[0].mxu0
        %v1267 = vadd.f32 %v1074, %v1266
        %v1268 = vpop.f32.mrb[0].mxu0
        %1269 = vmatprep.mubr.f32.mxu0 0.0
        %1270 = vmatmul.mubr.f32.gmra.mrb[0].mxu0 %v1152
        %v1271 = vpop.f32.mrb[0].mxu0
        %v1272 = vadd.f32 %v1079, %v1271
        %v1273 = vpop.f32.mrb[0].mxu0
        %1274 = vmatprep.mubr.f32.mxu0 0.0
        %1275 = vmatmul.mubr.f32.gmra.mrb[0].mxu0 %v1155
        %v1276 = vpop.f32.mrb[0].mxu0
        %v1277 = vadd.f32 %v1084, %v1276
        %v1278 = vpop.f32.mrb[0].mxu0
        %1279 = vmatprep.mubr.f32.mxu0 0.0
        %1280 = vmatmul.mubr.f32.gmra.mrb[0].mxu0 %v1158
        %v1281 = vpop.f32.mrb[0].mxu0
        %v1282 = vadd.f32 %v1089, %v1281
        %v1283 = vpop.f32.mrb[0].mxu0
        %1284 = vmatprep.mubr.f32.mxu0 0.0
        %1285 = vmatmul.mubr.f32.gmra.mrb[0].mxu0 %v1161
        %v1286 = vpop.f32.mrb[0].mxu0
        %v1287 = vadd.f32 %v1094, %v1286
        %v1288 = vpop.f32.mrb[0].mxu0
        %1289 = vmatprep.mubr.f32.mxu0 0.0
        %1290 = vmatmul.mubr.f32.gmra.mrb[0].mxu0 %v1164
        %v1291 = vpop.f32.mrb[0].mxu0
        %v1292 = vadd.f32 %v1099, %v1291
        %v1293 = vpop.f32.mrb[0].mxu0
        %1294 = vmatprep.mubr.f32.mxu0 0.0
        %1295 = vmatmul.mubr.f32.gmra.mrb[0].mxu0 %v1167
        %v1296 = vpop.f32.mrb[0].mxu0
        %v1297 = vadd.f32 %v1104, %v1296
        %v1298 = vpop.f32.mrb[0].mxu0
        %1299 = vmatprep.mubr.f32.mxu0 0.0
        %1300 = vmatmul.mubr.f32.gmra.mrb[0].mxu0 %v1170
        %v1301 = vpop.f32.mrb[0].mxu0
        %v1302 = vadd.f32 %v1109, %v1301
        %v1303 = vpop.f32.mrb[0].mxu0
        %1304 = vmatprep.mubr.f32.mxu0 0.0
        %1305 = vmatmul.mubr.f32.gmra.mrb[0].mxu0 %v1173
        %v1306 = vpop.f32.mrb[0].mxu0
        %v1307 = vadd.f32 %v1114, %v1306
        %v1308 = vpop.f32.mrb[0].mxu0
        %1309 = vmatprep.mubr.f32.mxu0 0.0
        %1310 = vmatmul.mubr.f32.gmra.mrb[0].mxu0 %v1176
        %v1311 = vpop.f32.mrb[0].mxu0
        %v1312 = vadd.f32 %v1119, %v1311
        %v1313 = vpop.f32.mrb[0].mxu0
        %1314 = vmatprep.mubr.f32.mxu0 0.0
        %1315 = vmatmul.mubr.f32.gmra.mrb[0].mxu0 %v1179
        %v1316 = vpop.f32.mrb[0].mxu0
        %v1317 = vadd.f32 %v1124, %v1316
        %v1318 = vpop.f32.mrb[0].mxu0
        %1319 = vmatprep.mubr.f32.mxu0 0.0
        %1320 = vmatmul.mubr.f32.gmra.mrb[0].mxu0 %v1182
        %v1321 = vpop.f32.mrb[0].mxu0
        %v1322 = vadd.f32 %v1129, %v1321
        %v1323 = vpop.f32.mrb[0].mxu0
        %1324 = vmatprep.mubr.f32.mxu0 0.0
        %1325 = vmatmul.mubr.f32.gmra.mrb[0].mxu0 %v1185
        %v1326 = vpop.f32.mrb[0].mxu0
        %v1327 = vadd.f32 %v1134, %v1326
        %v1328 = vpop.f32.mrb[0].mxu0
        %1329 = vmatprep.mubr.f32.mxu0 0.0
        %1330 = vmatmul.mubr.f32.gmra.mrb[0].mxu0 %v1188
        %v1331 = vpop.f32.mrb[0].mxu0
        %v1332 = vadd.f32 %v1139, %v1331
        %v1333 = vpop.f32.mrb[0].mxu0
        %1334 = vdwg.mxu0
        %v1335 = vld [vmem:[%s641 + $0x4] sm:$0xff]
        %v1336 = vld [vmem:[%s641 + $0xc] sm:$0xff]
        %v1337 = vld [vmem:[%s641 + $0x14] sm:$0xff]
        %v1338 = vld [vmem:[%s641 + $0x1c] sm:$0xff]
        %v1339 = vld [vmem:[%s641 + $0x24] sm:$0xff]
        %v1340 = vld [vmem:[%s641 + $0x2c] sm:$0xff]
        %v1341 = vld [vmem:[%s641 + $0x34] sm:$0xff]
        %v1342 = vld [vmem:[%s641 + $0x3c] sm:$0xff]
        %v1343 = vld [vmem:[%s641 + $0x44] sm:$0xff]
        %v1344 = vld [vmem:[%s641 + $0x4c] sm:$0xff]
        %v1345 = vld [vmem:[%s641 + $0x54] sm:$0xff]
        %v1346 = vld [vmem:[%s641 + $0x5c] sm:$0xff]
        %v1347 = vld [vmem:[%s641 + $0x64] sm:$0xff]
        %v1348 = vld [vmem:[%s641 + $0x6c] sm:$0xff]
        %v1349 = vld [vmem:[%s641 + $0x74] sm:$0xff]
        %v1350 = vld [vmem:[%s641 + $0x7c] sm:$0xff]
        %v1351 = vld [vmem:[%s6] sm:$0xff]
        %v1352 = vld [vmem:[%s6 + $0x8] sm:$0xff]
        %v1354 = vsel %vm948, %v1335, 0
        %v1357 = vsel %vm948, %v1336, 0
        %v1360 = vsel %vm948, %v1337, 0
        %v1363 = vsel %vm948, %v1338, 0
        %v1366 = vsel %vm948, %v1339, 0
        %v1369 = vsel %vm948, %v1340, 0
        %v1372 = vsel %vm948, %v1341, 0
        %v1375 = vsel %vm948, %v1342, 0
        %v1378 = vsel %vm948, %v1343, 0
        %v1381 = vsel %vm948, %v1344, 0
        %v1384 = vsel %vm948, %v1345, 0
        %v1387 = vsel %vm948, %v1346, 0
        %v1390 = vsel %vm948, %v1347, 0
        %v1393 = vsel %vm948, %v1348, 0
        %v1396 = vsel %vm948, %v1349, 0
        %v1399 = vsel %vm948, %v1350, 0
        %1401 = vmatprep.subr.mxu0 0.0
        %1402 = vmatpush1.msra.mxu0 %v1351
        %1403 = vmatprep.subr.mxu0 0.0
        %1404 = vmatpush1.msra.mxu0 %v1352
        %1405 = vmatprep.subr.mxu0 0.0
        %1406 = vmatpush1.msra.mxu0 0.0
        %1407 = vmatprep.subr.mxu0 0.0
        %1408 = vmatpush1.msra.mxu0 0.0
        %1409 = vmatprep.subr.mxu0 0.0
        %1410 = vmatpush1.msra.mxu0 0.0
        %1411 = vmatprep.subr.mxu0 0.0
        %1412 = vmatpush1.msra.mxu0 0.0
        %1413 = vmatprep.subr.mxu0 0.0
        %1414 = vmatpush1.msra.mxu0 0.0
        %1415 = vmatprep.subr.mxu0 0.0
        %1416 = vmatpush1.msra.mxu0 0.0
        %1417 = vmatprep.subr.mxu0 0.0
        %1418 = vmatpush1.msra.mxu0 0.0
        %1419 = vmatprep.subr.mxu0 0.0
        %1420 = vmatpush1.msra.mxu0 0.0
        %1421 = vmatprep.subr.mxu0 0.0
        %1422 = vmatpush1.msra.mxu0 0.0
        %1423 = vmatprep.subr.mxu0 0.0
        %1424 = vmatpush1.msra.mxu0 0.0
        %1425 = vmatprep.subr.mxu0 0.0
        %1426 = vmatpush1.msra.mxu0 0.0
        %1427 = vmatprep.subr.mxu0 0.0
        %1428 = vmatpush1.msra.mxu0 0.0
        %1429 = vmatprep.subr.mxu0 0.0
        %1430 = vmatpush1.msra.mxu0 0.0
        %1431 = vmatprep.subr.mxu0 0.0
        %1432 = vmatpush1.msra.mxu0 0.0
        %1433 = vmatprep.subr.mxu0 0.0
        %1434 = vmatpush1.msra.mxu0 0.0
        %1435 = vmatprep.subr.mxu0 0.0
        %1436 = vmatpush1.msra.mxu0 0.0
        %1437 = vmatprep.subr.mxu0 0.0
        %1438 = vmatpush1.msra.mxu0 0.0
        %1439 = vmatprep.subr.mxu0 0.0
        %1440 = vmatpush1.msra.mxu0 0.0
        %1441 = vmatprep.subr.mxu0 0.0
        %1442 = vmatpush1.msra.mxu0 0.0
        %1443 = vmatprep.subr.mxu0 0.0
        %1444 = vmatpush1.msra.mxu0 0.0
        %1445 = vmatprep.subr.mxu0 0.0
        %1446 = vmatpush1.msra.mxu0 0.0
        %1447 = vmatprep.subr.mxu0 0.0
        %1448 = vmatpush1.msra.mxu0 0.0
        %1449 = vmatprep.subr.mxu0 0.0
        %1450 = vmatpush1.msra.mxu0 0.0
        %1451 = vmatprep.subr.mxu0 0.0
        %1452 = vmatpush1.msra.mxu0 0.0
        %1453 = vmatprep.subr.mxu0 0.0
        %1454 = vmatpush1.msra.mxu0 0.0
        %1455 = vmatprep.subr.mxu0 0.0
        %1456 = vmatpush1.msra.mxu0 0.0
        %1457 = vmatprep.subr.mxu0 0.0
        %1458 = vmatpush1.msra.mxu0 0.0
        %1459 = vmatprep.subr.mxu0 0.0
        %1460 = vmatpush1.msra.mxu0 0.0
        %1461 = vmatprep.subr.mxu0 0.0
        %1462 = vmatpush1.msra.mxu0 0.0
        %1463 = vmatprep.subr.mxu0 0.0
        %1464 = vmatpush1.msra.mxu0 0.0
        %1465 = vmatprep.mubr.f32.mxu0 0.0
        %1466 = vmatmul.mubr.f32.gmra.mrb[0].mxu0 %v1354
        %v1467 = vpop.f32.mrb[0].mxu0
        %v1468 = vadd.f32 0.0, %v1467
        %v1469 = vpop.f32.mrb[0].mxu0
        %1470 = vmatprep.mubr.f32.mxu0 0.0
        %1471 = vmatmul.mubr.f32.gmra.mrb[0].mxu0 %v1357
        %v1472 = vpop.f32.mrb[0].mxu0
        %v1473 = vadd.f32 0.0, %v1472
        %v1474 = vpop.f32.mrb[0].mxu0
        %1475 = vmatprep.mubr.f32.mxu0 0.0
        %1476 = vmatmul.mubr.f32.gmra.mrb[0].mxu0 %v1360
        %v1477 = vpop.f32.mrb[0].mxu0
        %v1478 = vadd.f32 0.0, %v1477
        %v1479 = vpop.f32.mrb[0].mxu0
        %1480 = vmatprep.mubr.f32.mxu0 0.0
        %1481 = vmatmul.mubr.f32.gmra.mrb[0].mxu0 %v1363
        %v1482 = vpop.f32.mrb[0].mxu0
        %v1483 = vadd.f32 0.0, %v1482
        %v1484 = vpop.f32.mrb[0].mxu0
        %1485 = vmatprep.mubr.f32.mxu0 0.0
        %1486 = vmatmul.mubr.f32.gmra.mrb[0].mxu0 %v1366
        %v1487 = vpop.f32.mrb[0].mxu0
        %v1488 = vadd.f32 0.0, %v1487
        %v1489 = vpop.f32.mrb[0].mxu0
        %1490 = vmatprep.mubr.f32.mxu0 0.0
        %1491 = vmatmul.mubr.f32.gmra.mrb[0].mxu0 %v1369
        %v1492 = vpop.f32.mrb[0].mxu0
        %v1493 = vadd.f32 0.0, %v1492
        %v1494 = vpop.f32.mrb[0].mxu0
        %1495 = vmatprep.mubr.f32.mxu0 0.0
        %1496 = vmatmul.mubr.f32.gmra.mrb[0].mxu0 %v1372
        %v1497 = vpop.f32.mrb[0].mxu0
        %v1498 = vadd.f32 0.0, %v1497
        %v1499 = vpop.f32.mrb[0].mxu0
        %1500 = vmatprep.mubr.f32.mxu0 0.0
        %1501 = vmatmul.mubr.f32.gmra.mrb[0].mxu0 %v1375
        %v1502 = vpop.f32.mrb[0].mxu0
        %v1503 = vadd.f32 0.0, %v1502
        %v1504 = vpop.f32.mrb[0].mxu0
        %1505 = vmatprep.mubr.f32.mxu0 0.0
        %1506 = vmatmul.mubr.f32.gmra.mrb[0].mxu0 %v1378
        %v1507 = vpop.f32.mrb[0].mxu0
        %v1508 = vadd.f32 0.0, %v1507
        %v1509 = vpop.f32.mrb[0].mxu0
        %1510 = vmatprep.mubr.f32.mxu0 0.0
        %1511 = vmatmul.mubr.f32.gmra.mrb[0].mxu0 %v1381
        %v1512 = vpop.f32.mrb[0].mxu0
        %v1513 = vadd.f32 0.0, %v1512
        %v1514 = vpop.f32.mrb[0].mxu0
        %1515 = vmatprep.mubr.f32.mxu0 0.0
        %1516 = vmatmul.mubr.f32.gmra.mrb[0].mxu0 %v1384
        %v1517 = vpop.f32.mrb[0].mxu0
        %v1518 = vadd.f32 0.0, %v1517
        %v1519 = vpop.f32.mrb[0].mxu0
        %1520 = vmatprep.mubr.f32.mxu0 0.0
        %1521 = vmatmul.mubr.f32.gmra.mrb[0].mxu0 %v1387
        %v1522 = vpop.f32.mrb[0].mxu0
        %v1523 = vadd.f32 0.0, %v1522
        %v1524 = vpop.f32.mrb[0].mxu0
        %1525 = vmatprep.mubr.f32.mxu0 0.0
        %1526 = vmatmul.mubr.f32.gmra.mrb[0].mxu0 %v1390
        %v1527 = vpop.f32.mrb[0].mxu0
        %v1528 = vadd.f32 0.0, %v1527
        %v1529 = vpop.f32.mrb[0].mxu0
        %1530 = vmatprep.mubr.f32.mxu0 0.0
        %1531 = vmatmul.mubr.f32.gmra.mrb[0].mxu0 %v1393
        %v1532 = vpop.f32.mrb[0].mxu0
        %v1533 = vadd.f32 0.0, %v1532
        %v1534 = vpop.f32.mrb[0].mxu0
        %1535 = vmatprep.mubr.f32.mxu0 0.0
        %1536 = vmatmul.mubr.f32.gmra.mrb[0].mxu0 %v1396
        %v1537 = vpop.f32.mrb[0].mxu0
        %v1538 = vadd.f32 0.0, %v1537
        %v1539 = vpop.f32.mrb[0].mxu0
        %1540 = vmatprep.mubr.f32.mxu0 0.0
        %1541 = vmatmul.mubr.f32.gmra.mrb[0].mxu0 %v1399
        %v1542 = vpop.f32.mrb[0].mxu0
        %v1543 = vadd.f32 0.0, %v1542
        %v1544 = vpop.f32.mrb[0].mxu0
        %1545 = vdwg.mxu0
        %v1546 = vadd.f32 %v1257, %v1468
        %v1547 = vadd.f32 %v1262, %v1473
        %v1548 = vadd.f32 %v1267, %v1478
        %v1549 = vadd.f32 %v1272, %v1483
        %v1550 = vadd.f32 %v1277, %v1488
        %v1551 = vadd.f32 %v1282, %v1493
        %v1552 = vadd.f32 %v1287, %v1498
        %v1553 = vadd.f32 %v1292, %v1503
        %v1554 = vadd.f32 %v1297, %v1508
        %v1555 = vadd.f32 %v1302, %v1513
        %v1556 = vadd.f32 %v1307, %v1518
        %v1557 = vadd.f32 %v1312, %v1523
        %v1558 = vadd.f32 %v1317, %v1528
        %v1559 = vadd.f32 %v1322, %v1533
        %v1560 = vadd.f32 %v1327, %v1538
        %v1561 = vadd.f32 %v1332, %v1543
        %v1562 = vld [vmem:[%s7] sm:$0x1]
        %v1564 = vlaneseq
        %v1565 = vshrl.u32 %v1564, 7
        %v1566 = vsub.s32 0, %v1565
        %v1567 = vrot.slane %v1562, %v1566
        %v1569 = vadd.f32 %v1546, %v1567
        %v1570 = vadd.f32 %v1547, %v1567
        %v1571 = vadd.f32 %v1548, %v1567
        %v1572 = vadd.f32 %v1549, %v1567
        %v1573 = vadd.f32 %v1550, %v1567
        %v1574 = vadd.f32 %v1551, %v1567
        %v1575 = vadd.f32 %v1552, %v1567
        %v1576 = vadd.f32 %v1553, %v1567
        %v1577 = vadd.f32 %v1554, %v1567
        %v1578 = vadd.f32 %v1555, %v1567
        %v1579 = vadd.f32 %v1556, %v1567
        %v1580 = vadd.f32 %v1557, %v1567
        %v1581 = vadd.f32 %v1558, %v1567
        %v1582 = vadd.f32 %v1559, %v1567
        %v1583 = vadd.f32 %v1560, %v1567
        %v1584 = vadd.f32 %v1561, %v1567
        %v1585 = vmax.f32 %v1569, 0.0
        %v1586 = vmax.f32 %v1570, 0.0
        %v1587 = vmax.f32 %v1571, 0.0
        %v1588 = vmax.f32 %v1572, 0.0
        %v1589 = vmax.f32 %v1573, 0.0
        %v1590 = vmax.f32 %v1574, 0.0
        %v1591 = vmax.f32 %v1575, 0.0
        %v1592 = vmax.f32 %v1576, 0.0
        %v1593 = vmax.f32 %v1577, 0.0
        %v1594 = vmax.f32 %v1578, 0.0
        %v1595 = vmax.f32 %v1579, 0.0
        %v1596 = vmax.f32 %v1580, 0.0
        %v1597 = vmax.f32 %v1581, 0.0
        %v1598 = vmax.f32 %v1582, 0.0
        %v1599 = vmax.f32 %v1583, 0.0
        %v1600 = vmax.f32 %v1584, 0.0
        %v1601 = vmul.f32 %v1585, %v896
        %v1602 = vmul.f32 %v1586, %v897
        %v1603 = vmul.f32 %v1587, %v898
        %v1604 = vmul.f32 %v1588, %v899
        %v1605 = vmul.f32 %v1589, %v900
        %v1606 = vmul.f32 %v1590, %v901
        %v1607 = vmul.f32 %v1591, %v902
        %v1608 = vmul.f32 %v1592, %v903
        %v1609 = vmul.f32 %v1593, %v904
        %v1610 = vmul.f32 %v1594, %v905
        %v1611 = vmul.f32 %v1595, %v906
        %v1612 = vmul.f32 %v1596, %v907
        %v1613 = vmul.f32 %v1597, %v908
        %v1614 = vmul.f32 %v1598, %v909
        %v1615 = vmul.f32 %v1599, %v910
        %v1616 = vmul.f32 %v1600, %v911
        %v1617 = vsel %vm948, %v1601, 0.0
        %v1618 = vsel %vm948, %v1602, 0.0
        %v1619 = vadd.f32 %v1617, %v1618
        %v1620 = vsel %vm948, %v1603, 0.0
        %v1621 = vadd.f32 %v1619, %v1620
        %v1622 = vsel %vm948, %v1604, 0.0
        %v1623 = vadd.f32 %v1621, %v1622
        %v1624 = vsel %vm948, %v1605, 0.0
        %v1625 = vadd.f32 %v1623, %v1624
        %v1626 = vsel %vm948, %v1606, 0.0
        %v1627 = vadd.f32 %v1625, %v1626
        %v1628 = vsel %vm948, %v1607, 0.0
        %v1629 = vadd.f32 %v1627, %v1628
        %v1630 = vsel %vm948, %v1608, 0.0
        %v1631 = vadd.f32 %v1629, %v1630
        %v1632 = vsel %vm948, %v1609, 0.0
        %v1633 = vadd.f32 %v1631, %v1632
        %v1634 = vsel %vm948, %v1610, 0.0
        %v1635 = vadd.f32 %v1633, %v1634
        %v1636 = vsel %vm948, %v1611, 0.0
        %v1637 = vadd.f32 %v1635, %v1636
        %v1638 = vsel %vm948, %v1612, 0.0
        %v1639 = vadd.f32 %v1637, %v1638
        %v1640 = vsel %vm948, %v1613, 0.0
        %v1641 = vadd.f32 %v1639, %v1640
        %v1642 = vsel %vm948, %v1614, 0.0
        %v1643 = vadd.f32 %v1641, %v1642
        %v1644 = vsel %vm948, %v1615, 0.0
        %v1645 = vadd.f32 %v1643, %v1644
        %v1646 = vsel %vm948, %v1616, 0.0
        %v1647 = vadd.f32 %v1645, %v1646
        %v1648 = vrot.slane %v1647, 4
        %v1649 = vadd.f32 %v1647, %v1648
        %v1650 = vrot.slane %v1649, 2
        %v1651 = vadd.f32 %v1649, %v1650
        %v1652 = vrot.slane %v1651, 1
        %v1653 = vadd.f32 %v1651, %v1652
        %v1654 = vmul.f32 %v1653, 0.03125
        %v1655 = vmul.f32 %v1601, %v1601
        %v1656 = vmul.f32 %v1602, %v1602
        %v1657 = vmul.f32 %v1603, %v1603
        %v1658 = vmul.f32 %v1604, %v1604
        %v1659 = vmul.f32 %v1605, %v1605
        %v1660 = vmul.f32 %v1606, %v1606
        %v1661 = vmul.f32 %v1607, %v1607
        %v1662 = vmul.f32 %v1608, %v1608
        %v1663 = vmul.f32 %v1609, %v1609
        %v1664 = vmul.f32 %v1610, %v1610
        %v1665 = vmul.f32 %v1611, %v1611
        %v1666 = vmul.f32 %v1612, %v1612
        %v1667 = vmul.f32 %v1613, %v1613
        %v1668 = vmul.f32 %v1614, %v1614
        %v1669 = vmul.f32 %v1615, %v1615
        %v1670 = vmul.f32 %v1616, %v1616
        %v1671 = vsel %vm948, %v1655, 0.0
        %v1672 = vsel %vm948, %v1656, 0.0
        %v1673 = vadd.f32 %v1671, %v1672
        %v1674 = vsel %vm948, %v1657, 0.0
        %v1675 = vadd.f32 %v1673, %v1674
        %v1676 = vsel %vm948, %v1658, 0.0
        %v1677 = vadd.f32 %v1675, %v1676
        %v1678 = vsel %vm948, %v1659, 0.0
        %v1679 = vadd.f32 %v1677, %v1678
        %v1680 = vsel %vm948, %v1660, 0.0
        %v1681 = vadd.f32 %v1679, %v1680
        %v1682 = vsel %vm948, %v1661, 0.0
        %v1683 = vadd.f32 %v1681, %v1682
        %v1684 = vsel %vm948, %v1662, 0.0
        %v1685 = vadd.f32 %v1683, %v1684
        %v1686 = vsel %vm948, %v1663, 0.0
        %v1687 = vadd.f32 %v1685, %v1686
        %v1688 = vsel %vm948, %v1664, 0.0
        %v1689 = vadd.f32 %v1687, %v1688
        %v1690 = vsel %vm948, %v1665, 0.0
        %v1691 = vadd.f32 %v1689, %v1690
        %v1692 = vsel %vm948, %v1666, 0.0
        %v1693 = vadd.f32 %v1691, %v1692
        %v1694 = vsel %vm948, %v1667, 0.0
        %v1695 = vadd.f32 %v1693, %v1694
        %v1696 = vsel %vm948, %v1668, 0.0
        %v1697 = vadd.f32 %v1695, %v1696
        %v1698 = vsel %vm948, %v1669, 0.0
        %v1699 = vadd.f32 %v1697, %v1698
        %v1700 = vsel %vm948, %v1670, 0.0
        %v1701 = vadd.f32 %v1699, %v1700
        %v1702 = vrot.slane %v1701, 4
        %v1703 = vadd.f32 %v1701, %v1702
        %v1704 = vrot.slane %v1703, 2
        %v1705 = vadd.f32 %v1703, %v1704
        %v1706 = vrot.slane %v1705, 1
        %v1707 = vadd.f32 %v1705, %v1706
        %v1708 = vmul.f32 %v1707, 0.03125
        %v1709 = vmul.f32 %v1654, %v1654
        %v1710 = vsub.f32 %v1708, %v1709
        %v1711 = vmax.f32 %v1710, 0.0
        %v1712 = vsub.f32 %v1601, %v1654
        %v1713 = vsub.f32 %v1602, %v1654
        %v1714 = vsub.f32 %v1603, %v1654
        %v1715 = vsub.f32 %v1604, %v1654
        %v1716 = vsub.f32 %v1605, %v1654
        %v1717 = vsub.f32 %v1606, %v1654
        %v1718 = vsub.f32 %v1607, %v1654
        %v1719 = vsub.f32 %v1608, %v1654
        %v1720 = vsub.f32 %v1609, %v1654
        %v1721 = vsub.f32 %v1610, %v1654
        %v1722 = vsub.f32 %v1611, %v1654
        %v1723 = vsub.f32 %v1612, %v1654
        %v1724 = vsub.f32 %v1613, %v1654
        %v1725 = vsub.f32 %v1614, %v1654
        %v1726 = vsub.f32 %v1615, %v1654
        %v1727 = vsub.f32 %v1616, %v1654
        %v1728 = vadd.f32 %v1711, 1e-05
        %v1729 = vrsqrt.pop %v1728
        %v1730 = vmul.f32 %v1712, %v1729
        %v1731 = vmul.f32 %v1713, %v1729
        %v1732 = vmul.f32 %v1714, %v1729
        %v1733 = vmul.f32 %v1715, %v1729
        %v1734 = vmul.f32 %v1716, %v1729
        %v1735 = vmul.f32 %v1717, %v1729
        %v1736 = vmul.f32 %v1718, %v1729
        %v1737 = vmul.f32 %v1719, %v1729
        %v1738 = vmul.f32 %v1720, %v1729
        %v1739 = vmul.f32 %v1721, %v1729
        %v1740 = vmul.f32 %v1722, %v1729
        %v1741 = vmul.f32 %v1723, %v1729
        %v1742 = vmul.f32 %v1724, %v1729
        %v1743 = vmul.f32 %v1725, %v1729
        %v1744 = vmul.f32 %v1726, %v1729
        %v1745 = vmul.f32 %v1727, %v1729
        %v1746 = vld [vmem:[%s8] sm:$0xff]
        %v1747 = vld [vmem:[%s8 + $0x8] sm:$0xff]
        %v1748 = vld [vmem:[%s9] sm:$0x1]
        %v1750 = vlaneseq
        %v1751 = vshrl.u32 %v1750, 7
        %v1752 = vsub.s32 0, %v1751
        %v1753 = vrot.slane %v1748, %v1752
        %v1756 = vsel %vm948, %v1730, 0
        %v1759 = vsel %vm948, %v1731, 0
        %v1762 = vsel %vm948, %v1732, 0
        %v1765 = vsel %vm948, %v1733, 0
        %v1768 = vsel %vm948, %v1734, 0
        %v1771 = vsel %vm948, %v1735, 0
        %v1774 = vsel %vm948, %v1736, 0
        %v1777 = vsel %vm948, %v1737, 0
        %v1780 = vsel %vm948, %v1738, 0
        %v1783 = vsel %vm948, %v1739, 0
        %v1786 = vsel %vm948, %v1740, 0
        %v1789 = vsel %vm948, %v1741, 0
        %v1792 = vsel %vm948, %v1742, 0
        %v1795 = vsel %vm948, %v1743, 0
        %v1798 = vsel %vm948, %v1744, 0
        %v1801 = vsel %vm948, %v1745, 0
        %1803 = vmatprep.subr.mxu0 0.0
        %1804 = vmatpush1.msra.mxu0 %v1746
        %1805 = vmatprep.subr.mxu0 0.0
        %1806 = vmatpush1.msra.mxu0 %v1747
        %1807 = vmatprep.subr.mxu0 0.0
        %1808 = vmatpush1.msra.mxu0 0.0
        %1809 = vmatprep.subr.mxu0 0.0
        %1810 = vmatpush1.msra.mxu0 0.0
        %1811 = vmatprep.subr.mxu0 0.0
        %1812 = vmatpush1.msra.mxu0 0.0
        %1813 = vmatprep.subr.mxu0 0.0
        %1814 = vmatpush1.msra.mxu0 0.0
        %1815 = vmatprep.subr.mxu0 0.0
        %1816 = vmatpush1.msra.mxu0 0.0
        %1817 = vmatprep.subr.mxu0 0.0
        %1818 = vmatpush1.msra.mxu0 0.0
        %1819 = vmatprep.subr.mxu0 0.0
        %1820 = vmatpush1.msra.mxu0 0.0
        %1821 = vmatprep.subr.mxu0 0.0
        %1822 = vmatpush1.msra.mxu0 0.0
        %1823 = vmatprep.subr.mxu0 0.0
        %1824 = vmatpush1.msra.mxu0 0.0
        %1825 = vmatprep.subr.mxu0 0.0
        %1826 = vmatpush1.msra.mxu0 0.0
        %1827 = vmatprep.subr.mxu0 0.0
        %1828 = vmatpush1.msra.mxu0 0.0
        %1829 = vmatprep.subr.mxu0 0.0
        %1830 = vmatpush1.msra.mxu0 0.0
        %1831 = vmatprep.subr.mxu0 0.0
        %1832 = vmatpush1.msra.mxu0 0.0
        %1833 = vmatprep.subr.mxu0 0.0
        %1834 = vmatpush1.msra.mxu0 0.0
        %1835 = vmatprep.subr.mxu0 0.0
        %1836 = vmatpush1.msra.mxu0 0.0
        %1837 = vmatprep.subr.mxu0 0.0
        %1838 = vmatpush1.msra.mxu0 0.0
        %1839 = vmatprep.subr.mxu0 0.0
        %1840 = vmatpush1.msra.mxu0 0.0
        %1841 = vmatprep.subr.mxu0 0.0
        %1842 = vmatpush1.msra.mxu0 0.0
        %1843 = vmatprep.subr.mxu0 0.0
        %1844 = vmatpush1.msra.mxu0 0.0
        %1845 = vmatprep.subr.mxu0 0.0
        %1846 = vmatpush1.msra.mxu0 0.0
        %1847 = vmatprep.subr.mxu0 0.0
        %1848 = vmatpush1.msra.mxu0 0.0
        %1849 = vmatprep.subr.mxu0 0.0
        %1850 = vmatpush1.msra.mxu0 0.0
        %1851 = vmatprep.subr.mxu0 0.0
        %1852 = vmatpush1.msra.mxu0 0.0
        %1853 = vmatprep.subr.mxu0 0.0
        %1854 = vmatpush1.msra.mxu0 0.0
        %1855 = vmatprep.subr.mxu0 0.0
        %1856 = vmatpush1.msra.mxu0 0.0
        %1857 = vmatprep.subr.mxu0 0.0
        %1858 = vmatpush1.msra.mxu0 0.0
        %1859 = vmatprep.subr.mxu0 0.0
        %1860 = vmatpush1.msra.mxu0 0.0
        %1861 = vmatprep.subr.mxu0 0.0
        %1862 = vmatpush1.msra.mxu0 0.0
        %1863 = vmatprep.subr.mxu0 0.0
        %1864 = vmatpush1.msra.mxu0 0.0
        %1865 = vmatprep.subr.mxu0 0.0
        %1866 = vmatpush1.msra.mxu0 0.0
        %1867 = vmatprep.mubr.f32.mxu0 0.0
        %1868 = vmatmul.mubr.f32.gmra.mrb[0].mxu0 %v1756
        %v1869 = vpop.f32.mrb[0].mxu0
        %v1870 = vadd.f32 %v1753, %v1869
        %v1871 = vpop.f32.mrb[0].mxu0
        %1872 = vmatprep.mubr.f32.mxu0 0.0
        %1873 = vmatmul.mubr.f32.gmra.mrb[0].mxu0 %v1759
        %v1874 = vpop.f32.mrb[0].mxu0
        %v1875 = vadd.f32 %v1753, %v1874
        %v1876 = vpop.f32.mrb[0].mxu0
        %1877 = vmatprep.mubr.f32.mxu0 0.0
        %1878 = vmatmul.mubr.f32.gmra.mrb[0].mxu0 %v1762
        %v1879 = vpop.f32.mrb[0].mxu0
        %v1880 = vadd.f32 %v1753, %v1879
        %v1881 = vpop.f32.mrb[0].mxu0
        %1882 = vmatprep.mubr.f32.mxu0 0.0
        %1883 = vmatmul.mubr.f32.gmra.mrb[0].mxu0 %v1765
        %v1884 = vpop.f32.mrb[0].mxu0
        %v1885 = vadd.f32 %v1753, %v1884
        %v1886 = vpop.f32.mrb[0].mxu0
        %1887 = vmatprep.mubr.f32.mxu0 0.0
        %1888 = vmatmul.mubr.f32.gmra.mrb[0].mxu0 %v1768
        %v1889 = vpop.f32.mrb[0].mxu0
        %v1890 = vadd.f32 %v1753, %v1889
        %v1891 = vpop.f32.mrb[0].mxu0
        %1892 = vmatprep.mubr.f32.mxu0 0.0
        %1893 = vmatmul.mubr.f32.gmra.mrb[0].mxu0 %v1771
        %v1894 = vpop.f32.mrb[0].mxu0
        %v1895 = vadd.f32 %v1753, %v1894
        %v1896 = vpop.f32.mrb[0].mxu0
        %1897 = vmatprep.mubr.f32.mxu0 0.0
        %1898 = vmatmul.mubr.f32.gmra.mrb[0].mxu0 %v1774
        %v1899 = vpop.f32.mrb[0].mxu0
        %v1900 = vadd.f32 %v1753, %v1899
        %v1901 = vpop.f32.mrb[0].mxu0
        %1902 = vmatprep.mubr.f32.mxu0 0.0
        %1903 = vmatmul.mubr.f32.gmra.mrb[0].mxu0 %v1777
        %v1904 = vpop.f32.mrb[0].mxu0
        %v1905 = vadd.f32 %v1753, %v1904
        %v1906 = vpop.f32.mrb[0].mxu0
        %1907 = vmatprep.mubr.f32.mxu0 0.0
        %1908 = vmatmul.mubr.f32.gmra.mrb[0].mxu0 %v1780
        %v1909 = vpop.f32.mrb[0].mxu0
        %v1910 = vadd.f32 %v1753, %v1909
        %v1911 = vpop.f32.mrb[0].mxu0
        %1912 = vmatprep.mubr.f32.mxu0 0.0
        %1913 = vmatmul.mubr.f32.gmra.mrb[0].mxu0 %v1783
        %v1914 = vpop.f32.mrb[0].mxu0
        %v1915 = vadd.f32 %v1753, %v1914
        %v1916 = vpop.f32.mrb[0].mxu0
        %1917 = vmatprep.mubr.f32.mxu0 0.0
        %1918 = vmatmul.mubr.f32.gmra.mrb[0].mxu0 %v1786
        %v1919 = vpop.f32.mrb[0].mxu0
        %v1920 = vadd.f32 %v1753, %v1919
        %v1921 = vpop.f32.mrb[0].mxu0
        %1922 = vmatprep.mubr.f32.mxu0 0.0
        %1923 = vmatmul.mubr.f32.gmra.mrb[0].mxu0 %v1789
        %v1924 = vpop.f32.mrb[0].mxu0
        %v1925 = vadd.f32 %v1753, %v1924
        %v1926 = vpop.f32.mrb[0].mxu0
        %1927 = vmatprep.mubr.f32.mxu0 0.0
        %1928 = vmatmul.mubr.f32.gmra.mrb[0].mxu0 %v1792
        %v1929 = vpop.f32.mrb[0].mxu0
        %v1930 = vadd.f32 %v1753, %v1929
        %v1931 = vpop.f32.mrb[0].mxu0
        %1932 = vmatprep.mubr.f32.mxu0 0.0
        %1933 = vmatmul.mubr.f32.gmra.mrb[0].mxu0 %v1795
        %v1934 = vpop.f32.mrb[0].mxu0
        %v1935 = vadd.f32 %v1753, %v1934
        %v1936 = vpop.f32.mrb[0].mxu0
        %1937 = vmatprep.mubr.f32.mxu0 0.0
        %1938 = vmatmul.mubr.f32.gmra.mrb[0].mxu0 %v1798
        %v1939 = vpop.f32.mrb[0].mxu0
        %v1940 = vadd.f32 %v1753, %v1939
        %v1941 = vpop.f32.mrb[0].mxu0
        %1942 = vmatprep.mubr.f32.mxu0 0.0
        %1943 = vmatmul.mubr.f32.gmra.mrb[0].mxu0 %v1801
        %v1944 = vpop.f32.mrb[0].mxu0
        %v1945 = vadd.f32 %v1753, %v1944
        %v1946 = vpop.f32.mrb[0].mxu0
        %1947 = vdwg.mxu0
        %v1948 = vxor.u32 %v1870, 2147483648
        %v1949 = vxor.u32 %v1875, 2147483648
        %v1950 = vxor.u32 %v1880, 2147483648
        %v1951 = vxor.u32 %v1885, 2147483648
        %v1952 = vxor.u32 %v1890, 2147483648
        %v1953 = vxor.u32 %v1895, 2147483648
        %v1954 = vxor.u32 %v1900, 2147483648
        %v1955 = vxor.u32 %v1905, 2147483648
        %v1956 = vxor.u32 %v1910, 2147483648
        %v1957 = vxor.u32 %v1915, 2147483648
        %v1958 = vxor.u32 %v1920, 2147483648
        %v1959 = vxor.u32 %v1925, 2147483648
        %v1960 = vxor.u32 %v1930, 2147483648
        %v1961 = vxor.u32 %v1935, 2147483648
        %v1962 = vxor.u32 %v1940, 2147483648
        %v1963 = vxor.u32 %v1945, 2147483648
        %v1964 = vmul.f32 %v1948, 1.442695
        %v1965 = vpow.pop %v1964
        %v1966 = vmul.f32 %v1949, 1.442695
        %v1967 = vpow.pop %v1966
        %v1968 = vmul.f32 %v1950, 1.442695
        %v1969 = vpow.pop %v1968
        %v1970 = vmul.f32 %v1951, 1.442695
        %v1971 = vpow.pop %v1970
        %v1972 = vmul.f32 %v1952, 1.442695
        %v1973 = vpow.pop %v1972
        %v1974 = vmul.f32 %v1953, 1.442695
        %v1975 = vpow.pop %v1974
        %v1976 = vmul.f32 %v1954, 1.442695
        %v1977 = vpow.pop %v1976
        %v1978 = vmul.f32 %v1955, 1.442695
        %v1979 = vpow.pop %v1978
        %v1980 = vmul.f32 %v1956, 1.442695
        %v1981 = vpow.pop %v1980
        %v1982 = vmul.f32 %v1957, 1.442695
        %v1983 = vpow.pop %v1982
        %v1984 = vmul.f32 %v1958, 1.442695
        %v1985 = vpow.pop %v1984
        %v1986 = vmul.f32 %v1959, 1.442695
        %v1987 = vpow.pop %v1986
        %v1988 = vmul.f32 %v1960, 1.442695
        %v1989 = vpow.pop %v1988
        %v1990 = vmul.f32 %v1961, 1.442695
        %v1991 = vpow.pop %v1990
        %v1992 = vmul.f32 %v1962, 1.442695
        %v1993 = vpow.pop %v1992
        %v1994 = vmul.f32 %v1963, 1.442695
        %v1995 = vpow.pop %v1994
        %v1996 = vadd.f32 %v1965, 1.0
        %v1997 = vadd.f32 %v1967, 1.0
        %v1998 = vadd.f32 %v1969, 1.0
        %v1999 = vadd.f32 %v1971, 1.0
        %v2000 = vadd.f32 %v1973, 1.0
        %v2001 = vadd.f32 %v1975, 1.0
        %v2002 = vadd.f32 %v1977, 1.0
        %v2003 = vadd.f32 %v1979, 1.0
        %v2004 = vadd.f32 %v1981, 1.0
        %v2005 = vadd.f32 %v1983, 1.0
        %v2006 = vadd.f32 %v1985, 1.0
        %v2007 = vadd.f32 %v1987, 1.0
        %v2008 = vadd.f32 %v1989, 1.0
        %v2009 = vadd.f32 %v1991, 1.0
        %v2010 = vadd.f32 %v1993, 1.0
        %v2011 = vadd.f32 %v1995, 1.0
        %v2012 = vrcp.pop %v1996
        %v2013 = vmul.f32 1.0, %v2012
        %v2014 = vrcp.pop %v1997
        %v2015 = vmul.f32 1.0, %v2014
        %v2016 = vrcp.pop %v1998
        %v2017 = vmul.f32 1.0, %v2016
        %v2018 = vrcp.pop %v1999
        %v2019 = vmul.f32 1.0, %v2018
        %v2020 = vrcp.pop %v2000
        %v2021 = vmul.f32 1.0, %v2020
        %v2022 = vrcp.pop %v2001
        %v2023 = vmul.f32 1.0, %v2022
        %v2024 = vrcp.pop %v2002
        %v2025 = vmul.f32 1.0, %v2024
        %v2026 = vrcp.pop %v2003
        %v2027 = vmul.f32 1.0, %v2026
        %v2028 = vrcp.pop %v2004
        %v2029 = vmul.f32 1.0, %v2028
        %v2030 = vrcp.pop %v2005
        %v2031 = vmul.f32 1.0, %v2030
        %v2032 = vrcp.pop %v2006
        %v2033 = vmul.f32 1.0, %v2032
        %v2034 = vrcp.pop %v2007
        %v2035 = vmul.f32 1.0, %v2034
        %v2036 = vrcp.pop %v2008
        %v2037 = vmul.f32 1.0, %v2036
        %v2038 = vrcp.pop %v2009
        %v2039 = vmul.f32 1.0, %v2038
        %v2040 = vrcp.pop %v2010
        %v2041 = vmul.f32 1.0, %v2040
        %v2042 = vrcp.pop %v2011
        %v2043 = vmul.f32 1.0, %v2042
        %v2044 = vld [vmem:[%s10] sm:$0xff]
        %v2045 = vld [vmem:[%s10 + $0x8] sm:$0xff]
        %v2046 = vld [vmem:[%s11] sm:$0x1]
        %v2048 = vlaneseq
        %v2049 = vshrl.u32 %v2048, 7
        %v2050 = vsub.s32 0, %v2049
        %v2051 = vrot.slane %v2046, %v2050
        %2053 = vmatprep.subr.mxu0 0.0
        %2054 = vmatpush1.msra.mxu0 %v2044
        %2055 = vmatprep.subr.mxu0 0.0
        %2056 = vmatpush1.msra.mxu0 %v2045
        %2057 = vmatprep.subr.mxu0 0.0
        %2058 = vmatpush1.msra.mxu0 0.0
        %2059 = vmatprep.subr.mxu0 0.0
        %2060 = vmatpush1.msra.mxu0 0.0
        %2061 = vmatprep.subr.mxu0 0.0
        %2062 = vmatpush1.msra.mxu0 0.0
        %2063 = vmatprep.subr.mxu0 0.0
        %2064 = vmatpush1.msra.mxu0 0.0
        %2065 = vmatprep.subr.mxu0 0.0
        %2066 = vmatpush1.msra.mxu0 0.0
        %2067 = vmatprep.subr.mxu0 0.0
        %2068 = vmatpush1.msra.mxu0 0.0
        %2069 = vmatprep.subr.mxu0 0.0
        %2070 = vmatpush1.msra.mxu0 0.0
        %2071 = vmatprep.subr.mxu0 0.0
        %2072 = vmatpush1.msra.mxu0 0.0
        %2073 = vmatprep.subr.mxu0 0.0
        %2074 = vmatpush1.msra.mxu0 0.0
        %2075 = vmatprep.subr.mxu0 0.0
        %2076 = vmatpush1.msra.mxu0 0.0
        %2077 = vmatprep.subr.mxu0 0.0
        %2078 = vmatpush1.msra.mxu0 0.0
        %2079 = vmatprep.subr.mxu0 0.0
        %2080 = vmatpush1.msra.mxu0 0.0
        %2081 = vmatprep.subr.mxu0 0.0
        %2082 = vmatpush1.msra.mxu0 0.0
        %2083 = vmatprep.subr.mxu0 0.0
        %2084 = vmatpush1.msra.mxu0 0.0
        %2085 = vmatprep.subr.mxu0 0.0
        %2086 = vmatpush1.msra.mxu0 0.0
        %2087 = vmatprep.subr.mxu0 0.0
        %2088 = vmatpush1.msra.mxu0 0.0
        %2089 = vmatprep.subr.mxu0 0.0
        %2090 = vmatpush1.msra.mxu0 0.0
        %2091 = vmatprep.subr.mxu0 0.0
        %2092 = vmatpush1.msra.mxu0 0.0
        %2093 = vmatprep.subr.mxu0 0.0
        %2094 = vmatpush1.msra.mxu0 0.0
        %2095 = vmatprep.subr.mxu0 0.0
        %2096 = vmatpush1.msra.mxu0 0.0
        %2097 = vmatprep.subr.mxu0 0.0
        %2098 = vmatpush1.msra.mxu0 0.0
        %2099 = vmatprep.subr.mxu0 0.0
        %2100 = vmatpush1.msra.mxu0 0.0
        %2101 = vmatprep.subr.mxu0 0.0
        %2102 = vmatpush1.msra.mxu0 0.0
        %2103 = vmatprep.subr.mxu0 0.0
        %2104 = vmatpush1.msra.mxu0 0.0
        %2105 = vmatprep.subr.mxu0 0.0
        %2106 = vmatpush1.msra.mxu0 0.0
        %2107 = vmatprep.subr.mxu0 0.0
        %2108 = vmatpush1.msra.mxu0 0.0
        %2109 = vmatprep.subr.mxu0 0.0
        %2110 = vmatpush1.msra.mxu0 0.0
        %2111 = vmatprep.subr.mxu0 0.0
        %2112 = vmatpush1.msra.mxu0 0.0
        %2113 = vmatprep.subr.mxu0 0.0
        %2114 = vmatpush1.msra.mxu0 0.0
        %2115 = vmatprep.subr.mxu0 0.0
        %2116 = vmatpush1.msra.mxu0 0.0
        %2117 = vmatprep.mubr.f32.mxu0 0.0
        %2118 = vmatmul.mubr.f32.gmra.mrb[0].mxu0 %v1756
        %v2119 = vpop.f32.mrb[0].mxu0
        %v2120 = vadd.f32 %v2051, %v2119
        %v2121 = vpop.f32.mrb[0].mxu0
        %2122 = vmatprep.mubr.f32.mxu0 0.0
        %2123 = vmatmul.mubr.f32.gmra.mrb[0].mxu0 %v1759
        %v2124 = vpop.f32.mrb[0].mxu0
        %v2125 = vadd.f32 %v2051, %v2124
        %v2126 = vpop.f32.mrb[0].mxu0
        %2127 = vmatprep.mubr.f32.mxu0 0.0
        %2128 = vmatmul.mubr.f32.gmra.mrb[0].mxu0 %v1762
        %v2129 = vpop.f32.mrb[0].mxu0
        %v2130 = vadd.f32 %v2051, %v2129
        %v2131 = vpop.f32.mrb[0].mxu0
        %2132 = vmatprep.mubr.f32.mxu0 0.0
        %2133 = vmatmul.mubr.f32.gmra.mrb[0].mxu0 %v1765
        %v2134 = vpop.f32.mrb[0].mxu0
        %v2135 = vadd.f32 %v2051, %v2134
        %v2136 = vpop.f32.mrb[0].mxu0
        %2137 = vmatprep.mubr.f32.mxu0 0.0
        %2138 = vmatmul.mubr.f32.gmra.mrb[0].mxu0 %v1768
        %v2139 = vpop.f32.mrb[0].mxu0
        %v2140 = vadd.f32 %v2051, %v2139
        %v2141 = vpop.f32.mrb[0].mxu0
        %2142 = vmatprep.mubr.f32.mxu0 0.0
        %2143 = vmatmul.mubr.f32.gmra.mrb[0].mxu0 %v1771
        %v2144 = vpop.f32.mrb[0].mxu0
        %v2145 = vadd.f32 %v2051, %v2144
        %v2146 = vpop.f32.mrb[0].mxu0
        %2147 = vmatprep.mubr.f32.mxu0 0.0
        %2148 = vmatmul.mubr.f32.gmra.mrb[0].mxu0 %v1774
        %v2149 = vpop.f32.mrb[0].mxu0
        %v2150 = vadd.f32 %v2051, %v2149
        %v2151 = vpop.f32.mrb[0].mxu0
        %2152 = vmatprep.mubr.f32.mxu0 0.0
        %2153 = vmatmul.mubr.f32.gmra.mrb[0].mxu0 %v1777
        %v2154 = vpop.f32.mrb[0].mxu0
        %v2155 = vadd.f32 %v2051, %v2154
        %v2156 = vpop.f32.mrb[0].mxu0
        %2157 = vmatprep.mubr.f32.mxu0 0.0
        %2158 = vmatmul.mubr.f32.gmra.mrb[0].mxu0 %v1780
        %v2159 = vpop.f32.mrb[0].mxu0
        %v2160 = vadd.f32 %v2051, %v2159
        %v2161 = vpop.f32.mrb[0].mxu0
        %2162 = vmatprep.mubr.f32.mxu0 0.0
        %2163 = vmatmul.mubr.f32.gmra.mrb[0].mxu0 %v1783
        %v2164 = vpop.f32.mrb[0].mxu0
        %v2165 = vadd.f32 %v2051, %v2164
        %v2166 = vpop.f32.mrb[0].mxu0
        %2167 = vmatprep.mubr.f32.mxu0 0.0
        %2168 = vmatmul.mubr.f32.gmra.mrb[0].mxu0 %v1786
        %v2169 = vpop.f32.mrb[0].mxu0
        %v2170 = vadd.f32 %v2051, %v2169
        %v2171 = vpop.f32.mrb[0].mxu0
        %2172 = vmatprep.mubr.f32.mxu0 0.0
        %2173 = vmatmul.mubr.f32.gmra.mrb[0].mxu0 %v1789
        %v2174 = vpop.f32.mrb[0].mxu0
        %v2175 = vadd.f32 %v2051, %v2174
        %v2176 = vpop.f32.mrb[0].mxu0
        %2177 = vmatprep.mubr.f32.mxu0 0.0
        %2178 = vmatmul.mubr.f32.gmra.mrb[0].mxu0 %v1792
        %v2179 = vpop.f32.mrb[0].mxu0
        %v2180 = vadd.f32 %v2051, %v2179
        %v2181 = vpop.f32.mrb[0].mxu0
        %2182 = vmatprep.mubr.f32.mxu0 0.0
        %2183 = vmatmul.mubr.f32.gmra.mrb[0].mxu0 %v1795
        %v2184 = vpop.f32.mrb[0].mxu0
        %v2185 = vadd.f32 %v2051, %v2184
        %v2186 = vpop.f32.mrb[0].mxu0
        %2187 = vmatprep.mubr.f32.mxu0 0.0
        %2188 = vmatmul.mubr.f32.gmra.mrb[0].mxu0 %v1798
        %v2189 = vpop.f32.mrb[0].mxu0
        %v2190 = vadd.f32 %v2051, %v2189
        %v2191 = vpop.f32.mrb[0].mxu0
        %2192 = vmatprep.mubr.f32.mxu0 0.0
        %2193 = vmatmul.mubr.f32.gmra.mrb[0].mxu0 %v1801
        %v2194 = vpop.f32.mrb[0].mxu0
        %v2195 = vadd.f32 %v2051, %v2194
        %v2196 = vpop.f32.mrb[0].mxu0
        %2197 = vdwg.mxu0
        %v2198 = vxor.u32 %v2120, 2147483648
        %v2199 = vxor.u32 %v2125, 2147483648
        %v2200 = vxor.u32 %v2130, 2147483648
        %v2201 = vxor.u32 %v2135, 2147483648
        %v2202 = vxor.u32 %v2140, 2147483648
        %v2203 = vxor.u32 %v2145, 2147483648
        %v2204 = vxor.u32 %v2150, 2147483648
        %v2205 = vxor.u32 %v2155, 2147483648
        %v2206 = vxor.u32 %v2160, 2147483648
        %v2207 = vxor.u32 %v2165, 2147483648
        %v2208 = vxor.u32 %v2170, 2147483648
        %v2209 = vxor.u32 %v2175, 2147483648
        %v2210 = vxor.u32 %v2180, 2147483648
        %v2211 = vxor.u32 %v2185, 2147483648
        %v2212 = vxor.u32 %v2190, 2147483648
        %v2213 = vxor.u32 %v2195, 2147483648
        %v2214 = vmul.f32 %v2198, 1.442695
        %v2215 = vpow.pop %v2214
        %v2216 = vmul.f32 %v2199, 1.442695
        %v2217 = vpow.pop %v2216
        %v2218 = vmul.f32 %v2200, 1.442695
        %v2219 = vpow.pop %v2218
        %v2220 = vmul.f32 %v2201, 1.442695
        %v2221 = vpow.pop %v2220
        %v2222 = vmul.f32 %v2202, 1.442695
        %v2223 = vpow.pop %v2222
        %v2224 = vmul.f32 %v2203, 1.442695
        %v2225 = vpow.pop %v2224
        %v2226 = vmul.f32 %v2204, 1.442695
        %v2227 = vpow.pop %v2226
        %v2228 = vmul.f32 %v2205, 1.442695
        %v2229 = vpow.pop %v2228
        %v2230 = vmul.f32 %v2206, 1.442695
        %v2231 = vpow.pop %v2230
        %v2232 = vmul.f32 %v2207, 1.442695
        %v2233 = vpow.pop %v2232
        %v2234 = vmul.f32 %v2208, 1.442695
        %v2235 = vpow.pop %v2234
        %v2236 = vmul.f32 %v2209, 1.442695
        %v2237 = vpow.pop %v2236
        %v2238 = vmul.f32 %v2210, 1.442695
        %v2239 = vpow.pop %v2238
        %v2240 = vmul.f32 %v2211, 1.442695
        %v2241 = vpow.pop %v2240
        %v2242 = vmul.f32 %v2212, 1.442695
        %v2243 = vpow.pop %v2242
        %v2244 = vmul.f32 %v2213, 1.442695
        %v2245 = vpow.pop %v2244
        %v2246 = vadd.f32 %v2215, 1.0
        %v2247 = vadd.f32 %v2217, 1.0
        %v2248 = vadd.f32 %v2219, 1.0
        %v2249 = vadd.f32 %v2221, 1.0
        %v2250 = vadd.f32 %v2223, 1.0
        %v2251 = vadd.f32 %v2225, 1.0
        %v2252 = vadd.f32 %v2227, 1.0
        %v2253 = vadd.f32 %v2229, 1.0
        %v2254 = vadd.f32 %v2231, 1.0
        %v2255 = vadd.f32 %v2233, 1.0
        %v2256 = vadd.f32 %v2235, 1.0
        %v2257 = vadd.f32 %v2237, 1.0
        %v2258 = vadd.f32 %v2239, 1.0
        %v2259 = vadd.f32 %v2241, 1.0
        %v2260 = vadd.f32 %v2243, 1.0
        %v2261 = vadd.f32 %v2245, 1.0
        %v2262 = vrcp.pop %v2246
        %v2263 = vmul.f32 1.0, %v2262
        %v2264 = vrcp.pop %v2247
        %v2265 = vmul.f32 1.0, %v2264
        %v2266 = vrcp.pop %v2248
        %v2267 = vmul.f32 1.0, %v2266
        %v2268 = vrcp.pop %v2249
        %v2269 = vmul.f32 1.0, %v2268
        %v2270 = vrcp.pop %v2250
        %v2271 = vmul.f32 1.0, %v2270
        %v2272 = vrcp.pop %v2251
        %v2273 = vmul.f32 1.0, %v2272
        %v2274 = vrcp.pop %v2252
        %v2275 = vmul.f32 1.0, %v2274
        %v2276 = vrcp.pop %v2253
        %v2277 = vmul.f32 1.0, %v2276
        %v2278 = vrcp.pop %v2254
        %v2279 = vmul.f32 1.0, %v2278
        %v2280 = vrcp.pop %v2255
        %v2281 = vmul.f32 1.0, %v2280
        %v2282 = vrcp.pop %v2256
        %v2283 = vmul.f32 1.0, %v2282
        %v2284 = vrcp.pop %v2257
        %v2285 = vmul.f32 1.0, %v2284
        %v2286 = vrcp.pop %v2258
        %v2287 = vmul.f32 1.0, %v2286
        %v2288 = vrcp.pop %v2259
        %v2289 = vmul.f32 1.0, %v2288
        %v2290 = vrcp.pop %v2260
        %v2291 = vmul.f32 1.0, %v2290
        %v2292 = vrcp.pop %v2261
        %v2293 = vmul.f32 1.0, %v2292
        %v2294 = vld [vmem:[%s12] sm:$0xff]
        %v2295 = vld [vmem:[%s12 + $0x8] sm:$0xff]
        %v2296 = vld [vmem:[%s13] sm:$0x1]
        %v2298 = vlaneseq
        %v2299 = vshrl.u32 %v2298, 7
        %v2300 = vsub.s32 0, %v2299
        %v2301 = vrot.slane %v2296, %v2300
        %2303 = vmatprep.subr.mxu0 0.0
        %2304 = vmatpush1.msra.mxu0 %v2294
        %2305 = vmatprep.subr.mxu0 0.0
        %2306 = vmatpush1.msra.mxu0 %v2295
        %2307 = vmatprep.subr.mxu0 0.0
        %2308 = vmatpush1.msra.mxu0 0.0
        %2309 = vmatprep.subr.mxu0 0.0
        %2310 = vmatpush1.msra.mxu0 0.0
        %2311 = vmatprep.subr.mxu0 0.0
        %2312 = vmatpush1.msra.mxu0 0.0
        %2313 = vmatprep.subr.mxu0 0.0
        %2314 = vmatpush1.msra.mxu0 0.0
        %2315 = vmatprep.subr.mxu0 0.0
        %2316 = vmatpush1.msra.mxu0 0.0
        %2317 = vmatprep.subr.mxu0 0.0
        %2318 = vmatpush1.msra.mxu0 0.0
        %2319 = vmatprep.subr.mxu0 0.0
        %2320 = vmatpush1.msra.mxu0 0.0
        %2321 = vmatprep.subr.mxu0 0.0
        %2322 = vmatpush1.msra.mxu0 0.0
        %2323 = vmatprep.subr.mxu0 0.0
        %2324 = vmatpush1.msra.mxu0 0.0
        %2325 = vmatprep.subr.mxu0 0.0
        %2326 = vmatpush1.msra.mxu0 0.0
        %2327 = vmatprep.subr.mxu0 0.0
        %2328 = vmatpush1.msra.mxu0 0.0
        %2329 = vmatprep.subr.mxu0 0.0
        %2330 = vmatpush1.msra.mxu0 0.0
        %2331 = vmatprep.subr.mxu0 0.0
        %2332 = vmatpush1.msra.mxu0 0.0
        %2333 = vmatprep.subr.mxu0 0.0
        %2334 = vmatpush1.msra.mxu0 0.0
        %2335 = vmatprep.subr.mxu0 0.0
        %2336 = vmatpush1.msra.mxu0 0.0
        %2337 = vmatprep.subr.mxu0 0.0
        %2338 = vmatpush1.msra.mxu0 0.0
        %2339 = vmatprep.subr.mxu0 0.0
        %2340 = vmatpush1.msra.mxu0 0.0
        %2341 = vmatprep.subr.mxu0 0.0
        %2342 = vmatpush1.msra.mxu0 0.0
        %2343 = vmatprep.subr.mxu0 0.0
        %2344 = vmatpush1.msra.mxu0 0.0
        %2345 = vmatprep.subr.mxu0 0.0
        %2346 = vmatpush1.msra.mxu0 0.0
        %2347 = vmatprep.subr.mxu0 0.0
        %2348 = vmatpush1.msra.mxu0 0.0
        %2349 = vmatprep.subr.mxu0 0.0
        %2350 = vmatpush1.msra.mxu0 0.0
        %2351 = vmatprep.subr.mxu0 0.0
        %2352 = vmatpush1.msra.mxu0 0.0
        %2353 = vmatprep.subr.mxu0 0.0
        %2354 = vmatpush1.msra.mxu0 0.0
        %2355 = vmatprep.subr.mxu0 0.0
        %2356 = vmatpush1.msra.mxu0 0.0
        %2357 = vmatprep.subr.mxu0 0.0
        %2358 = vmatpush1.msra.mxu0 0.0
        %2359 = vmatprep.subr.mxu0 0.0
        %2360 = vmatpush1.msra.mxu0 0.0
        %2361 = vmatprep.subr.mxu0 0.0
        %2362 = vmatpush1.msra.mxu0 0.0
        %2363 = vmatprep.subr.mxu0 0.0
        %2364 = vmatpush1.msra.mxu0 0.0
        %2365 = vmatprep.subr.mxu0 0.0
        %2366 = vmatpush1.msra.mxu0 0.0
        %2367 = vmatprep.mubr.f32.mxu0 0.0
        %2368 = vmatmul.mubr.f32.gmra.mrb[0].mxu0 %v1756
        %v2369 = vpop.f32.mrb[0].mxu0
        %v2370 = vadd.f32 %v2301, %v2369
        %v2371 = vpop.f32.mrb[0].mxu0
        %2372 = vmatprep.mubr.f32.mxu0 0.0
        %2373 = vmatmul.mubr.f32.gmra.mrb[0].mxu0 %v1759
        %v2374 = vpop.f32.mrb[0].mxu0
        %v2375 = vadd.f32 %v2301, %v2374
        %v2376 = vpop.f32.mrb[0].mxu0
        %2377 = vmatprep.mubr.f32.mxu0 0.0
        %2378 = vmatmul.mubr.f32.gmra.mrb[0].mxu0 %v1762
        %v2379 = vpop.f32.mrb[0].mxu0
        %v2380 = vadd.f32 %v2301, %v2379
        %v2381 = vpop.f32.mrb[0].mxu0
        %2382 = vmatprep.mubr.f32.mxu0 0.0
        %2383 = vmatmul.mubr.f32.gmra.mrb[0].mxu0 %v1765
        %v2384 = vpop.f32.mrb[0].mxu0
        %v2385 = vadd.f32 %v2301, %v2384
        %v2386 = vpop.f32.mrb[0].mxu0
        %2387 = vmatprep.mubr.f32.mxu0 0.0
        %2388 = vmatmul.mubr.f32.gmra.mrb[0].mxu0 %v1768
        %v2389 = vpop.f32.mrb[0].mxu0
        %v2390 = vadd.f32 %v2301, %v2389
        %v2391 = vpop.f32.mrb[0].mxu0
        %2392 = vmatprep.mubr.f32.mxu0 0.0
        %2393 = vmatmul.mubr.f32.gmra.mrb[0].mxu0 %v1771
        %v2394 = vpop.f32.mrb[0].mxu0
        %v2395 = vadd.f32 %v2301, %v2394
        %v2396 = vpop.f32.mrb[0].mxu0
        %2397 = vmatprep.mubr.f32.mxu0 0.0
        %2398 = vmatmul.mubr.f32.gmra.mrb[0].mxu0 %v1774
        %v2399 = vpop.f32.mrb[0].mxu0
        %v2400 = vadd.f32 %v2301, %v2399
        %v2401 = vpop.f32.mrb[0].mxu0
        %2402 = vmatprep.mubr.f32.mxu0 0.0
        %2403 = vmatmul.mubr.f32.gmra.mrb[0].mxu0 %v1777
        %v2404 = vpop.f32.mrb[0].mxu0
        %v2405 = vadd.f32 %v2301, %v2404
        %v2406 = vpop.f32.mrb[0].mxu0
        %2407 = vmatprep.mubr.f32.mxu0 0.0
        %2408 = vmatmul.mubr.f32.gmra.mrb[0].mxu0 %v1780
        %v2409 = vpop.f32.mrb[0].mxu0
        %v2410 = vadd.f32 %v2301, %v2409
        %v2411 = vpop.f32.mrb[0].mxu0
        %2412 = vmatprep.mubr.f32.mxu0 0.0
        %2413 = vmatmul.mubr.f32.gmra.mrb[0].mxu0 %v1783
        %v2414 = vpop.f32.mrb[0].mxu0
        %v2415 = vadd.f32 %v2301, %v2414
        %v2416 = vpop.f32.mrb[0].mxu0
        %2417 = vmatprep.mubr.f32.mxu0 0.0
        %2418 = vmatmul.mubr.f32.gmra.mrb[0].mxu0 %v1786
        %v2419 = vpop.f32.mrb[0].mxu0
        %v2420 = vadd.f32 %v2301, %v2419
        %v2421 = vpop.f32.mrb[0].mxu0
        %2422 = vmatprep.mubr.f32.mxu0 0.0
        %2423 = vmatmul.mubr.f32.gmra.mrb[0].mxu0 %v1789
        %v2424 = vpop.f32.mrb[0].mxu0
        %v2425 = vadd.f32 %v2301, %v2424
        %v2426 = vpop.f32.mrb[0].mxu0
        %2427 = vmatprep.mubr.f32.mxu0 0.0
        %2428 = vmatmul.mubr.f32.gmra.mrb[0].mxu0 %v1792
        %v2429 = vpop.f32.mrb[0].mxu0
        %v2430 = vadd.f32 %v2301, %v2429
        %v2431 = vpop.f32.mrb[0].mxu0
        %2432 = vmatprep.mubr.f32.mxu0 0.0
        %2433 = vmatmul.mubr.f32.gmra.mrb[0].mxu0 %v1795
        %v2434 = vpop.f32.mrb[0].mxu0
        %v2435 = vadd.f32 %v2301, %v2434
        %v2436 = vpop.f32.mrb[0].mxu0
        %2437 = vmatprep.mubr.f32.mxu0 0.0
        %2438 = vmatmul.mubr.f32.gmra.mrb[0].mxu0 %v1798
        %v2439 = vpop.f32.mrb[0].mxu0
        %v2440 = vadd.f32 %v2301, %v2439
        %v2441 = vpop.f32.mrb[0].mxu0
        %2442 = vmatprep.mubr.f32.mxu0 0.0
        %2443 = vmatmul.mubr.f32.gmra.mrb[0].mxu0 %v1801
        %v2444 = vpop.f32.mrb[0].mxu0
        %v2445 = vadd.f32 %v2301, %v2444
        %v2446 = vpop.f32.mrb[0].mxu0
        %2447 = vdwg.mxu0
        %v2448 = vmul.f32 %v2263, %v896
        %v2449 = vmul.f32 %v2265, %v897
        %v2450 = vmul.f32 %v2267, %v898
        %v2451 = vmul.f32 %v2269, %v899
        %v2452 = vmul.f32 %v2271, %v900
        %v2453 = vmul.f32 %v2273, %v901
        %v2454 = vmul.f32 %v2275, %v902
        %v2455 = vmul.f32 %v2277, %v903
        %v2456 = vmul.f32 %v2279, %v904
        %v2457 = vmul.f32 %v2281, %v905
        %v2458 = vmul.f32 %v2283, %v906
        %v2459 = vmul.f32 %v2285, %v907
        %v2460 = vmul.f32 %v2287, %v908
        %v2461 = vmul.f32 %v2289, %v909
        %v2462 = vmul.f32 %v2291, %v910
        %v2463 = vmul.f32 %v2293, %v911
        %v2464 = vld [vmem:[%s18] sm:$0xff]
        %v2465 = vld [vmem:[%s18 + $0x8] sm:$0xff]
        %2466 = vxpose.xlu0.b32.start [1/16] %v2448, 128
        %2467 = vxpose.xlu0.b32.cont [2/16] %v2449, 128
        %2468 = vxpose.xlu0.b32.cont [3/16] %v2450, 128
        %2469 = vxpose.xlu0.b32.cont [4/16] %v2451, 128
        %2470 = vxpose.xlu0.b32.cont [5/16] %v2452, 128
        %2471 = vxpose.xlu0.b32.cont [6/16] %v2453, 128
        %2472 = vxpose.xlu0.b32.cont [7/16] %v2454, 128
        %2473 = vxpose.xlu0.b32.cont [8/16] %v2455, 128
        %2474 = vxpose.xlu0.b32.cont [9/16] %v2456, 128
        %2475 = vxpose.xlu0.b32.cont [10/16] %v2457, 128
        %2476 = vxpose.xlu0.b32.cont [11/16] %v2458, 128
        %2477 = vxpose.xlu0.b32.cont [12/16] %v2459, 128
        %2478 = vxpose.xlu0.b32.cont [13/16] %v2460, 128
        %2479 = vxpose.xlu0.b32.cont [14/16] %v2461, 128
        %2480 = vxpose.xlu0.b32.cont [15/16] %v2462, 128
        %2481 = vxpose.xlu0.b32.end [16/16] %v2463, 128
        %v2482 = vpop.trf.xlu0
        %v2483 = vpop.trf.xlu0
        %v2484 = vpop.trf.xlu0
        %v2485 = vpop.trf.xlu0
        %v2486 = vpop.trf.xlu0
        %v2487 = vpop.trf.xlu0
        %v2488 = vpop.trf.xlu0
        %v2489 = vpop.trf.xlu0
        %v2490 = vpop.trf.xlu0
        %v2491 = vpop.trf.xlu0
        %v2492 = vpop.trf.xlu0
        %v2493 = vpop.trf.xlu0
        %v2494 = vpop.trf.xlu0
        %v2495 = vpop.trf.xlu0
        %v2496 = vpop.trf.xlu0
        %v2497 = vpop.trf.xlu0
        %2498 = vmatprep.subr.mxu0 0.0
        %2499 = vmatpush1.msra.mxu0 %v2370
        %2500 = vmatprep.subr.mxu0 0.0
        %2501 = vmatpush1.msra.mxu0 %v2375
        %2502 = vmatprep.subr.mxu0 0.0
        %2503 = vmatpush1.msra.mxu0 %v2380
        %2504 = vmatprep.subr.mxu0 0.0
        %2505 = vmatpush1.msra.mxu0 %v2385
        %2506 = vmatprep.subr.mxu0 0.0
        %2507 = vmatpush1.msra.mxu0 %v2390
        %2508 = vmatprep.subr.mxu0 0.0
        %2509 = vmatpush1.msra.mxu0 %v2395
        %2510 = vmatprep.subr.mxu0 0.0
        %2511 = vmatpush1.msra.mxu0 %v2400
        %2512 = vmatprep.subr.mxu0 0.0
        %2513 = vmatpush1.msra.mxu0 %v2405
        %2514 = vmatprep.subr.mxu0 0.0
        %2515 = vmatpush1.msra.mxu0 %v2410
        %2516 = vmatprep.subr.mxu0 0.0
        %2517 = vmatpush1.msra.mxu0 %v2415
        %2518 = vmatprep.subr.mxu0 0.0
        %2519 = vmatpush1.msra.mxu0 %v2420
        %2520 = vmatprep.subr.mxu0 0.0
        %2521 = vmatpush1.msra.mxu0 %v2425
        %2522 = vmatprep.subr.mxu0 0.0
        %2523 = vmatpush1.msra.mxu0 %v2430
        %2524 = vmatprep.subr.mxu0 0.0
        %2525 = vmatpush1.msra.mxu0 %v2435
        %2526 = vmatprep.subr.mxu0 0.0
        %2527 = vmatpush1.msra.mxu0 %v2440
        %2528 = vmatprep.subr.mxu0 0.0
        %2529 = vmatpush1.msra.mxu0 %v2445
        %2530 = vmatprep.subr.mxu0 0.0
        %2531 = vmatpush1.msra.mxu0 0.0
        %2532 = vmatprep.subr.mxu0 0.0
        %2533 = vmatpush1.msra.mxu0 0.0
        %2534 = vmatprep.subr.mxu0 0.0
        %2535 = vmatpush1.msra.mxu0 0.0
        %2536 = vmatprep.subr.mxu0 0.0
        %2537 = vmatpush1.msra.mxu0 0.0
        %2538 = vmatprep.subr.mxu0 0.0
        %2539 = vmatpush1.msra.mxu0 0.0
        %2540 = vmatprep.subr.mxu0 0.0
        %2541 = vmatpush1.msra.mxu0 0.0
        %2542 = vmatprep.subr.mxu0 0.0
        %2543 = vmatpush1.msra.mxu0 0.0
        %2544 = vmatprep.subr.mxu0 0.0
        %2545 = vmatpush1.msra.mxu0 0.0
        %2546 = vmatprep.subr.mxu0 0.0
        %2547 = vmatpush1.msra.mxu0 0.0
        %2548 = vmatprep.subr.mxu0 0.0
        %2549 = vmatpush1.msra.mxu0 0.0
        %2550 = vmatprep.subr.mxu0 0.0
        %2551 = vmatpush1.msra.mxu0 0.0
        %2552 = vmatprep.subr.mxu0 0.0
        %2553 = vmatpush1.msra.mxu0 0.0
        %2554 = vmatprep.subr.mxu0 0.0
        %2555 = vmatpush1.msra.mxu0 0.0
        %2556 = vmatprep.subr.mxu0 0.0
        %2557 = vmatpush1.msra.mxu0 0.0
        %2558 = vmatprep.subr.mxu0 0.0
        %2559 = vmatpush1.msra.mxu0 0.0
        %2560 = vmatprep.subr.mxu0 0.0
        %2561 = vmatpush1.msra.mxu0 0.0
        %2562 = vmatprep.mubr.f32.mxu0 0.0
        %2563 = vmatmul.mubr.f32.gmra.mrb[0].mxu0 %v2482
        %v2564 = vpop.f32.mrb[0].mxu0
        %v2565 = vadd.f32 0.0, %v2564
        %v2566 = vpop.f32.mrb[0].mxu0
        %2567 = vmatprep.mubr.f32.mxu0 0.0
        %2568 = vmatmul.mubr.f32.gmra.mrb[0].mxu0 %v2483
        %v2569 = vpop.f32.mrb[0].mxu0
        %v2570 = vadd.f32 0.0, %v2569
        %v2571 = vpop.f32.mrb[0].mxu0
        %2572 = vdwg.mxu0
        %v2573 = vmul.f32 %v2565, %v2464
        %v2574 = vmul.f32 %v2570, %v2465
        %v2575 = vsel %vm948, %v2448, 0.0
        %v2576 = vsel %vm948, %v2449, 0.0
        %v2577 = vadd.f32 %v2575, %v2576
        %v2578 = vsel %vm948, %v2450, 0.0
        %v2579 = vadd.f32 %v2577, %v2578
        %v2580 = vsel %vm948, %v2451, 0.0
        %v2581 = vadd.f32 %v2579, %v2580
        %v2582 = vsel %vm948, %v2452, 0.0
        %v2583 = vadd.f32 %v2581, %v2582
        %v2584 = vsel %vm948, %v2453, 0.0
        %v2585 = vadd.f32 %v2583, %v2584
        %v2586 = vsel %vm948, %v2454, 0.0
        %v2587 = vadd.f32 %v2585, %v2586
        %v2588 = vsel %vm948, %v2455, 0.0
        %v2589 = vadd.f32 %v2587, %v2588
        %v2590 = vsel %vm948, %v2456, 0.0
        %v2591 = vadd.f32 %v2589, %v2590
        %v2592 = vsel %vm948, %v2457, 0.0
        %v2593 = vadd.f32 %v2591, %v2592
        %v2594 = vsel %vm948, %v2458, 0.0
        %v2595 = vadd.f32 %v2593, %v2594
        %v2596 = vsel %vm948, %v2459, 0.0
        %v2597 = vadd.f32 %v2595, %v2596
        %v2598 = vsel %vm948, %v2460, 0.0
        %v2599 = vadd.f32 %v2597, %v2598
        %v2600 = vsel %vm948, %v2461, 0.0
        %v2601 = vadd.f32 %v2599, %v2600
        %v2602 = vsel %vm948, %v2462, 0.0
        %v2603 = vadd.f32 %v2601, %v2602
        %v2604 = vsel %vm948, %v2463, 0.0
        %v2605 = vadd.f32 %v2603, %v2604
        %v2606 = vrot.slane %v2605, 4
        %v2607 = vadd.f32 %v2605, %v2606
        %v2608 = vrot.slane %v2607, 2
        %v2609 = vadd.f32 %v2607, %v2608
        %v2610 = vrot.slane %v2609, 1
        %v2611 = vadd.f32 %v2609, %v2610
        %v2612 = vadd.f32 %v2611, 1e-06
        %v2613 = vmul.f32 %v2013, %v2612
        %v2614 = vmul.f32 %v2015, %v2612
        %v2615 = vmul.f32 %v2017, %v2612
        %v2616 = vmul.f32 %v2019, %v2612
        %v2617 = vmul.f32 %v2021, %v2612
        %v2618 = vmul.f32 %v2023, %v2612
        %v2619 = vmul.f32 %v2025, %v2612
        %v2620 = vmul.f32 %v2027, %v2612
        %v2621 = vmul.f32 %v2029, %v2612
        %v2622 = vmul.f32 %v2031, %v2612
        %v2623 = vmul.f32 %v2033, %v2612
        %v2624 = vmul.f32 %v2035, %v2612
        %v2625 = vmul.f32 %v2037, %v2612
        %v2626 = vmul.f32 %v2039, %v2612
        %v2627 = vmul.f32 %v2041, %v2612
        %v2628 = vmul.f32 %v2043, %v2612
        %v2630 = vsel %vm948, %v2613, 0
        %v2633 = vsel %vm948, %v2614, 0
        %v2636 = vsel %vm948, %v2615, 0
        %v2639 = vsel %vm948, %v2616, 0
        %v2642 = vsel %vm948, %v2617, 0
        %v2645 = vsel %vm948, %v2618, 0
        %v2648 = vsel %vm948, %v2619, 0
        %v2651 = vsel %vm948, %v2620, 0
        %v2654 = vsel %vm948, %v2621, 0
        %v2657 = vsel %vm948, %v2622, 0
        %v2660 = vsel %vm948, %v2623, 0
        %v2663 = vsel %vm948, %v2624, 0
        %v2666 = vsel %vm948, %v2625, 0
        %v2669 = vsel %vm948, %v2626, 0
        %v2672 = vsel %vm948, %v2627, 0
        %v2675 = vsel %vm948, %v2628, 0
        %2677 = vmatprep.subr.mxu0 0.0
        %2678 = vmatpush1.msra.mxu0 %v2464
        %2679 = vmatprep.subr.mxu0 0.0
        %2680 = vmatpush1.msra.mxu0 %v2465
        %2681 = vmatprep.subr.mxu0 0.0
        %2682 = vmatpush1.msra.mxu0 0.0
        %2683 = vmatprep.subr.mxu0 0.0
        %2684 = vmatpush1.msra.mxu0 0.0
        %2685 = vmatprep.subr.mxu0 0.0
        %2686 = vmatpush1.msra.mxu0 0.0
        %2687 = vmatprep.subr.mxu0 0.0
        %2688 = vmatpush1.msra.mxu0 0.0
        %2689 = vmatprep.subr.mxu0 0.0
        %2690 = vmatpush1.msra.mxu0 0.0
        %2691 = vmatprep.subr.mxu0 0.0
        %2692 = vmatpush1.msra.mxu0 0.0
        %2693 = vmatprep.subr.mxu0 0.0
        %2694 = vmatpush1.msra.mxu0 0.0
        %2695 = vmatprep.subr.mxu0 0.0
        %2696 = vmatpush1.msra.mxu0 0.0
        %2697 = vmatprep.subr.mxu0 0.0
        %2698 = vmatpush1.msra.mxu0 0.0
        %2699 = vmatprep.subr.mxu0 0.0
        %2700 = vmatpush1.msra.mxu0 0.0
        %2701 = vmatprep.subr.mxu0 0.0
        %2702 = vmatpush1.msra.mxu0 0.0
        %2703 = vmatprep.subr.mxu0 0.0
        %2704 = vmatpush1.msra.mxu0 0.0
        %2705 = vmatprep.subr.mxu0 0.0
        %2706 = vmatpush1.msra.mxu0 0.0
        %2707 = vmatprep.subr.mxu0 0.0
        %2708 = vmatpush1.msra.mxu0 0.0
        %2709 = vmatprep.subr.mxu0 0.0
        %2710 = vmatpush1.msra.mxu0 0.0
        %2711 = vmatprep.subr.mxu0 0.0
        %2712 = vmatpush1.msra.mxu0 0.0
        %2713 = vmatprep.subr.mxu0 0.0
        %2714 = vmatpush1.msra.mxu0 0.0
        %2715 = vmatprep.subr.mxu0 0.0
        %2716 = vmatpush1.msra.mxu0 0.0
        %2717 = vmatprep.subr.mxu0 0.0
        %2718 = vmatpush1.msra.mxu0 0.0
        %2719 = vmatprep.subr.mxu0 0.0
        %2720 = vmatpush1.msra.mxu0 0.0
        %2721 = vmatprep.subr.mxu0 0.0
        %2722 = vmatpush1.msra.mxu0 0.0
        %2723 = vmatprep.subr.mxu0 0.0
        %2724 = vmatpush1.msra.mxu0 0.0
        %2725 = vmatprep.subr.mxu0 0.0
        %2726 = vmatpush1.msra.mxu0 0.0
        %2727 = vmatprep.subr.mxu0 0.0
        %2728 = vmatpush1.msra.mxu0 0.0
        %2729 = vmatprep.subr.mxu0 0.0
        %2730 = vmatpush1.msra.mxu0 0.0
        %2731 = vmatprep.subr.mxu0 0.0
        %2732 = vmatpush1.msra.mxu0 0.0
        %2733 = vmatprep.subr.mxu0 0.0
        %2734 = vmatpush1.msra.mxu0 0.0
        %2735 = vmatprep.subr.mxu0 0.0
        %2736 = vmatpush1.msra.mxu0 0.0
        %2737 = vmatprep.subr.mxu0 0.0
        %2738 = vmatpush1.msra.mxu0 0.0
        %2739 = vmatprep.subr.mxu0 0.0
        %2740 = vmatpush1.msra.mxu0 0.0
        %2741 = vmatprep.mubr.f32.mxu0 0.0
        %2742 = vmatmul.mubr.f32.gmra.mrb[0].mxu0 %v2630
        %v2743 = vpop.f32.mrb[0].mxu0
        %v2744 = vadd.f32 0.0, %v2743
        %v2745 = vpop.f32.mrb[0].mxu0
        %2746 = vmatprep.mubr.f32.mxu0 0.0
        %2747 = vmatmul.mubr.f32.gmra.mrb[0].mxu0 %v2633
        %v2748 = vpop.f32.mrb[0].mxu0
        %v2749 = vadd.f32 0.0, %v2748
        %v2750 = vpop.f32.mrb[0].mxu0
        %2751 = vmatprep.mubr.f32.mxu0 0.0
        %2752 = vmatmul.mubr.f32.gmra.mrb[0].mxu0 %v2636
        %v2753 = vpop.f32.mrb[0].mxu0
        %v2754 = vadd.f32 0.0, %v2753
        %v2755 = vpop.f32.mrb[0].mxu0
        %2756 = vmatprep.mubr.f32.mxu0 0.0
        %2757 = vmatmul.mubr.f32.gmra.mrb[0].mxu0 %v2639
        %v2758 = vpop.f32.mrb[0].mxu0
        %v2759 = vadd.f32 0.0, %v2758
        %v2760 = vpop.f32.mrb[0].mxu0
        %2761 = vmatprep.mubr.f32.mxu0 0.0
        %2762 = vmatmul.mubr.f32.gmra.mrb[0].mxu0 %v2642
        %v2763 = vpop.f32.mrb[0].mxu0
        %v2764 = vadd.f32 0.0, %v2763
        %v2765 = vpop.f32.mrb[0].mxu0
        %2766 = vmatprep.mubr.f32.mxu0 0.0
        %2767 = vmatmul.mubr.f32.gmra.mrb[0].mxu0 %v2645
        %v2768 = vpop.f32.mrb[0].mxu0
        %v2769 = vadd.f32 0.0, %v2768
        %v2770 = vpop.f32.mrb[0].mxu0
        %2771 = vmatprep.mubr.f32.mxu0 0.0
        %2772 = vmatmul.mubr.f32.gmra.mrb[0].mxu0 %v2648
        %v2773 = vpop.f32.mrb[0].mxu0
        %v2774 = vadd.f32 0.0, %v2773
        %v2775 = vpop.f32.mrb[0].mxu0
        %2776 = vmatprep.mubr.f32.mxu0 0.0
        %2777 = vmatmul.mubr.f32.gmra.mrb[0].mxu0 %v2651
        %v2778 = vpop.f32.mrb[0].mxu0
        %v2779 = vadd.f32 0.0, %v2778
        %v2780 = vpop.f32.mrb[0].mxu0
        %2781 = vmatprep.mubr.f32.mxu0 0.0
        %2782 = vmatmul.mubr.f32.gmra.mrb[0].mxu0 %v2654
        %v2783 = vpop.f32.mrb[0].mxu0
        %v2784 = vadd.f32 0.0, %v2783
        %v2785 = vpop.f32.mrb[0].mxu0
        %2786 = vmatprep.mubr.f32.mxu0 0.0
        %2787 = vmatmul.mubr.f32.gmra.mrb[0].mxu0 %v2657
        %v2788 = vpop.f32.mrb[0].mxu0
        %v2789 = vadd.f32 0.0, %v2788
        %v2790 = vpop.f32.mrb[0].mxu0
        %2791 = vmatprep.mubr.f32.mxu0 0.0
        %2792 = vmatmul.mubr.f32.gmra.mrb[0].mxu0 %v2660
        %v2793 = vpop.f32.mrb[0].mxu0
        %v2794 = vadd.f32 0.0, %v2793
        %v2795 = vpop.f32.mrb[0].mxu0
        %2796 = vmatprep.mubr.f32.mxu0 0.0
        %2797 = vmatmul.mubr.f32.gmra.mrb[0].mxu0 %v2663
        %v2798 = vpop.f32.mrb[0].mxu0
        %v2799 = vadd.f32 0.0, %v2798
        %v2800 = vpop.f32.mrb[0].mxu0
        %2801 = vmatprep.mubr.f32.mxu0 0.0
        %2802 = vmatmul.mubr.f32.gmra.mrb[0].mxu0 %v2666
        %v2803 = vpop.f32.mrb[0].mxu0
        %v2804 = vadd.f32 0.0, %v2803
        %v2805 = vpop.f32.mrb[0].mxu0
        %2806 = vmatprep.mubr.f32.mxu0 0.0
        %2807 = vmatmul.mubr.f32.gmra.mrb[0].mxu0 %v2669
        %v2808 = vpop.f32.mrb[0].mxu0
        %v2809 = vadd.f32 0.0, %v2808
        %v2810 = vpop.f32.mrb[0].mxu0
        %2811 = vmatprep.mubr.f32.mxu0 0.0
        %2812 = vmatmul.mubr.f32.gmra.mrb[0].mxu0 %v2672
        %v2813 = vpop.f32.mrb[0].mxu0
        %v2814 = vadd.f32 0.0, %v2813
        %v2815 = vpop.f32.mrb[0].mxu0
        %2816 = vmatprep.mubr.f32.mxu0 0.0
        %2817 = vmatmul.mubr.f32.gmra.mrb[0].mxu0 %v2675
        %v2818 = vpop.f32.mrb[0].mxu0
        %v2819 = vadd.f32 0.0, %v2818
        %v2820 = vpop.f32.mrb[0].mxu0
        %2821 = vdwg.mxu0
        %v2822 = vrcp.pop %v2744
        %v2823 = vrcp.pop %v2749
        %v2824 = vrcp.pop %v2754
        %v2825 = vrcp.pop %v2759
        %v2826 = vrcp.pop %v2764
        %v2827 = vrcp.pop %v2769
        %v2828 = vrcp.pop %v2774
        %v2829 = vrcp.pop %v2779
        %v2830 = vrcp.pop %v2784
        %v2831 = vrcp.pop %v2789
        %v2832 = vrcp.pop %v2794
        %v2833 = vrcp.pop %v2799
        %v2834 = vrcp.pop %v2804
        %v2835 = vrcp.pop %v2809
        %v2836 = vrcp.pop %v2814
        %v2837 = vrcp.pop %v2819
        %v2838 = vmul.f32 %v2744, %v2822
        %v2839 = vmul.f32 %v2749, %v2823
        %v2840 = vmul.f32 %v2754, %v2824
        %v2841 = vmul.f32 %v2759, %v2825
        %v2842 = vmul.f32 %v2764, %v2826
        %v2843 = vmul.f32 %v2769, %v2827
        %v2844 = vmul.f32 %v2774, %v2828
        %v2845 = vmul.f32 %v2779, %v2829
        %v2846 = vmul.f32 %v2784, %v2830
        %v2847 = vmul.f32 %v2789, %v2831
        %v2848 = vmul.f32 %v2794, %v2832
        %v2849 = vmul.f32 %v2799, %v2833
        %v2850 = vmul.f32 %v2804, %v2834
        %v2851 = vmul.f32 %v2809, %v2835
        %v2852 = vmul.f32 %v2814, %v2836
        %v2853 = vmul.f32 %v2819, %v2837
        %v2854 = vsub.f32 2.0, %v2838
        %v2855 = vsub.f32 2.0, %v2839
        %v2856 = vsub.f32 2.0, %v2840
        %v2857 = vsub.f32 2.0, %v2841
        %v2858 = vsub.f32 2.0, %v2842
        %v2859 = vsub.f32 2.0, %v2843
        %v2860 = vsub.f32 2.0, %v2844
        %v2861 = vsub.f32 2.0, %v2845
        %v2862 = vsub.f32 2.0, %v2846
        %v2863 = vsub.f32 2.0, %v2847
        %v2864 = vsub.f32 2.0, %v2848
        %v2865 = vsub.f32 2.0, %v2849
        %v2866 = vsub.f32 2.0, %v2850
        %v2867 = vsub.f32 2.0, %v2851
        %v2868 = vsub.f32 2.0, %v2852
        %v2869 = vsub.f32 2.0, %v2853
        %v2870 = vmul.f32 %v2822, %v2854
        %v2871 = vmul.f32 %v2823, %v2855
        %v2872 = vmul.f32 %v2824, %v2856
        %v2873 = vmul.f32 %v2825, %v2857
        %v2874 = vmul.f32 %v2826, %v2858
        %v2875 = vmul.f32 %v2827, %v2859
        %v2876 = vmul.f32 %v2828, %v2860
        %v2877 = vmul.f32 %v2829, %v2861
        %v2878 = vmul.f32 %v2830, %v2862
        %v2879 = vmul.f32 %v2831, %v2863
        %v2880 = vmul.f32 %v2832, %v2864
        %v2881 = vmul.f32 %v2833, %v2865
        %v2882 = vmul.f32 %v2834, %v2866
        %v2883 = vmul.f32 %v2835, %v2867
        %v2884 = vmul.f32 %v2836, %v2868
        %v2885 = vmul.f32 %v2837, %v2869
        %v2887 = vsel %vm948, %v2013, 0
        %v2890 = vsel %vm948, %v2015, 0
        %v2893 = vsel %vm948, %v2017, 0
        %v2896 = vsel %vm948, %v2019, 0
        %v2899 = vsel %vm948, %v2021, 0
        %v2902 = vsel %vm948, %v2023, 0
        %v2905 = vsel %vm948, %v2025, 0
        %v2908 = vsel %vm948, %v2027, 0
        %v2911 = vsel %vm948, %v2029, 0
        %v2914 = vsel %vm948, %v2031, 0
        %v2917 = vsel %vm948, %v2033, 0
        %v2920 = vsel %vm948, %v2035, 0
        %v2923 = vsel %vm948, %v2037, 0
        %v2926 = vsel %vm948, %v2039, 0
        %v2929 = vsel %vm948, %v2041, 0
        %v2932 = vsel %vm948, %v2043, 0
        %2934 = vmatprep.subr.mxu0 0.0
        %2935 = vmatpush1.msra.mxu0 %v2573
        %2936 = vmatprep.subr.mxu0 0.0
        %2937 = vmatpush1.msra.mxu0 %v2574
        %2938 = vmatprep.subr.mxu0 0.0
        %2939 = vmatpush1.msra.mxu0 0.0
        %2940 = vmatprep.subr.mxu0 0.0
        %2941 = vmatpush1.msra.mxu0 0.0
        %2942 = vmatprep.subr.mxu0 0.0
        %2943 = vmatpush1.msra.mxu0 0.0
        %2944 = vmatprep.subr.mxu0 0.0
        %2945 = vmatpush1.msra.mxu0 0.0
        %2946 = vmatprep.subr.mxu0 0.0
        %2947 = vmatpush1.msra.mxu0 0.0
        %2948 = vmatprep.subr.mxu0 0.0
        %2949 = vmatpush1.msra.mxu0 0.0
        %2950 = vmatprep.subr.mxu0 0.0
        %2951 = vmatpush1.msra.mxu0 0.0
        %2952 = vmatprep.subr.mxu0 0.0
        %2953 = vmatpush1.msra.mxu0 0.0
        %2954 = vmatprep.subr.mxu0 0.0
        %2955 = vmatpush1.msra.mxu0 0.0
        %2956 = vmatprep.subr.mxu0 0.0
        %2957 = vmatpush1.msra.mxu0 0.0
        %2958 = vmatprep.subr.mxu0 0.0
        %2959 = vmatpush1.msra.mxu0 0.0
        %2960 = vmatprep.subr.mxu0 0.0
        %2961 = vmatpush1.msra.mxu0 0.0
        %2962 = vmatprep.subr.mxu0 0.0
        %2963 = vmatpush1.msra.mxu0 0.0
        %2964 = vmatprep.subr.mxu0 0.0
        %2965 = vmatpush1.msra.mxu0 0.0
        %2966 = vmatprep.subr.mxu0 0.0
        %2967 = vmatpush1.msra.mxu0 0.0
        %2968 = vmatprep.subr.mxu0 0.0
        %2969 = vmatpush1.msra.mxu0 0.0
        %2970 = vmatprep.subr.mxu0 0.0
        %2971 = vmatpush1.msra.mxu0 0.0
        %2972 = vmatprep.subr.mxu0 0.0
        %2973 = vmatpush1.msra.mxu0 0.0
        %2974 = vmatprep.subr.mxu0 0.0
        %2975 = vmatpush1.msra.mxu0 0.0
        %2976 = vmatprep.subr.mxu0 0.0
        %2977 = vmatpush1.msra.mxu0 0.0
        %2978 = vmatprep.subr.mxu0 0.0
        %2979 = vmatpush1.msra.mxu0 0.0
        %2980 = vmatprep.subr.mxu0 0.0
        %2981 = vmatpush1.msra.mxu0 0.0
        %2982 = vmatprep.subr.mxu0 0.0
        %2983 = vmatpush1.msra.mxu0 0.0
        %2984 = vmatprep.subr.mxu0 0.0
        %2985 = vmatpush1.msra.mxu0 0.0
        %2986 = vmatprep.subr.mxu0 0.0
        %2987 = vmatpush1.msra.mxu0 0.0
        %2988 = vmatprep.subr.mxu0 0.0
        %2989 = vmatpush1.msra.mxu0 0.0
        %2990 = vmatprep.subr.mxu0 0.0
        %2991 = vmatpush1.msra.mxu0 0.0
        %2992 = vmatprep.subr.mxu0 0.0
        %2993 = vmatpush1.msra.mxu0 0.0
        %2994 = vmatprep.subr.mxu0 0.0
        %2995 = vmatpush1.msra.mxu0 0.0
        %2996 = vmatprep.subr.mxu0 0.0
        %2997 = vmatpush1.msra.mxu0 0.0
        %2998 = vmatprep.mubr.f32.mxu0 0.0
        %2999 = vmatmul.mubr.f32.gmra.mrb[0].mxu0 %v2887
        %v3000 = vpop.f32.mrb[0].mxu0
        %v3001 = vadd.f32 0.0, %v3000
        %v3002 = vpop.f32.mrb[0].mxu0
        %3003 = vmatprep.mubr.f32.mxu0 0.0
        %3004 = vmatmul.mubr.f32.gmra.mrb[0].mxu0 %v2890
        %v3005 = vpop.f32.mrb[0].mxu0
        %v3006 = vadd.f32 0.0, %v3005
        %v3007 = vpop.f32.mrb[0].mxu0
        %3008 = vmatprep.mubr.f32.mxu0 0.0
        %3009 = vmatmul.mubr.f32.gmra.mrb[0].mxu0 %v2893
        %v3010 = vpop.f32.mrb[0].mxu0
        %v3011 = vadd.f32 0.0, %v3010
        %v3012 = vpop.f32.mrb[0].mxu0
        %3013 = vmatprep.mubr.f32.mxu0 0.0
        %3014 = vmatmul.mubr.f32.gmra.mrb[0].mxu0 %v2896
        %v3015 = vpop.f32.mrb[0].mxu0
        %v3016 = vadd.f32 0.0, %v3015
        %v3017 = vpop.f32.mrb[0].mxu0
        %3018 = vmatprep.mubr.f32.mxu0 0.0
        %3019 = vmatmul.mubr.f32.gmra.mrb[0].mxu0 %v2899
        %v3020 = vpop.f32.mrb[0].mxu0
        %v3021 = vadd.f32 0.0, %v3020
        %v3022 = vpop.f32.mrb[0].mxu0
        %3023 = vmatprep.mubr.f32.mxu0 0.0
        %3024 = vmatmul.mubr.f32.gmra.mrb[0].mxu0 %v2902
        %v3025 = vpop.f32.mrb[0].mxu0
        %v3026 = vadd.f32 0.0, %v3025
        %v3027 = vpop.f32.mrb[0].mxu0
        %3028 = vmatprep.mubr.f32.mxu0 0.0
        %3029 = vmatmul.mubr.f32.gmra.mrb[0].mxu0 %v2905
        %v3030 = vpop.f32.mrb[0].mxu0
        %v3031 = vadd.f32 0.0, %v3030
        %v3032 = vpop.f32.mrb[0].mxu0
        %3033 = vmatprep.mubr.f32.mxu0 0.0
        %3034 = vmatmul.mubr.f32.gmra.mrb[0].mxu0 %v2908
        %v3035 = vpop.f32.mrb[0].mxu0
        %v3036 = vadd.f32 0.0, %v3035
        %v3037 = vpop.f32.mrb[0].mxu0
        %3038 = vmatprep.mubr.f32.mxu0 0.0
        %3039 = vmatmul.mubr.f32.gmra.mrb[0].mxu0 %v2911
        %v3040 = vpop.f32.mrb[0].mxu0
        %v3041 = vadd.f32 0.0, %v3040
        %v3042 = vpop.f32.mrb[0].mxu0
        %3043 = vmatprep.mubr.f32.mxu0 0.0
        %3044 = vmatmul.mubr.f32.gmra.mrb[0].mxu0 %v2914
        %v3045 = vpop.f32.mrb[0].mxu0
        %v3046 = vadd.f32 0.0, %v3045
        %v3047 = vpop.f32.mrb[0].mxu0
        %3048 = vmatprep.mubr.f32.mxu0 0.0
        %3049 = vmatmul.mubr.f32.gmra.mrb[0].mxu0 %v2917
        %v3050 = vpop.f32.mrb[0].mxu0
        %v3051 = vadd.f32 0.0, %v3050
        %v3052 = vpop.f32.mrb[0].mxu0
        %3053 = vmatprep.mubr.f32.mxu0 0.0
        %3054 = vmatmul.mubr.f32.gmra.mrb[0].mxu0 %v2920
        %v3055 = vpop.f32.mrb[0].mxu0
        %v3056 = vadd.f32 0.0, %v3055
        %v3057 = vpop.f32.mrb[0].mxu0
        %3058 = vmatprep.mubr.f32.mxu0 0.0
        %3059 = vmatmul.mubr.f32.gmra.mrb[0].mxu0 %v2923
        %v3060 = vpop.f32.mrb[0].mxu0
        %v3061 = vadd.f32 0.0, %v3060
        %v3062 = vpop.f32.mrb[0].mxu0
        %3063 = vmatprep.mubr.f32.mxu0 0.0
        %3064 = vmatmul.mubr.f32.gmra.mrb[0].mxu0 %v2926
        %v3065 = vpop.f32.mrb[0].mxu0
        %v3066 = vadd.f32 0.0, %v3065
        %v3067 = vpop.f32.mrb[0].mxu0
        %3068 = vmatprep.mubr.f32.mxu0 0.0
        %3069 = vmatmul.mubr.f32.gmra.mrb[0].mxu0 %v2929
        %v3070 = vpop.f32.mrb[0].mxu0
        %v3071 = vadd.f32 0.0, %v3070
        %v3072 = vpop.f32.mrb[0].mxu0
        %3073 = vmatprep.mubr.f32.mxu0 0.0
        %3074 = vmatmul.mubr.f32.gmra.mrb[0].mxu0 %v2932
        %v3075 = vpop.f32.mrb[0].mxu0
        %v3076 = vadd.f32 0.0, %v3075
        %v3077 = vpop.f32.mrb[0].mxu0
        %3078 = vdwg.mxu0
        %v3079 = vmul.f32 %v3001, %v2870
        %v3080 = vmul.f32 %v3006, %v2871
        %v3081 = vmul.f32 %v3011, %v2872
        %v3082 = vmul.f32 %v3016, %v2873
        %v3083 = vmul.f32 %v3021, %v2874
        %v3084 = vmul.f32 %v3026, %v2875
        %v3085 = vmul.f32 %v3031, %v2876
        %v3086 = vmul.f32 %v3036, %v2877
        %v3087 = vmul.f32 %v3041, %v2878
        %v3088 = vmul.f32 %v3046, %v2879
        %v3089 = vmul.f32 %v3051, %v2880
        %v3090 = vmul.f32 %v3056, %v2881
        %v3091 = vmul.f32 %v3061, %v2882
        %v3092 = vmul.f32 %v3066, %v2883
        %v3093 = vmul.f32 %v3071, %v2884
        %v3094 = vmul.f32 %v3076, %v2885
        %v3095 = vld [vmem:[%s14] sm:$0xff]
        %v3096 = vld [vmem:[%s14 + $0x8] sm:$0xff]
        %v3097 = vld [vmem:[%s15] sm:$0x1]
        %v3099 = vlaneseq
        %v3100 = vshrl.u32 %v3099, 7
        %v3101 = vsub.s32 0, %v3100
        %v3102 = vrot.slane %v3097, %v3101
        %v3105 = vsel %vm948, %v3079, 0
        %v3108 = vsel %vm948, %v3080, 0
        %v3111 = vsel %vm948, %v3081, 0
        %v3114 = vsel %vm948, %v3082, 0
        %v3117 = vsel %vm948, %v3083, 0
        %v3120 = vsel %vm948, %v3084, 0
        %v3123 = vsel %vm948, %v3085, 0
        %v3126 = vsel %vm948, %v3086, 0
        %v3129 = vsel %vm948, %v3087, 0
        %v3132 = vsel %vm948, %v3088, 0
        %v3135 = vsel %vm948, %v3089, 0
        %v3138 = vsel %vm948, %v3090, 0
        %v3141 = vsel %vm948, %v3091, 0
        %v3144 = vsel %vm948, %v3092, 0
        %v3147 = vsel %vm948, %v3093, 0
        %v3150 = vsel %vm948, %v3094, 0
        %3152 = vmatprep.subr.mxu0 0.0
        %3153 = vmatpush1.msra.mxu0 %v3095
        %3154 = vmatprep.subr.mxu0 0.0
        %3155 = vmatpush1.msra.mxu0 %v3096
        %3156 = vmatprep.subr.mxu0 0.0
        %3157 = vmatpush1.msra.mxu0 0.0
        %3158 = vmatprep.subr.mxu0 0.0
        %3159 = vmatpush1.msra.mxu0 0.0
        %3160 = vmatprep.subr.mxu0 0.0
        %3161 = vmatpush1.msra.mxu0 0.0
        %3162 = vmatprep.subr.mxu0 0.0
        %3163 = vmatpush1.msra.mxu0 0.0
        %3164 = vmatprep.subr.mxu0 0.0
        %3165 = vmatpush1.msra.mxu0 0.0
        %3166 = vmatprep.subr.mxu0 0.0
        %3167 = vmatpush1.msra.mxu0 0.0
        %3168 = vmatprep.subr.mxu0 0.0
        %3169 = vmatpush1.msra.mxu0 0.0
        %3170 = vmatprep.subr.mxu0 0.0
        %3171 = vmatpush1.msra.mxu0 0.0
        %3172 = vmatprep.subr.mxu0 0.0
        %3173 = vmatpush1.msra.mxu0 0.0
        %3174 = vmatprep.subr.mxu0 0.0
        %3175 = vmatpush1.msra.mxu0 0.0
        %3176 = vmatprep.subr.mxu0 0.0
        %3177 = vmatpush1.msra.mxu0 0.0
        %3178 = vmatprep.subr.mxu0 0.0
        %3179 = vmatpush1.msra.mxu0 0.0
        %3180 = vmatprep.subr.mxu0 0.0
        %3181 = vmatpush1.msra.mxu0 0.0
        %3182 = vmatprep.subr.mxu0 0.0
        %3183 = vmatpush1.msra.mxu0 0.0
        %3184 = vmatprep.subr.mxu0 0.0
        %3185 = vmatpush1.msra.mxu0 0.0
        %3186 = vmatprep.subr.mxu0 0.0
        %3187 = vmatpush1.msra.mxu0 0.0
        %3188 = vmatprep.subr.mxu0 0.0
        %3189 = vmatpush1.msra.mxu0 0.0
        %3190 = vmatprep.subr.mxu0 0.0
        %3191 = vmatpush1.msra.mxu0 0.0
        %3192 = vmatprep.subr.mxu0 0.0
        %3193 = vmatpush1.msra.mxu0 0.0
        %3194 = vmatprep.subr.mxu0 0.0
        %3195 = vmatpush1.msra.mxu0 0.0
        %3196 = vmatprep.subr.mxu0 0.0
        %3197 = vmatpush1.msra.mxu0 0.0
        %3198 = vmatprep.subr.mxu0 0.0
        %3199 = vmatpush1.msra.mxu0 0.0
        %3200 = vmatprep.subr.mxu0 0.0
        %3201 = vmatpush1.msra.mxu0 0.0
        %3202 = vmatprep.subr.mxu0 0.0
        %3203 = vmatpush1.msra.mxu0 0.0
        %3204 = vmatprep.subr.mxu0 0.0
        %3205 = vmatpush1.msra.mxu0 0.0
        %3206 = vmatprep.subr.mxu0 0.0
        %3207 = vmatpush1.msra.mxu0 0.0
        %3208 = vmatprep.subr.mxu0 0.0
        %3209 = vmatpush1.msra.mxu0 0.0
        %3210 = vmatprep.subr.mxu0 0.0
        %3211 = vmatpush1.msra.mxu0 0.0
        %3212 = vmatprep.subr.mxu0 0.0
        %3213 = vmatpush1.msra.mxu0 0.0
        %3214 = vmatprep.subr.mxu0 0.0
        %3215 = vmatpush1.msra.mxu0 0.0
        %3216 = vmatprep.mubr.f32.mxu0 0.0
        %3217 = vmatmul.mubr.f32.gmra.mrb[0].mxu0 %v3105
        %v3218 = vpop.f32.mrb[0].mxu0
        %v3219 = vadd.f32 %v3102, %v3218
        %v3220 = vpop.f32.mrb[0].mxu0
        %3221 = vmatprep.mubr.f32.mxu0 0.0
        %3222 = vmatmul.mubr.f32.gmra.mrb[0].mxu0 %v3108
        %v3223 = vpop.f32.mrb[0].mxu0
        %v3224 = vadd.f32 %v3102, %v3223
        %v3225 = vpop.f32.mrb[0].mxu0
        %3226 = vmatprep.mubr.f32.mxu0 0.0
        %3227 = vmatmul.mubr.f32.gmra.mrb[0].mxu0 %v3111
        %v3228 = vpop.f32.mrb[0].mxu0
        %v3229 = vadd.f32 %v3102, %v3228
        %v3230 = vpop.f32.mrb[0].mxu0
        %3231 = vmatprep.mubr.f32.mxu0 0.0
        %3232 = vmatmul.mubr.f32.gmra.mrb[0].mxu0 %v3114
        %v3233 = vpop.f32.mrb[0].mxu0
        %v3234 = vadd.f32 %v3102, %v3233
        %v3235 = vpop.f32.mrb[0].mxu0
        %3236 = vmatprep.mubr.f32.mxu0 0.0
        %3237 = vmatmul.mubr.f32.gmra.mrb[0].mxu0 %v3117
        %v3238 = vpop.f32.mrb[0].mxu0
        %v3239 = vadd.f32 %v3102, %v3238
        %v3240 = vpop.f32.mrb[0].mxu0
        %3241 = vmatprep.mubr.f32.mxu0 0.0
        %3242 = vmatmul.mubr.f32.gmra.mrb[0].mxu0 %v3120
        %v3243 = vpop.f32.mrb[0].mxu0
        %v3244 = vadd.f32 %v3102, %v3243
        %v3245 = vpop.f32.mrb[0].mxu0
        %3246 = vmatprep.mubr.f32.mxu0 0.0
        %3247 = vmatmul.mubr.f32.gmra.mrb[0].mxu0 %v3123
        %v3248 = vpop.f32.mrb[0].mxu0
        %v3249 = vadd.f32 %v3102, %v3248
        %v3250 = vpop.f32.mrb[0].mxu0
        %3251 = vmatprep.mubr.f32.mxu0 0.0
        %3252 = vmatmul.mubr.f32.gmra.mrb[0].mxu0 %v3126
        %v3253 = vpop.f32.mrb[0].mxu0
        %v3254 = vadd.f32 %v3102, %v3253
        %v3255 = vpop.f32.mrb[0].mxu0
        %3256 = vmatprep.mubr.f32.mxu0 0.0
        %3257 = vmatmul.mubr.f32.gmra.mrb[0].mxu0 %v3129
        %v3258 = vpop.f32.mrb[0].mxu0
        %v3259 = vadd.f32 %v3102, %v3258
        %v3260 = vpop.f32.mrb[0].mxu0
        %3261 = vmatprep.mubr.f32.mxu0 0.0
        %3262 = vmatmul.mubr.f32.gmra.mrb[0].mxu0 %v3132
        %v3263 = vpop.f32.mrb[0].mxu0
        %v3264 = vadd.f32 %v3102, %v3263
        %v3265 = vpop.f32.mrb[0].mxu0
        %3266 = vmatprep.mubr.f32.mxu0 0.0
        %3267 = vmatmul.mubr.f32.gmra.mrb[0].mxu0 %v3135
        %v3268 = vpop.f32.mrb[0].mxu0
        %v3269 = vadd.f32 %v3102, %v3268
        %v3270 = vpop.f32.mrb[0].mxu0
        %3271 = vmatprep.mubr.f32.mxu0 0.0
        %3272 = vmatmul.mubr.f32.gmra.mrb[0].mxu0 %v3138
        %v3273 = vpop.f32.mrb[0].mxu0
        %v3274 = vadd.f32 %v3102, %v3273
        %v3275 = vpop.f32.mrb[0].mxu0
        %3276 = vmatprep.mubr.f32.mxu0 0.0
        %3277 = vmatmul.mubr.f32.gmra.mrb[0].mxu0 %v3141
        %v3278 = vpop.f32.mrb[0].mxu0
        %v3279 = vadd.f32 %v3102, %v3278
        %v3280 = vpop.f32.mrb[0].mxu0
        %3281 = vmatprep.mubr.f32.mxu0 0.0
        %3282 = vmatmul.mubr.f32.gmra.mrb[0].mxu0 %v3144
        %v3283 = vpop.f32.mrb[0].mxu0
        %v3284 = vadd.f32 %v3102, %v3283
        %v3285 = vpop.f32.mrb[0].mxu0
        %3286 = vmatprep.mubr.f32.mxu0 0.0
        %3287 = vmatmul.mubr.f32.gmra.mrb[0].mxu0 %v3147
        %v3288 = vpop.f32.mrb[0].mxu0
        %v3289 = vadd.f32 %v3102, %v3288
        %v3290 = vpop.f32.mrb[0].mxu0
        %3291 = vmatprep.mubr.f32.mxu0 0.0
        %3292 = vmatmul.mubr.f32.gmra.mrb[0].mxu0 %v3150
        %v3293 = vpop.f32.mrb[0].mxu0
        %v3294 = vadd.f32 %v3102, %v3293
        %v3295 = vpop.f32.mrb[0].mxu0
        %3296 = vdwg.mxu0
        %v3297 = vld [vmem:[%s651] sm:$0xff]
        %v3298 = vld [vmem:[%s651 + $0x8] sm:$0xff]
        %v3299 = vld [vmem:[%s651 + $0x10] sm:$0xff]
        %v3300 = vld [vmem:[%s651 + $0x18] sm:$0xff]
        %v3301 = vld [vmem:[%s651 + $0x20] sm:$0xff]
        %v3302 = vld [vmem:[%s651 + $0x28] sm:$0xff]
        %v3303 = vld [vmem:[%s651 + $0x30] sm:$0xff]
        %v3304 = vld [vmem:[%s651 + $0x38] sm:$0xff]
        %v3305 = vld [vmem:[%s651 + $0x40] sm:$0xff]
        %v3306 = vld [vmem:[%s651 + $0x48] sm:$0xff]
        %v3307 = vld [vmem:[%s651 + $0x50] sm:$0xff]
        %v3308 = vld [vmem:[%s651 + $0x58] sm:$0xff]
        %v3309 = vld [vmem:[%s651 + $0x60] sm:$0xff]
        %v3310 = vld [vmem:[%s651 + $0x68] sm:$0xff]
        %v3311 = vld [vmem:[%s651 + $0x70] sm:$0xff]
        %v3312 = vld [vmem:[%s651 + $0x78] sm:$0xff]
        %3314 = vset.pattern.permute.xlu0 0
        %3315 = vperm.xlu0 %3314, %v3297
        %v3316 = vpop.permute.xlu0 %3315
        %3319 = vset.pattern.permute.xlu0 0
        %3320 = vperm.xlu0 %3319, %v3298
        %v3321 = vpop.permute.xlu0 %3320
        %3324 = vset.pattern.permute.xlu0 0
        %3325 = vperm.xlu0 %3324, %v3299
        %v3326 = vpop.permute.xlu0 %3325
        %3329 = vset.pattern.permute.xlu0 0
        %3330 = vperm.xlu0 %3329, %v3300
        %v3331 = vpop.permute.xlu0 %3330
        %3334 = vset.pattern.permute.xlu0 0
        %3335 = vperm.xlu0 %3334, %v3301
        %v3336 = vpop.permute.xlu0 %3335
        %3339 = vset.pattern.permute.xlu0 0
        %3340 = vperm.xlu0 %3339, %v3302
        %v3341 = vpop.permute.xlu0 %3340
        %3344 = vset.pattern.permute.xlu0 0
        %3345 = vperm.xlu0 %3344, %v3303
        %v3346 = vpop.permute.xlu0 %3345
        %3349 = vset.pattern.permute.xlu0 0
        %3350 = vperm.xlu0 %3349, %v3304
        %v3351 = vpop.permute.xlu0 %3350
        %3354 = vset.pattern.permute.xlu0 0
        %3355 = vperm.xlu0 %3354, %v3305
        %v3356 = vpop.permute.xlu0 %3355
        %3359 = vset.pattern.permute.xlu0 0
        %3360 = vperm.xlu0 %3359, %v3306
        %v3361 = vpop.permute.xlu0 %3360
        %3364 = vset.pattern.permute.xlu0 0
        %3365 = vperm.xlu0 %3364, %v3307
        %v3366 = vpop.permute.xlu0 %3365
        %3369 = vset.pattern.permute.xlu0 0
        %3370 = vperm.xlu0 %3369, %v3308
        %v3371 = vpop.permute.xlu0 %3370
        %3374 = vset.pattern.permute.xlu0 0
        %3375 = vperm.xlu0 %3374, %v3309
        %v3376 = vpop.permute.xlu0 %3375
        %3379 = vset.pattern.permute.xlu0 0
        %3380 = vperm.xlu0 %3379, %v3310
        %v3381 = vpop.permute.xlu0 %3380
        %3384 = vset.pattern.permute.xlu0 0
        %3385 = vperm.xlu0 %3384, %v3311
        %v3386 = vpop.permute.xlu0 %3385
        %3389 = vset.pattern.permute.xlu0 0
        %3390 = vperm.xlu0 %3389, %v3312
        %v3391 = vpop.permute.xlu0 %3390
        %v3393 = vmul.f32 %v3219, %v3316
        %v3394 = vmul.f32 %v3224, %v3321
        %v3395 = vmul.f32 %v3229, %v3326
        %v3396 = vmul.f32 %v3234, %v3331
        %v3397 = vmul.f32 %v3239, %v3336
        %v3398 = vmul.f32 %v3244, %v3341
        %v3399 = vmul.f32 %v3249, %v3346
        %v3400 = vmul.f32 %v3254, %v3351
        %v3401 = vmul.f32 %v3259, %v3356
        %v3402 = vmul.f32 %v3264, %v3361
        %v3403 = vmul.f32 %v3269, %v3366
        %v3404 = vmul.f32 %v3274, %v3371
        %v3405 = vmul.f32 %v3279, %v3376
        %v3406 = vmul.f32 %v3284, %v3381
        %v3407 = vmul.f32 %v3289, %v3386
        %v3408 = vmul.f32 %v3294, %v3391
        %v3409 = vadd.f32 %v3393, %v1601
        %v3410 = vadd.f32 %v3394, %v1602
        %v3411 = vadd.f32 %v3395, %v1603
        %v3412 = vadd.f32 %v3396, %v1604
        %v3413 = vadd.f32 %v3397, %v1605
        %v3414 = vadd.f32 %v3398, %v1606
        %v3415 = vadd.f32 %v3399, %v1607
        %v3416 = vadd.f32 %v3400, %v1608
        %v3417 = vadd.f32 %v3401, %v1609
        %v3418 = vadd.f32 %v3402, %v1610
        %v3419 = vadd.f32 %v3403, %v1611
        %v3420 = vadd.f32 %v3404, %v1612
        %v3421 = vadd.f32 %v3405, %v1613
        %v3422 = vadd.f32 %v3406, %v1614
        %v3423 = vadd.f32 %v3407, %v1615
        %v3424 = vadd.f32 %v3408, %v1616
        %v3425 = vld [vmem:[%s16] sm:$0xff]
        %v3426 = vld [vmem:[%s16 + $0x8] sm:$0xff]
        %v3427 = vld [vmem:[%s17] sm:$0xff]
        %v3428 = vld [vmem:[%s17 + $0x8] sm:$0xff]
        %3430 = vset.pattern.permute.xlu0 0
        %3431 = vperm.xlu0 %3430, %v3427
        %v3432 = vpop.permute.xlu0 %3431
        %3435 = vset.pattern.permute.xlu0 0
        %3436 = vperm.xlu0 %3435, %v3428
        %v3437 = vpop.permute.xlu0 %3436
        %v3440 = vsel %vm948, %v3425, 0
        %v3443 = vsel %vm948, %v3426, 0
        %v3446 = vsel %vm948, %v3409, 0
        %v3449 = vsel %vm948, %v3410, 0
        %v3452 = vsel %vm948, %v3411, 0
        %v3455 = vsel %vm948, %v3412, 0
        %v3458 = vsel %vm948, %v3413, 0
        %v3461 = vsel %vm948, %v3414, 0
        %v3464 = vsel %vm948, %v3415, 0
        %v3467 = vsel %vm948, %v3416, 0
        %v3470 = vsel %vm948, %v3417, 0
        %v3473 = vsel %vm948, %v3418, 0
        %v3476 = vsel %vm948, %v3419, 0
        %v3479 = vsel %vm948, %v3420, 0
        %v3482 = vsel %vm948, %v3421, 0
        %v3485 = vsel %vm948, %v3422, 0
        %v3488 = vsel %vm948, %v3423, 0
        %v3491 = vsel %vm948, %v3424, 0
        %3493 = vmatprep.subr.mxu0 0.0
        %3494 = vmatpush1.xpose.msra.mxu0 %v3446
        %3495 = vmatprep.subr.mxu0 0.0
        %3496 = vmatpush1.xpose.msra.mxu0 %v3449
        %3497 = vmatprep.subr.mxu0 0.0
        %3498 = vmatpush1.xpose.msra.mxu0 %v3452
        %3499 = vmatprep.subr.mxu0 0.0
        %3500 = vmatpush1.xpose.msra.mxu0 %v3455
        %3501 = vmatprep.subr.mxu0 0.0
        %3502 = vmatpush1.xpose.msra.mxu0 %v3458
        %3503 = vmatprep.subr.mxu0 0.0
        %3504 = vmatpush1.xpose.msra.mxu0 %v3461
        %3505 = vmatprep.subr.mxu0 0.0
        %3506 = vmatpush1.xpose.msra.mxu0 %v3464
        %3507 = vmatprep.subr.mxu0 0.0
        %3508 = vmatpush1.xpose.msra.mxu0 %v3467
        %3509 = vmatprep.subr.mxu0 0.0
        %3510 = vmatpush1.xpose.msra.mxu0 %v3470
        %3511 = vmatprep.subr.mxu0 0.0
        %3512 = vmatpush1.xpose.msra.mxu0 %v3473
        %3513 = vmatprep.subr.mxu0 0.0
        %3514 = vmatpush1.xpose.msra.mxu0 %v3476
        %3515 = vmatprep.subr.mxu0 0.0
        %3516 = vmatpush1.xpose.msra.mxu0 %v3479
        %3517 = vmatprep.subr.mxu0 0.0
        %3518 = vmatpush1.xpose.msra.mxu0 %v3482
        %3519 = vmatprep.subr.mxu0 0.0
        %3520 = vmatpush1.xpose.msra.mxu0 %v3485
        %3521 = vmatprep.subr.mxu0 0.0
        %3522 = vmatpush1.xpose.msra.mxu0 %v3488
        %3523 = vmatprep.subr.mxu0 0.0
        %3524 = vmatpush1.xpose.msra.mxu0 %v3491
        %3525 = vmatprep.subr.mxu0 0.0
        %3526 = vmatpush1.xpose.msra.mxu0 0.0
        %3527 = vmatprep.subr.mxu0 0.0
        %3528 = vmatpush1.xpose.msra.mxu0 0.0
        %3529 = vmatprep.subr.mxu0 0.0
        %3530 = vmatpush1.xpose.msra.mxu0 0.0
        %3531 = vmatprep.subr.mxu0 0.0
        %3532 = vmatpush1.xpose.msra.mxu0 0.0
        %3533 = vmatprep.subr.mxu0 0.0
        %3534 = vmatpush1.xpose.msra.mxu0 0.0
        %3535 = vmatprep.subr.mxu0 0.0
        %3536 = vmatpush1.xpose.msra.mxu0 0.0
        %3537 = vmatprep.subr.mxu0 0.0
        %3538 = vmatpush1.xpose.msra.mxu0 0.0
        %3539 = vmatprep.subr.mxu0 0.0
        %3540 = vmatpush1.xpose.msra.mxu0 0.0
        %3541 = vmatprep.subr.mxu0 0.0
        %3542 = vmatpush1.xpose.msra.mxu0 0.0
        %3543 = vmatprep.subr.mxu0 0.0
        %3544 = vmatpush1.xpose.msra.mxu0 0.0
        %3545 = vmatprep.subr.mxu0 0.0
        %3546 = vmatpush1.xpose.msra.mxu0 0.0
        %3547 = vmatprep.subr.mxu0 0.0
        %3548 = vmatpush1.xpose.msra.mxu0 0.0
        %3549 = vmatprep.subr.mxu0 0.0
        %3550 = vmatpush1.xpose.msra.mxu0 0.0
        %3551 = vmatprep.subr.mxu0 0.0
        %3552 = vmatpush1.xpose.msra.mxu0 0.0
        %3553 = vmatprep.subr.mxu0 0.0
        %3554 = vmatpush1.xpose.msra.mxu0 0.0
        %3555 = vmatprep.subr.mxu0 0.0
        %3556 = vmatpush1.xpose.msra.mxu0 0.0
        %3557 = vmatprep.mubr.f32.mxu0 0.0
        %3558 = vmatmul.mubr.f32.gmra.mrb[0].mxu0 %v3440
        %v3559 = vpop.f32.mrb[0].mxu0
        %v3560 = vadd.f32 %v3432, %v3559
        %v3561 = vpop.f32.mrb[0].mxu0
        %3562 = vmatprep.mubr.f32.mxu0 0.0
        %3563 = vmatmul.mubr.f32.gmra.mrb[0].mxu0 %v3443
        %v3564 = vpop.f32.mrb[0].mxu0
        %v3565 = vadd.f32 %v3437, %v3564
        %v3566 = vpop.f32.mrb[0].mxu0
        %3567 = vdwg.mxu0
        %v3568 = vld [vmem:[%s646] sm:$0xff]
        %v3569 = vld [vmem:[%s646 + $0x8] sm:$0xff]
        %v3570 = vadd.f32 %v3568, %v3560
        %v3571 = vadd.f32 %v3569, %v3565
        %v3572 = vld [vmem:[%s654] sm:$0x1]
        %v3574 = vlaneseq
        %v3575 = vshrl.u32 %v3574, 7
        %v3576 = vsub.s32 0, %v3575
        %v3577 = vrot.slane %v3572, %v3576
        %v3579 = vmul.f32 %v3570, %v3577
        %v3580 = vmul.f32 %v3571, %v3577
        %3581 = vst [vmem:[%s636] sm:$0xff] %v3579
        %3582 = vst [vmem:[%s636 + $0x8] sm:$0xff] %v3580
        %s3583 = sand.u32 %s460, 1
        %s3584 = scalar_lea.sflag [#allocation3], %s3583
        %s3585 = sand.u32 %s460, 1
        %s3586 = smul.addr %s3585, 16
        %s3587 = scalar_lea.vmem [#allocation2], %s3586
        // Predicated region
        $region97: #{tpu_custom_call.1} parent=95 // pred_check
          %p3588 = pneg %p470
        $region98: #{tpu_custom_call.1} parent=95 // pred_check_branch
          %3590 = sbr.rel (%p3588) target = $region100
        $region99: #{tpu_custom_call.1} parent=95 // pred_region
          %s3592 = ssub.s32 256, 256
          %3593 = vsyncadd %s3584, %s3592
          %s3594 = smul.addr %s33, 2
          %s3595 = smul.addr %s3594, 128
          %s3596 = scalar_lea.hbm %s19, %s3595
          %s3597 = sshll.u32 %s3587, 4
          %s3598 = int_to_ptr.vmem [resolvable:$true] %s3597
          %3603 = dma.vmem_to_hbm [thread:$0]  %s3598, 256, %s3596, %s3584, 128, 128, 8
        $region100: #{tpu_custom_call.1} parent=95 // pred_fallthru
          _
      $region96: #{tpu_custom_call.1} parent=5 // pred_fallthru
        _
      %p3604 = scmp.le.s32.totalorder 2, %s28
      // Predicated region
      $region101: #{tpu_custom_call.1} parent=5 // pred_check
        %p3605 = pneg %p3604
      $region102: #{tpu_custom_call.1} parent=5 // pred_check_branch
        %3607 = sbr.rel (%p3605) target = $region104
      $region103: #{tpu_custom_call.1} parent=5 // pred_region
        %s3608 = ssub.s32 %s28, 2
        // Predicated region
        $region105: #{tpu_custom_call.1} parent=103 // pred_check
          %p3609 = pneg %p476
        $region106: #{tpu_custom_call.1} parent=103 // pred_check_branch
          %3611 = sbr.rel (%p3609) target = $region108
        $region107: #{tpu_custom_call.1} parent=103 // pred_region
          %s3612 = sand.u32 %s461, 1
          %s3613 = scalar_lea.sflag [#allocation3], %s3612
          %s3614 = sand.u32 %s461, 1
          %s3615 = smul.addr %s3614, 16
          %s3616 = scalar_lea.vmem [#allocation2], %s3615
          %3617 = dma.done %s3613, 256
        $region108: #{tpu_custom_call.1} parent=103 // pred_fallthru
          _
      $region104: #{tpu_custom_call.1} parent=5 // pred_fallthru
        _
    $region6: #{tpu_custom_call.1} parent=1 // loop_footer
      %s32 = sadd.s32 1, %s28
    $region7: #{tpu_custom_call.1} parent=1 // loop_footer_branch
      %27 = sbr.rel target = $region3
    $region8: #{tpu_custom_call.1} parent=1 // loop_exit
      _
    %3618 = vsyncpa [#allocation3], 1
    %s3619 = scalar_lea.sflag [#allocation3], 1
    %3620 = vsyncpa %s3619, 1

</llo_original>
